<compile_context>
chip_gen: v7x
topology: tpu7x:2x2x1
jax: 0.10.0
libtpu: 0.0.40
codegen_flags: <defaults>
</compile_context>

<pallas_src>
import jax
import jax.numpy as jnp
from jax.experimental import pallas as pl
from jax.experimental.pallas import tpu as pltpu


# ----------------------------------------------------------------------------
# Pallas kernel: fused 1x1 projections + column attention + residual.
#   x_ref : (1, C, H, TW) block of x in its native dtype (TW columns on lanes)
#   w*_ref, b*_ref, gamma_ref : tiny parameters resident in SMEM
#   o_ref : (1, C, H, TW) output block (same dtype as x)
# ----------------------------------------------------------------------------
def col_attention_kernel(x_ref, wq_ref, bq_ref, wk_ref, bk_ref, wv_ref, bv_ref,
                         gamma_ref, o_ref):
    _, C, H, TW = x_ref.shape
    Dqk = wq_ref.shape[0]

    x = x_ref[0].astype(jnp.float32)                # (C, H, TW), f32 compute
    xs = [x[c] for c in range(C)]                   # per-input-channel (H, TW) slabs

    # 1x1 convs as lane-parallel VPU FMAs: scalar weight (SMEM) * (H, TW) slab.
    def project(w_ref, b_ref, n_out):
        outs = []
        for o in range(n_out):
            acc = xs[0] * w_ref[o, 0]
            for c in range(1, C):
                acc = acc + xs[c] * w_ref[o, c]
            outs.append(acc + b_ref[o])
        return outs

    q = project(wq_ref, bq_ref, Dqk)                # Dqk slabs of (H, TW)
    k = project(wk_ref, bk_ref, Dqk)
    v = jnp.stack(project(wv_ref, bv_ref, C), 0)    # (C, H_j, TW)

    # Scores s[i, j, w] = sum_d q[d][i, w] * k[d][j, w]  -> (H_i, H_j, TW).
    # (No 1/sqrt(Dqk) scale -- the PyTorch module has none.)
    s = q[0][:, None, :] * k[0][None, :, :]
    for d in range(1, Dqk):
        s = s + q[d][:, None, :] * k[d][None, :, :]

    # Softmax over the key-row axis j (dim=2 of the PyTorch module) with the
    # normalization deferred until after the V contraction.
    m = jnp.max(s, axis=1, keepdims=True)           # (H_i, 1, TW)
    e = jnp.exp(s - m)                              # (H_i, H_j, TW), un-normalized
    denom = jnp.sum(e, axis=1)                      # (H_i, TW), always >= 1

    # out[c, i, w] = sum_j e[i, j, w] * v[c, j, w]
    out = v[:, 0, :][:, None, :] * e[:, 0, :][None, :, :]
    for j in range(1, H):
        out = out + v[:, j, :][:, None, :] * e[:, j, :][None, :, :]

    inv = 1.0 / denom                               # exact divide (1e-4 check holds)
    out = out * inv[None, :, :]                     # (C, H_i, TW)

    gamma = gamma_ref[0]
    o_ref[0] = (gamma * out + x).astype(o_ref.dtype)


# ----------------------------------------------------------------------------
# Wrapper: BlockSpecs / grid on the native [B, C, H, W] layout.
# ----------------------------------------------------------------------------
def col_attention_forward(x, params, *, block_w=256, vmem_budget_bytes=20 * 2**20):
    """x: [B, C, H, W]; params = (wq, bq, wk, bk, wv, bv, gamma) with
    wq/wk: [Dqk, C], wv: [C, C] (PyTorch 1x1-conv weights squeezed), gamma scalar.

    block_w = target columns per grid step (kept a multiple of 128 when W is
    tiled so output stores stay lane-dense).  Per-generation guidance:
      v5e: keep per-step footprint <= ~8-12 MiB;  v6e: block_w 512-1024 with the
      scoped VMEM limit raised;  v7x: footprint <= ~24-32 MiB (64 MiB VMEM) and
      a total grid length that is a multiple of 2 so both TensorCores are busy.
    """
    wq, bq, wk, bk, wv, bv, gamma = params
    B, C, H, W = x.shape
    Dqk = wq.shape[0]
    out_dtype = x.dtype

    # Per-grid-step VMEM footprint estimate: double-buffered in+out blocks plus
    # f32 intermediates (x upcast, v, out acc, q/k slabs, s/e score tensors).
    def footprint(t):
        blk = C * H * t
        return (4 * blk * x.dtype.itemsize
                + 4 * (3 * blk + 2 * Dqk * H * t + 2 * H * H * t))

    # Column-tile width: full W (allowed for any W) or a lane-aligned tile.
    if W <= block_w or W <= 128:
        tw = W
    else:
        tw = max(128, (min(block_w, W) // 128) * 128)
        while tw > 128 and footprint(tw) > vmem_budget_bytes:
            tw -= 128

    Wp = pl.cdiv(W, tw) * tw
    xp = x if Wp == W else jnp.pad(x, ((0, 0), (0, 0), (0, 0), (0, Wp - W)))
    # Zero-padded columns see a bias-only, uniform softmax (finite) and are
    # sliced off below; prefer block_w dividing W to avoid the wasted compute.

    # Tiny projection params live in SMEM and are read as scalars in-kernel.
    f32 = jnp.float32
    wq2, wk2, wv2 = wq.astype(f32), wk.astype(f32), wv.astype(f32)
    bq1, bk1, bv1 = bq.astype(f32), bk.astype(f32), bv.astype(f32)
    gamma1 = jnp.asarray(gamma, f32).reshape(1)

    smem = pl.BlockSpec(memory_space=pltpu.MemorySpace.SMEM)
    grid = (B, Wp // tw)

    out = pl.pallas_call(
        col_attention_kernel,
        out_shape=jax.ShapeDtypeStruct((B, C, H, Wp), out_dtype),
        grid=grid,
        in_specs=[
            pl.BlockSpec((1, C, H, tw), lambda b, wi: (b, 0, 0, wi)),   # x tile
            smem, smem,                                                 # Wq, bq
            smem, smem,                                                 # Wk, bk
            smem, smem,                                                 # Wv, bv
            smem,                                                       # gamma
        ],
        out_specs=pl.BlockSpec((1, C, H, tw), lambda b, wi: (b, 0, 0, wi)),
        compiler_params=pltpu.CompilerParams(
            dimension_semantics=("parallel", "parallel"),               # megacore
            vmem_limit_bytes=int(min(64 * 2**20,
                                     max(32 * 2**20, 2 * footprint(tw)))),
        ),
    )(xp, wq2, bq1, wk2, bk1, wv2, bv1, gamma1)

    return out if Wp == W else out[..., :W]


# ----------------------------------------------------------------------------
# Pure-JAX reference (direct transcription of the PyTorch forward).
# ----------------------------------------------------------------------------
def col_attention_ref(x, params):
    wq, bq, wk, bk, wv, bv, gamma = params
    q = jnp.einsum('dc,bchw->bdhw', wq, x) + bq[None, :, None, None]
    k = jnp.einsum('dc,bchw->bdhw', wk, x) + bk[None, :, None, None]
    v = jnp.einsum('ec,bchw->behw', wv, x) + bv[None, :, None, None]
    s = jnp.einsum('bdiw,bdjw->bijw', q, k)          # per-column (b, w) scores
    attn = jax.nn.softmax(s, axis=2)                  # softmax over key rows j
    out = jnp.einsum('bijw,bcjw->bciw', attn, v)      # == V @ attn^T per column
    return gamma * out + x


def _make_params(key, C, Dqk):
    kq, kbq, kk, kbk, kv, kbv = jax.random.split(key, 6)
    wq = 0.2 * jax.random.normal(kq, (Dqk, C), jnp.float32)
    bq = 0.1 * jax.random.normal(kbq, (Dqk,), jnp.float32)
    wk = 0.2 * jax.random.normal(kk, (Dqk, C), jnp.float32)
    bk = 0.1 * jax.random.normal(kbk, (Dqk,), jnp.float32)
    wv = 0.2 * jax.random.normal(kv, (C, C), jnp.float32)
    bv = 0.1 * jax.random.normal(kbv, (C,), jnp.float32)
    # nn.Parameter(torch.zeros(1)) at init would make y == x; use a nonzero
    # gamma so the attention path is actually exercised by the check.
    gamma = jnp.float32(0.7)
    return (wq, bq, wk, bk, wv, bv, gamma)


if __name__ == "__main__":
    key = jax.random.PRNGKey(0)
    k1, k2, k3, k4 = jax.random.split(key, 4)

    # --- test 1: module-scale shapes, single W tile, grid over batch --------
    B, C, H, W, Dqk = 2, 4, 16, 16, 8
    x = jax.random.normal(k1, (B, C, H, W), jnp.float32)
    params = _make_params(k2, C, Dqk)
    out = jax.block_until_ready(col_attention_forward(x, params))
    ref = col_attention_ref(x, params)
    assert out.shape == (B, C, H, W)
    assert jnp.allclose(out, ref, atol=1e-4, rtol=1e-4), "mismatch vs reference (t1)"

    # --- test 2: exercises lane-aligned W tiling + column padding -----------
    B2, C2, H2, W2, D2 = 1, 4, 8, 320, 4            # tw=128 -> 3 tiles, 64 padded cols
    x2 = jax.random.normal(k3, (B2, C2, H2, W2), jnp.float32)
    params2 = _make_params(k4, C2, D2)
    out2 = jax.block_until_ready(col_attention_forward(x2, params2, block_w=128))
    ref2 = col_attention_ref(x2, params2)
    assert out2.shape == (B2, C2, H2, W2)
    assert jnp.allclose(out2, ref2, atol=1e-4, rtol=1e-4), "mismatch vs reference (t2)"

    print("KERNEL_OK")
</pallas_src>

<mosaic_0001>
module attributes {stable_mosaic.version = 11 : i64} {
  func.func @col_attention_kernel(%arg0: i32, %arg1: i32, %arg2: memref<1x4x16x16xf32, #tpu.memory_space<vmem>>, %arg3: memref<8x4xf32, #tpu.memory_space<smem>>, %arg4: memref<8xf32, #tpu.memory_space<smem>>, %arg5: memref<8x4xf32, #tpu.memory_space<smem>>, %arg6: memref<8xf32, #tpu.memory_space<smem>>, %arg7: memref<4x4xf32, #tpu.memory_space<smem>>, %arg8: memref<4xf32, #tpu.memory_space<smem>>, %arg9: memref<1xf32, #tpu.memory_space<smem>>, %arg10: memref<1x4x16x16xf32, #tpu.memory_space<vmem>>) attributes {dimension_semantics = [#tpu.dimension_semantics<parallel>, #tpu.dimension_semantics<parallel>], iteration_bounds = array<i64: 2, 1>, scalar_prefetch = 0 : i64, scratch_operands = 0 : i64, tpu.core_type = #tpu.core_type<tc>, window_params = [{transform_indices = @transform_0, window_bounds = array<i64: 1, 4, 16, 16>}, {transform_indices = @transform_1, window_bounds = array<i64: 8, 4>}, {transform_indices = @transform_2, window_bounds = array<i64: 8>}, {transform_indices = @transform_3, window_bounds = array<i64: 8, 4>}, {transform_indices = @transform_4, window_bounds = array<i64: 8>}, {transform_indices = @transform_5, window_bounds = array<i64: 4, 4>}, {transform_indices = @transform_6, window_bounds = array<i64: 4>}, {transform_indices = @transform_7, window_bounds = array<i64: 1>}, {transform_indices = @transform_8, window_bounds = array<i64: 1, 4, 16, 16>}]} {
    %c0 = arith.constant 0 : index
    %c0_0 = arith.constant 0 : index
    %c0_1 = arith.constant 0 : index
    %c0_2 = arith.constant 0 : index
    %0 = vector.load %arg2[%c0, %c0_0, %c0_1, %c0_2] : memref<1x4x16x16xf32, #tpu.memory_space<vmem>>, vector<1x4x16x16xf32>
    %1 = vector.shape_cast %0 : vector<1x4x16x16xf32> to vector<4x16x16xf32>
    %2 = vector.extract_strided_slice %1 {offsets = [0, 0, 0], sizes = [1, 16, 16], strides = [1, 1, 1]} : vector<4x16x16xf32> to vector<1x16x16xf32>
    %3 = vector.shape_cast %2 : vector<1x16x16xf32> to vector<16x16xf32>
    %4 = vector.extract_strided_slice %1 {offsets = [1, 0, 0], sizes = [1, 16, 16], strides = [1, 1, 1]} : vector<4x16x16xf32> to vector<1x16x16xf32>
    %5 = vector.shape_cast %4 : vector<1x16x16xf32> to vector<16x16xf32>
    %6 = vector.extract_strided_slice %1 {offsets = [2, 0, 0], sizes = [1, 16, 16], strides = [1, 1, 1]} : vector<4x16x16xf32> to vector<1x16x16xf32>
    %7 = vector.shape_cast %6 : vector<1x16x16xf32> to vector<16x16xf32>
    %8 = vector.extract_strided_slice %1 {offsets = [3, 0, 0], sizes = [1, 16, 16], strides = [1, 1, 1]} : vector<4x16x16xf32> to vector<1x16x16xf32>
    %9 = vector.shape_cast %8 : vector<1x16x16xf32> to vector<16x16xf32>
    %c0_3 = arith.constant 0 : index
    %c0_4 = arith.constant 0 : index
    %10 = memref.load %arg3[%c0_3, %c0_4] : memref<8x4xf32, #tpu.memory_space<smem>>
    %11 = vector.broadcast %10 : f32 to vector<16x16xf32>
    %12 = arith.mulf %3, %11 : vector<16x16xf32>
    %c0_5 = arith.constant 0 : index
    %c1 = arith.constant 1 : index
    %13 = memref.load %arg3[%c0_5, %c1] : memref<8x4xf32, #tpu.memory_space<smem>>
    %14 = vector.broadcast %13 : f32 to vector<16x16xf32>
    %15 = arith.mulf %5, %14 : vector<16x16xf32>
    %16 = arith.addf %12, %15 : vector<16x16xf32>
    %c0_6 = arith.constant 0 : index
    %c2 = arith.constant 2 : index
    %17 = memref.load %arg3[%c0_6, %c2] : memref<8x4xf32, #tpu.memory_space<smem>>
    %18 = vector.broadcast %17 : f32 to vector<16x16xf32>
    %19 = arith.mulf %7, %18 : vector<16x16xf32>
    %20 = arith.addf %16, %19 : vector<16x16xf32>
    %c0_7 = arith.constant 0 : index
    %c3 = arith.constant 3 : index
    %21 = memref.load %arg3[%c0_7, %c3] : memref<8x4xf32, #tpu.memory_space<smem>>
    %22 = vector.broadcast %21 : f32 to vector<16x16xf32>
    %23 = arith.mulf %9, %22 : vector<16x16xf32>
    %24 = arith.addf %20, %23 : vector<16x16xf32>
    %c0_8 = arith.constant 0 : index
    %25 = memref.load %arg4[%c0_8] : memref<8xf32, #tpu.memory_space<smem>>
    %26 = vector.broadcast %25 : f32 to vector<16x16xf32>
    %27 = arith.addf %24, %26 : vector<16x16xf32>
    %c1_9 = arith.constant 1 : index
    %c0_10 = arith.constant 0 : index
    %28 = memref.load %arg3[%c1_9, %c0_10] : memref<8x4xf32, #tpu.memory_space<smem>>
    %29 = vector.broadcast %28 : f32 to vector<16x16xf32>
    %30 = arith.mulf %3, %29 : vector<16x16xf32>
    %c1_11 = arith.constant 1 : index
    %c1_12 = arith.constant 1 : index
    %31 = memref.load %arg3[%c1_11, %c1_12] : memref<8x4xf32, #tpu.memory_space<smem>>
    %32 = vector.broadcast %31 : f32 to vector<16x16xf32>
    %33 = arith.mulf %5, %32 : vector<16x16xf32>
    %34 = arith.addf %30, %33 : vector<16x16xf32>
    %c1_13 = arith.constant 1 : index
    %c2_14 = arith.constant 2 : index
    %35 = memref.load %arg3[%c1_13, %c2_14] : memref<8x4xf32, #tpu.memory_space<smem>>
    %36 = vector.broadcast %35 : f32 to vector<16x16xf32>
    %37 = arith.mulf %7, %36 : vector<16x16xf32>
    %38 = arith.addf %34, %37 : vector<16x16xf32>
    %c1_15 = arith.constant 1 : index
    %c3_16 = arith.constant 3 : index
    %39 = memref.load %arg3[%c1_15, %c3_16] : memref<8x4xf32, #tpu.memory_space<smem>>
    %40 = vector.broadcast %39 : f32 to vector<16x16xf32>
    %41 = arith.mulf %9, %40 : vector<16x16xf32>
    %42 = arith.addf %38, %41 : vector<16x16xf32>
    %c1_17 = arith.constant 1 : index
    %43 = memref.load %arg4[%c1_17] : memref<8xf32, #tpu.memory_space<smem>>
    %44 = vector.broadcast %43 : f32 to vector<16x16xf32>
    %45 = arith.addf %42, %44 : vector<16x16xf32>
    %c2_18 = arith.constant 2 : index
    %c0_19 = arith.constant 0 : index
    %46 = memref.load %arg3[%c2_18, %c0_19] : memref<8x4xf32, #tpu.memory_space<smem>>
    %47 = vector.broadcast %46 : f32 to vector<16x16xf32>
    %48 = arith.mulf %3, %47 : vector<16x16xf32>
    %c2_20 = arith.constant 2 : index
    %c1_21 = arith.constant 1 : index
    %49 = memref.load %arg3[%c2_20, %c1_21] : memref<8x4xf32, #tpu.memory_space<smem>>
    %50 = vector.broadcast %49 : f32 to vector<16x16xf32>
    %51 = arith.mulf %5, %50 : vector<16x16xf32>
    %52 = arith.addf %48, %51 : vector<16x16xf32>
    %c2_22 = arith.constant 2 : index
    %c2_23 = arith.constant 2 : index
    %53 = memref.load %arg3[%c2_22, %c2_23] : memref<8x4xf32, #tpu.memory_space<smem>>
    %54 = vector.broadcast %53 : f32 to vector<16x16xf32>
    %55 = arith.mulf %7, %54 : vector<16x16xf32>
    %56 = arith.addf %52, %55 : vector<16x16xf32>
    %c2_24 = arith.constant 2 : index
    %c3_25 = arith.constant 3 : index
    %57 = memref.load %arg3[%c2_24, %c3_25] : memref<8x4xf32, #tpu.memory_space<smem>>
    %58 = vector.broadcast %57 : f32 to vector<16x16xf32>
    %59 = arith.mulf %9, %58 : vector<16x16xf32>
    %60 = arith.addf %56, %59 : vector<16x16xf32>
    %c2_26 = arith.constant 2 : index
    %61 = memref.load %arg4[%c2_26] : memref<8xf32, #tpu.memory_space<smem>>
    %62 = vector.broadcast %61 : f32 to vector<16x16xf32>
    %63 = arith.addf %60, %62 : vector<16x16xf32>
    %c3_27 = arith.constant 3 : index
    %c0_28 = arith.constant 0 : index
    %64 = memref.load %arg3[%c3_27, %c0_28] : memref<8x4xf32, #tpu.memory_space<smem>>
    %65 = vector.broadcast %64 : f32 to vector<16x16xf32>
    %66 = arith.mulf %3, %65 : vector<16x16xf32>
    %c3_29 = arith.constant 3 : index
    %c1_30 = arith.constant 1 : index
    %67 = memref.load %arg3[%c3_29, %c1_30] : memref<8x4xf32, #tpu.memory_space<smem>>
    %68 = vector.broadcast %67 : f32 to vector<16x16xf32>
    %69 = arith.mulf %5, %68 : vector<16x16xf32>
    %70 = arith.addf %66, %69 : vector<16x16xf32>
    %c3_31 = arith.constant 3 : index
    %c2_32 = arith.constant 2 : index
    %71 = memref.load %arg3[%c3_31, %c2_32] : memref<8x4xf32, #tpu.memory_space<smem>>
    %72 = vector.broadcast %71 : f32 to vector<16x16xf32>
    %73 = arith.mulf %7, %72 : vector<16x16xf32>
    %74 = arith.addf %70, %73 : vector<16x16xf32>
    %c3_33 = arith.constant 3 : index
    %c3_34 = arith.constant 3 : index
    %75 = memref.load %arg3[%c3_33, %c3_34] : memref<8x4xf32, #tpu.memory_space<smem>>
    %76 = vector.broadcast %75 : f32 to vector<16x16xf32>
    %77 = arith.mulf %9, %76 : vector<16x16xf32>
    %78 = arith.addf %74, %77 : vector<16x16xf32>
    %c3_35 = arith.constant 3 : index
    %79 = memref.load %arg4[%c3_35] : memref<8xf32, #tpu.memory_space<smem>>
    %80 = vector.broadcast %79 : f32 to vector<16x16xf32>
    %81 = arith.addf %78, %80 : vector<16x16xf32>
    %c4 = arith.constant 4 : index
    %c0_36 = arith.constant 0 : index
    %82 = memref.load %arg3[%c4, %c0_36] : memref<8x4xf32, #tpu.memory_space<smem>>
    %83 = vector.broadcast %82 : f32 to vector<16x16xf32>
    %84 = arith.mulf %3, %83 : vector<16x16xf32>
    %c4_37 = arith.constant 4 : index
    %c1_38 = arith.constant 1 : index
    %85 = memref.load %arg3[%c4_37, %c1_38] : memref<8x4xf32, #tpu.memory_space<smem>>
    %86 = vector.broadcast %85 : f32 to vector<16x16xf32>
    %87 = arith.mulf %5, %86 : vector<16x16xf32>
    %88 = arith.addf %84, %87 : vector<16x16xf32>
    %c4_39 = arith.constant 4 : index
    %c2_40 = arith.constant 2 : index
    %89 = memref.load %arg3[%c4_39, %c2_40] : memref<8x4xf32, #tpu.memory_space<smem>>
    %90 = vector.broadcast %89 : f32 to vector<16x16xf32>
    %91 = arith.mulf %7, %90 : vector<16x16xf32>
    %92 = arith.addf %88, %91 : vector<16x16xf32>
    %c4_41 = arith.constant 4 : index
    %c3_42 = arith.constant 3 : index
    %93 = memref.load %arg3[%c4_41, %c3_42] : memref<8x4xf32, #tpu.memory_space<smem>>
    %94 = vector.broadcast %93 : f32 to vector<16x16xf32>
    %95 = arith.mulf %9, %94 : vector<16x16xf32>
    %96 = arith.addf %92, %95 : vector<16x16xf32>
    %c4_43 = arith.constant 4 : index
    %97 = memref.load %arg4[%c4_43] : memref<8xf32, #tpu.memory_space<smem>>
    %98 = vector.broadcast %97 : f32 to vector<16x16xf32>
    %99 = arith.addf %96, %98 : vector<16x16xf32>
    %c5 = arith.constant 5 : index
    %c0_44 = arith.constant 0 : index
    %100 = memref.load %arg3[%c5, %c0_44] : memref<8x4xf32, #tpu.memory_space<smem>>
    %101 = vector.broadcast %100 : f32 to vector<16x16xf32>
    %102 = arith.mulf %3, %101 : vector<16x16xf32>
    %c5_45 = arith.constant 5 : index
    %c1_46 = arith.constant 1 : index
    %103 = memref.load %arg3[%c5_45, %c1_46] : memref<8x4xf32, #tpu.memory_space<smem>>
    %104 = vector.broadcast %103 : f32 to vector<16x16xf32>
    %105 = arith.mulf %5, %104 : vector<16x16xf32>
    %106 = arith.addf %102, %105 : vector<16x16xf32>
    %c5_47 = arith.constant 5 : index
    %c2_48 = arith.constant 2 : index
    %107 = memref.load %arg3[%c5_47, %c2_48] : memref<8x4xf32, #tpu.memory_space<smem>>
    %108 = vector.broadcast %107 : f32 to vector<16x16xf32>
    %109 = arith.mulf %7, %108 : vector<16x16xf32>
    %110 = arith.addf %106, %109 : vector<16x16xf32>
    %c5_49 = arith.constant 5 : index
    %c3_50 = arith.constant 3 : index
    %111 = memref.load %arg3[%c5_49, %c3_50] : memref<8x4xf32, #tpu.memory_space<smem>>
    %112 = vector.broadcast %111 : f32 to vector<16x16xf32>
    %113 = arith.mulf %9, %112 : vector<16x16xf32>
    %114 = arith.addf %110, %113 : vector<16x16xf32>
    %c5_51 = arith.constant 5 : index
    %115 = memref.load %arg4[%c5_51] : memref<8xf32, #tpu.memory_space<smem>>
    %116 = vector.broadcast %115 : f32 to vector<16x16xf32>
    %117 = arith.addf %114, %116 : vector<16x16xf32>
    %c6 = arith.constant 6 : index
    %c0_52 = arith.constant 0 : index
    %118 = memref.load %arg3[%c6, %c0_52] : memref<8x4xf32, #tpu.memory_space<smem>>
    %119 = vector.broadcast %118 : f32 to vector<16x16xf32>
    %120 = arith.mulf %3, %119 : vector<16x16xf32>
    %c6_53 = arith.constant 6 : index
    %c1_54 = arith.constant 1 : index
    %121 = memref.load %arg3[%c6_53, %c1_54] : memref<8x4xf32, #tpu.memory_space<smem>>
    %122 = vector.broadcast %121 : f32 to vector<16x16xf32>
    %123 = arith.mulf %5, %122 : vector<16x16xf32>
    %124 = arith.addf %120, %123 : vector<16x16xf32>
    %c6_55 = arith.constant 6 : index
    %c2_56 = arith.constant 2 : index
    %125 = memref.load %arg3[%c6_55, %c2_56] : memref<8x4xf32, #tpu.memory_space<smem>>
    %126 = vector.broadcast %125 : f32 to vector<16x16xf32>
    %127 = arith.mulf %7, %126 : vector<16x16xf32>
    %128 = arith.addf %124, %127 : vector<16x16xf32>
    %c6_57 = arith.constant 6 : index
    %c3_58 = arith.constant 3 : index
    %129 = memref.load %arg3[%c6_57, %c3_58] : memref<8x4xf32, #tpu.memory_space<smem>>
    %130 = vector.broadcast %129 : f32 to vector<16x16xf32>
    %131 = arith.mulf %9, %130 : vector<16x16xf32>
    %132 = arith.addf %128, %131 : vector<16x16xf32>
    %c6_59 = arith.constant 6 : index
    %133 = memref.load %arg4[%c6_59] : memref<8xf32, #tpu.memory_space<smem>>
    %134 = vector.broadcast %133 : f32 to vector<16x16xf32>
    %135 = arith.addf %132, %134 : vector<16x16xf32>
    %c7 = arith.constant 7 : index
    %c0_60 = arith.constant 0 : index
    %136 = memref.load %arg3[%c7, %c0_60] : memref<8x4xf32, #tpu.memory_space<smem>>
    %137 = vector.broadcast %136 : f32 to vector<16x16xf32>
    %138 = arith.mulf %3, %137 : vector<16x16xf32>
    %c7_61 = arith.constant 7 : index
    %c1_62 = arith.constant 1 : index
    %139 = memref.load %arg3[%c7_61, %c1_62] : memref<8x4xf32, #tpu.memory_space<smem>>
    %140 = vector.broadcast %139 : f32 to vector<16x16xf32>
    %141 = arith.mulf %5, %140 : vector<16x16xf32>
    %142 = arith.addf %138, %141 : vector<16x16xf32>
    %c7_63 = arith.constant 7 : index
    %c2_64 = arith.constant 2 : index
    %143 = memref.load %arg3[%c7_63, %c2_64] : memref<8x4xf32, #tpu.memory_space<smem>>
    %144 = vector.broadcast %143 : f32 to vector<16x16xf32>
    %145 = arith.mulf %7, %144 : vector<16x16xf32>
    %146 = arith.addf %142, %145 : vector<16x16xf32>
    %c7_65 = arith.constant 7 : index
    %c3_66 = arith.constant 3 : index
    %147 = memref.load %arg3[%c7_65, %c3_66] : memref<8x4xf32, #tpu.memory_space<smem>>
    %148 = vector.broadcast %147 : f32 to vector<16x16xf32>
    %149 = arith.mulf %9, %148 : vector<16x16xf32>
    %150 = arith.addf %146, %149 : vector<16x16xf32>
    %c7_67 = arith.constant 7 : index
    %151 = memref.load %arg4[%c7_67] : memref<8xf32, #tpu.memory_space<smem>>
    %152 = vector.broadcast %151 : f32 to vector<16x16xf32>
    %153 = arith.addf %150, %152 : vector<16x16xf32>
    %c0_68 = arith.constant 0 : index
    %c0_69 = arith.constant 0 : index
    %154 = memref.load %arg5[%c0_68, %c0_69] : memref<8x4xf32, #tpu.memory_space<smem>>
    %155 = vector.broadcast %154 : f32 to vector<16x16xf32>
    %156 = arith.mulf %3, %155 : vector<16x16xf32>
    %c0_70 = arith.constant 0 : index
    %c1_71 = arith.constant 1 : index
    %157 = memref.load %arg5[%c0_70, %c1_71] : memref<8x4xf32, #tpu.memory_space<smem>>
    %158 = vector.broadcast %157 : f32 to vector<16x16xf32>
    %159 = arith.mulf %5, %158 : vector<16x16xf32>
    %160 = arith.addf %156, %159 : vector<16x16xf32>
    %c0_72 = arith.constant 0 : index
    %c2_73 = arith.constant 2 : index
    %161 = memref.load %arg5[%c0_72, %c2_73] : memref<8x4xf32, #tpu.memory_space<smem>>
    %162 = vector.broadcast %161 : f32 to vector<16x16xf32>
    %163 = arith.mulf %7, %162 : vector<16x16xf32>
    %164 = arith.addf %160, %163 : vector<16x16xf32>
    %c0_74 = arith.constant 0 : index
    %c3_75 = arith.constant 3 : index
    %165 = memref.load %arg5[%c0_74, %c3_75] : memref<8x4xf32, #tpu.memory_space<smem>>
    %166 = vector.broadcast %165 : f32 to vector<16x16xf32>
    %167 = arith.mulf %9, %166 : vector<16x16xf32>
    %168 = arith.addf %164, %167 : vector<16x16xf32>
    %c0_76 = arith.constant 0 : index
    %169 = memref.load %arg6[%c0_76] : memref<8xf32, #tpu.memory_space<smem>>
    %170 = vector.broadcast %169 : f32 to vector<16x16xf32>
    %171 = arith.addf %168, %170 : vector<16x16xf32>
    %c1_77 = arith.constant 1 : index
    %c0_78 = arith.constant 0 : index
    %172 = memref.load %arg5[%c1_77, %c0_78] : memref<8x4xf32, #tpu.memory_space<smem>>
    %173 = vector.broadcast %172 : f32 to vector<16x16xf32>
    %174 = arith.mulf %3, %173 : vector<16x16xf32>
    %c1_79 = arith.constant 1 : index
    %c1_80 = arith.constant 1 : index
    %175 = memref.load %arg5[%c1_79, %c1_80] : memref<8x4xf32, #tpu.memory_space<smem>>
    %176 = vector.broadcast %175 : f32 to vector<16x16xf32>
    %177 = arith.mulf %5, %176 : vector<16x16xf32>
    %178 = arith.addf %174, %177 : vector<16x16xf32>
    %c1_81 = arith.constant 1 : index
    %c2_82 = arith.constant 2 : index
    %179 = memref.load %arg5[%c1_81, %c2_82] : memref<8x4xf32, #tpu.memory_space<smem>>
    %180 = vector.broadcast %179 : f32 to vector<16x16xf32>
    %181 = arith.mulf %7, %180 : vector<16x16xf32>
    %182 = arith.addf %178, %181 : vector<16x16xf32>
    %c1_83 = arith.constant 1 : index
    %c3_84 = arith.constant 3 : index
    %183 = memref.load %arg5[%c1_83, %c3_84] : memref<8x4xf32, #tpu.memory_space<smem>>
    %184 = vector.broadcast %183 : f32 to vector<16x16xf32>
    %185 = arith.mulf %9, %184 : vector<16x16xf32>
    %186 = arith.addf %182, %185 : vector<16x16xf32>
    %c1_85 = arith.constant 1 : index
    %187 = memref.load %arg6[%c1_85] : memref<8xf32, #tpu.memory_space<smem>>
    %188 = vector.broadcast %187 : f32 to vector<16x16xf32>
    %189 = arith.addf %186, %188 : vector<16x16xf32>
    %c2_86 = arith.constant 2 : index
    %c0_87 = arith.constant 0 : index
    %190 = memref.load %arg5[%c2_86, %c0_87] : memref<8x4xf32, #tpu.memory_space<smem>>
    %191 = vector.broadcast %190 : f32 to vector<16x16xf32>
    %192 = arith.mulf %3, %191 : vector<16x16xf32>
    %c2_88 = arith.constant 2 : index
    %c1_89 = arith.constant 1 : index
    %193 = memref.load %arg5[%c2_88, %c1_89] : memref<8x4xf32, #tpu.memory_space<smem>>
    %194 = vector.broadcast %193 : f32 to vector<16x16xf32>
    %195 = arith.mulf %5, %194 : vector<16x16xf32>
    %196 = arith.addf %192, %195 : vector<16x16xf32>
    %c2_90 = arith.constant 2 : index
    %c2_91 = arith.constant 2 : index
    %197 = memref.load %arg5[%c2_90, %c2_91] : memref<8x4xf32, #tpu.memory_space<smem>>
    %198 = vector.broadcast %197 : f32 to vector<16x16xf32>
    %199 = arith.mulf %7, %198 : vector<16x16xf32>
    %200 = arith.addf %196, %199 : vector<16x16xf32>
    %c2_92 = arith.constant 2 : index
    %c3_93 = arith.constant 3 : index
    %201 = memref.load %arg5[%c2_92, %c3_93] : memref<8x4xf32, #tpu.memory_space<smem>>
    %202 = vector.broadcast %201 : f32 to vector<16x16xf32>
    %203 = arith.mulf %9, %202 : vector<16x16xf32>
    %204 = arith.addf %200, %203 : vector<16x16xf32>
    %c2_94 = arith.constant 2 : index
    %205 = memref.load %arg6[%c2_94] : memref<8xf32, #tpu.memory_space<smem>>
    %206 = vector.broadcast %205 : f32 to vector<16x16xf32>
    %207 = arith.addf %204, %206 : vector<16x16xf32>
    %c3_95 = arith.constant 3 : index
    %c0_96 = arith.constant 0 : index
    %208 = memref.load %arg5[%c3_95, %c0_96] : memref<8x4xf32, #tpu.memory_space<smem>>
    %209 = vector.broadcast %208 : f32 to vector<16x16xf32>
    %210 = arith.mulf %3, %209 : vector<16x16xf32>
    %c3_97 = arith.constant 3 : index
    %c1_98 = arith.constant 1 : index
    %211 = memref.load %arg5[%c3_97, %c1_98] : memref<8x4xf32, #tpu.memory_space<smem>>
    %212 = vector.broadcast %211 : f32 to vector<16x16xf32>
    %213 = arith.mulf %5, %212 : vector<16x16xf32>
    %214 = arith.addf %210, %213 : vector<16x16xf32>
    %c3_99 = arith.constant 3 : index
    %c2_100 = arith.constant 2 : index
    %215 = memref.load %arg5[%c3_99, %c2_100] : memref<8x4xf32, #tpu.memory_space<smem>>
    %216 = vector.broadcast %215 : f32 to vector<16x16xf32>
    %217 = arith.mulf %7, %216 : vector<16x16xf32>
    %218 = arith.addf %214, %217 : vector<16x16xf32>
    %c3_101 = arith.constant 3 : index
    %c3_102 = arith.constant 3 : index
    %219 = memref.load %arg5[%c3_101, %c3_102] : memref<8x4xf32, #tpu.memory_space<smem>>
    %220 = vector.broadcast %219 : f32 to vector<16x16xf32>
    %221 = arith.mulf %9, %220 : vector<16x16xf32>
    %222 = arith.addf %218, %221 : vector<16x16xf32>
    %c3_103 = arith.constant 3 : index
    %223 = memref.load %arg6[%c3_103] : memref<8xf32, #tpu.memory_space<smem>>
    %224 = vector.broadcast %223 : f32 to vector<16x16xf32>
    %225 = arith.addf %222, %224 : vector<16x16xf32>
    %c4_104 = arith.constant 4 : index
    %c0_105 = arith.constant 0 : index
    %226 = memref.load %arg5[%c4_104, %c0_105] : memref<8x4xf32, #tpu.memory_space<smem>>
    %227 = vector.broadcast %226 : f32 to vector<16x16xf32>
    %228 = arith.mulf %3, %227 : vector<16x16xf32>
    %c4_106 = arith.constant 4 : index
    %c1_107 = arith.constant 1 : index
    %229 = memref.load %arg5[%c4_106, %c1_107] : memref<8x4xf32, #tpu.memory_space<smem>>
    %230 = vector.broadcast %229 : f32 to vector<16x16xf32>
    %231 = arith.mulf %5, %230 : vector<16x16xf32>
    %232 = arith.addf %228, %231 : vector<16x16xf32>
    %c4_108 = arith.constant 4 : index
    %c2_109 = arith.constant 2 : index
    %233 = memref.load %arg5[%c4_108, %c2_109] : memref<8x4xf32, #tpu.memory_space<smem>>
    %234 = vector.broadcast %233 : f32 to vector<16x16xf32>
    %235 = arith.mulf %7, %234 : vector<16x16xf32>
    %236 = arith.addf %232, %235 : vector<16x16xf32>
    %c4_110 = arith.constant 4 : index
    %c3_111 = arith.constant 3 : index
    %237 = memref.load %arg5[%c4_110, %c3_111] : memref<8x4xf32, #tpu.memory_space<smem>>
    %238 = vector.broadcast %237 : f32 to vector<16x16xf32>
    %239 = arith.mulf %9, %238 : vector<16x16xf32>
    %240 = arith.addf %236, %239 : vector<16x16xf32>
    %c4_112 = arith.constant 4 : index
    %241 = memref.load %arg6[%c4_112] : memref<8xf32, #tpu.memory_space<smem>>
    %242 = vector.broadcast %241 : f32 to vector<16x16xf32>
    %243 = arith.addf %240, %242 : vector<16x16xf32>
    %c5_113 = arith.constant 5 : index
    %c0_114 = arith.constant 0 : index
    %244 = memref.load %arg5[%c5_113, %c0_114] : memref<8x4xf32, #tpu.memory_space<smem>>
    %245 = vector.broadcast %244 : f32 to vector<16x16xf32>
    %246 = arith.mulf %3, %245 : vector<16x16xf32>
    %c5_115 = arith.constant 5 : index
    %c1_116 = arith.constant 1 : index
    %247 = memref.load %arg5[%c5_115, %c1_116] : memref<8x4xf32, #tpu.memory_space<smem>>
    %248 = vector.broadcast %247 : f32 to vector<16x16xf32>
    %249 = arith.mulf %5, %248 : vector<16x16xf32>
    %250 = arith.addf %246, %249 : vector<16x16xf32>
    %c5_117 = arith.constant 5 : index
    %c2_118 = arith.constant 2 : index
    %251 = memref.load %arg5[%c5_117, %c2_118] : memref<8x4xf32, #tpu.memory_space<smem>>
    %252 = vector.broadcast %251 : f32 to vector<16x16xf32>
    %253 = arith.mulf %7, %252 : vector<16x16xf32>
    %254 = arith.addf %250, %253 : vector<16x16xf32>
    %c5_119 = arith.constant 5 : index
    %c3_120 = arith.constant 3 : index
    %255 = memref.load %arg5[%c5_119, %c3_120] : memref<8x4xf32, #tpu.memory_space<smem>>
    %256 = vector.broadcast %255 : f32 to vector<16x16xf32>
    %257 = arith.mulf %9, %256 : vector<16x16xf32>
    %258 = arith.addf %254, %257 : vector<16x16xf32>
    %c5_121 = arith.constant 5 : index
    %259 = memref.load %arg6[%c5_121] : memref<8xf32, #tpu.memory_space<smem>>
    %260 = vector.broadcast %259 : f32 to vector<16x16xf32>
    %261 = arith.addf %258, %260 : vector<16x16xf32>
    %c6_122 = arith.constant 6 : index
    %c0_123 = arith.constant 0 : index
    %262 = memref.load %arg5[%c6_122, %c0_123] : memref<8x4xf32, #tpu.memory_space<smem>>
    %263 = vector.broadcast %262 : f32 to vector<16x16xf32>
    %264 = arith.mulf %3, %263 : vector<16x16xf32>
    %c6_124 = arith.constant 6 : index
    %c1_125 = arith.constant 1 : index
    %265 = memref.load %arg5[%c6_124, %c1_125] : memref<8x4xf32, #tpu.memory_space<smem>>
    %266 = vector.broadcast %265 : f32 to vector<16x16xf32>
    %267 = arith.mulf %5, %266 : vector<16x16xf32>
    %268 = arith.addf %264, %267 : vector<16x16xf32>
    %c6_126 = arith.constant 6 : index
    %c2_127 = arith.constant 2 : index
    %269 = memref.load %arg5[%c6_126, %c2_127] : memref<8x4xf32, #tpu.memory_space<smem>>
    %270 = vector.broadcast %269 : f32 to vector<16x16xf32>
    %271 = arith.mulf %7, %270 : vector<16x16xf32>
    %272 = arith.addf %268, %271 : vector<16x16xf32>
    %c6_128 = arith.constant 6 : index
    %c3_129 = arith.constant 3 : index
    %273 = memref.load %arg5[%c6_128, %c3_129] : memref<8x4xf32, #tpu.memory_space<smem>>
    %274 = vector.broadcast %273 : f32 to vector<16x16xf32>
    %275 = arith.mulf %9, %274 : vector<16x16xf32>
    %276 = arith.addf %272, %275 : vector<16x16xf32>
    %c6_130 = arith.constant 6 : index
    %277 = memref.load %arg6[%c6_130] : memref<8xf32, #tpu.memory_space<smem>>
    %278 = vector.broadcast %277 : f32 to vector<16x16xf32>
    %279 = arith.addf %276, %278 : vector<16x16xf32>
    %c7_131 = arith.constant 7 : index
    %c0_132 = arith.constant 0 : index
    %280 = memref.load %arg5[%c7_131, %c0_132] : memref<8x4xf32, #tpu.memory_space<smem>>
    %281 = vector.broadcast %280 : f32 to vector<16x16xf32>
    %282 = arith.mulf %3, %281 : vector<16x16xf32>
    %c7_133 = arith.constant 7 : index
    %c1_134 = arith.constant 1 : index
    %283 = memref.load %arg5[%c7_133, %c1_134] : memref<8x4xf32, #tpu.memory_space<smem>>
    %284 = vector.broadcast %283 : f32 to vector<16x16xf32>
    %285 = arith.mulf %5, %284 : vector<16x16xf32>
    %286 = arith.addf %282, %285 : vector<16x16xf32>
    %c7_135 = arith.constant 7 : index
    %c2_136 = arith.constant 2 : index
    %287 = memref.load %arg5[%c7_135, %c2_136] : memref<8x4xf32, #tpu.memory_space<smem>>
    %288 = vector.broadcast %287 : f32 to vector<16x16xf32>
    %289 = arith.mulf %7, %288 : vector<16x16xf32>
    %290 = arith.addf %286, %289 : vector<16x16xf32>
    %c7_137 = arith.constant 7 : index
    %c3_138 = arith.constant 3 : index
    %291 = memref.load %arg5[%c7_137, %c3_138] : memref<8x4xf32, #tpu.memory_space<smem>>
    %292 = vector.broadcast %291 : f32 to vector<16x16xf32>
    %293 = arith.mulf %9, %292 : vector<16x16xf32>
    %294 = arith.addf %290, %293 : vector<16x16xf32>
    %c7_139 = arith.constant 7 : index
    %295 = memref.load %arg6[%c7_139] : memref<8xf32, #tpu.memory_space<smem>>
    %296 = vector.broadcast %295 : f32 to vector<16x16xf32>
    %297 = arith.addf %294, %296 : vector<16x16xf32>
    %c0_140 = arith.constant 0 : index
    %c0_141 = arith.constant 0 : index
    %298 = memref.load %arg7[%c0_140, %c0_141] : memref<4x4xf32, #tpu.memory_space<smem>>
    %299 = vector.broadcast %298 : f32 to vector<16x16xf32>
    %300 = arith.mulf %3, %299 : vector<16x16xf32>
    %c0_142 = arith.constant 0 : index
    %c1_143 = arith.constant 1 : index
    %301 = memref.load %arg7[%c0_142, %c1_143] : memref<4x4xf32, #tpu.memory_space<smem>>
    %302 = vector.broadcast %301 : f32 to vector<16x16xf32>
    %303 = arith.mulf %5, %302 : vector<16x16xf32>
    %304 = arith.addf %300, %303 : vector<16x16xf32>
    %c0_144 = arith.constant 0 : index
    %c2_145 = arith.constant 2 : index
    %305 = memref.load %arg7[%c0_144, %c2_145] : memref<4x4xf32, #tpu.memory_space<smem>>
    %306 = vector.broadcast %305 : f32 to vector<16x16xf32>
    %307 = arith.mulf %7, %306 : vector<16x16xf32>
    %308 = arith.addf %304, %307 : vector<16x16xf32>
    %c0_146 = arith.constant 0 : index
    %c3_147 = arith.constant 3 : index
    %309 = memref.load %arg7[%c0_146, %c3_147] : memref<4x4xf32, #tpu.memory_space<smem>>
    %310 = vector.broadcast %309 : f32 to vector<16x16xf32>
    %311 = arith.mulf %9, %310 : vector<16x16xf32>
    %312 = arith.addf %308, %311 : vector<16x16xf32>
    %c0_148 = arith.constant 0 : index
    %313 = memref.load %arg8[%c0_148] : memref<4xf32, #tpu.memory_space<smem>>
    %314 = vector.broadcast %313 : f32 to vector<16x16xf32>
    %315 = arith.addf %312, %314 : vector<16x16xf32>
    %c1_149 = arith.constant 1 : index
    %c0_150 = arith.constant 0 : index
    %316 = memref.load %arg7[%c1_149, %c0_150] : memref<4x4xf32, #tpu.memory_space<smem>>
    %317 = vector.broadcast %316 : f32 to vector<16x16xf32>
    %318 = arith.mulf %3, %317 : vector<16x16xf32>
    %c1_151 = arith.constant 1 : index
    %c1_152 = arith.constant 1 : index
    %319 = memref.load %arg7[%c1_151, %c1_152] : memref<4x4xf32, #tpu.memory_space<smem>>
    %320 = vector.broadcast %319 : f32 to vector<16x16xf32>
    %321 = arith.mulf %5, %320 : vector<16x16xf32>
    %322 = arith.addf %318, %321 : vector<16x16xf32>
    %c1_153 = arith.constant 1 : index
    %c2_154 = arith.constant 2 : index
    %323 = memref.load %arg7[%c1_153, %c2_154] : memref<4x4xf32, #tpu.memory_space<smem>>
    %324 = vector.broadcast %323 : f32 to vector<16x16xf32>
    %325 = arith.mulf %7, %324 : vector<16x16xf32>
    %326 = arith.addf %322, %325 : vector<16x16xf32>
    %c1_155 = arith.constant 1 : index
    %c3_156 = arith.constant 3 : index
    %327 = memref.load %arg7[%c1_155, %c3_156] : memref<4x4xf32, #tpu.memory_space<smem>>
    %328 = vector.broadcast %327 : f32 to vector<16x16xf32>
    %329 = arith.mulf %9, %328 : vector<16x16xf32>
    %330 = arith.addf %326, %329 : vector<16x16xf32>
    %c1_157 = arith.constant 1 : index
    %331 = memref.load %arg8[%c1_157] : memref<4xf32, #tpu.memory_space<smem>>
    %332 = vector.broadcast %331 : f32 to vector<16x16xf32>
    %333 = arith.addf %330, %332 : vector<16x16xf32>
    %c2_158 = arith.constant 2 : index
    %c0_159 = arith.constant 0 : index
    %334 = memref.load %arg7[%c2_158, %c0_159] : memref<4x4xf32, #tpu.memory_space<smem>>
    %335 = vector.broadcast %334 : f32 to vector<16x16xf32>
    %336 = arith.mulf %3, %335 : vector<16x16xf32>
    %c2_160 = arith.constant 2 : index
    %c1_161 = arith.constant 1 : index
    %337 = memref.load %arg7[%c2_160, %c1_161] : memref<4x4xf32, #tpu.memory_space<smem>>
    %338 = vector.broadcast %337 : f32 to vector<16x16xf32>
    %339 = arith.mulf %5, %338 : vector<16x16xf32>
    %340 = arith.addf %336, %339 : vector<16x16xf32>
    %c2_162 = arith.constant 2 : index
    %c2_163 = arith.constant 2 : index
    %341 = memref.load %arg7[%c2_162, %c2_163] : memref<4x4xf32, #tpu.memory_space<smem>>
    %342 = vector.broadcast %341 : f32 to vector<16x16xf32>
    %343 = arith.mulf %7, %342 : vector<16x16xf32>
    %344 = arith.addf %340, %343 : vector<16x16xf32>
    %c2_164 = arith.constant 2 : index
    %c3_165 = arith.constant 3 : index
    %345 = memref.load %arg7[%c2_164, %c3_165] : memref<4x4xf32, #tpu.memory_space<smem>>
    %346 = vector.broadcast %345 : f32 to vector<16x16xf32>
    %347 = arith.mulf %9, %346 : vector<16x16xf32>
    %348 = arith.addf %344, %347 : vector<16x16xf32>
    %c2_166 = arith.constant 2 : index
    %349 = memref.load %arg8[%c2_166] : memref<4xf32, #tpu.memory_space<smem>>
    %350 = vector.broadcast %349 : f32 to vector<16x16xf32>
    %351 = arith.addf %348, %350 : vector<16x16xf32>
    %c3_167 = arith.constant 3 : index
    %c0_168 = arith.constant 0 : index
    %352 = memref.load %arg7[%c3_167, %c0_168] : memref<4x4xf32, #tpu.memory_space<smem>>
    %353 = vector.broadcast %352 : f32 to vector<16x16xf32>
    %354 = arith.mulf %3, %353 : vector<16x16xf32>
    %c3_169 = arith.constant 3 : index
    %c1_170 = arith.constant 1 : index
    %355 = memref.load %arg7[%c3_169, %c1_170] : memref<4x4xf32, #tpu.memory_space<smem>>
    %356 = vector.broadcast %355 : f32 to vector<16x16xf32>
    %357 = arith.mulf %5, %356 : vector<16x16xf32>
    %358 = arith.addf %354, %357 : vector<16x16xf32>
    %c3_171 = arith.constant 3 : index
    %c2_172 = arith.constant 2 : index
    %359 = memref.load %arg7[%c3_171, %c2_172] : memref<4x4xf32, #tpu.memory_space<smem>>
    %360 = vector.broadcast %359 : f32 to vector<16x16xf32>
    %361 = arith.mulf %7, %360 : vector<16x16xf32>
    %362 = arith.addf %358, %361 : vector<16x16xf32>
    %c3_173 = arith.constant 3 : index
    %c3_174 = arith.constant 3 : index
    %363 = memref.load %arg7[%c3_173, %c3_174] : memref<4x4xf32, #tpu.memory_space<smem>>
    %364 = vector.broadcast %363 : f32 to vector<16x16xf32>
    %365 = arith.mulf %9, %364 : vector<16x16xf32>
    %366 = arith.addf %362, %365 : vector<16x16xf32>
    %c3_175 = arith.constant 3 : index
    %367 = memref.load %arg8[%c3_175] : memref<4xf32, #tpu.memory_space<smem>>
    %368 = vector.broadcast %367 : f32 to vector<16x16xf32>
    %369 = arith.addf %366, %368 : vector<16x16xf32>
    %370 = vector.shape_cast %315 : vector<16x16xf32> to vector<1x16x16xf32>
    %371 = vector.shape_cast %333 : vector<16x16xf32> to vector<1x16x16xf32>
    %372 = vector.shape_cast %351 : vector<16x16xf32> to vector<1x16x16xf32>
    %373 = vector.shape_cast %369 : vector<16x16xf32> to vector<1x16x16xf32>
    %374 = tpu.concatenate %370, %371, %372, %373 in 0 : vector<1x16x16xf32>, vector<1x16x16xf32>, vector<1x16x16xf32>, vector<1x16x16xf32> -> vector<4x16x16xf32>
    %375 = vector.shape_cast %27 : vector<16x16xf32> to vector<16x1x16xf32>
    %376 = vector.shape_cast %171 : vector<16x16xf32> to vector<1x16x16xf32>
    %377 = vector.broadcast %375 : vector<16x1x16xf32> to vector<16x16x16xf32>
    %378 = vector.broadcast %376 : vector<1x16x16xf32> to vector<16x16x16xf32>
    %379 = arith.mulf %377, %378 : vector<16x16x16xf32>
    %380 = vector.shape_cast %45 : vector<16x16xf32> to vector<16x1x16xf32>
    %381 = vector.shape_cast %189 : vector<16x16xf32> to vector<1x16x16xf32>
    %382 = vector.broadcast %380 : vector<16x1x16xf32> to vector<16x16x16xf32>
    %383 = vector.broadcast %381 : vector<1x16x16xf32> to vector<16x16x16xf32>
    %384 = arith.mulf %382, %383 : vector<16x16x16xf32>
    %385 = arith.addf %379, %384 : vector<16x16x16xf32>
    %386 = vector.shape_cast %63 : vector<16x16xf32> to vector<16x1x16xf32>
    %387 = vector.shape_cast %207 : vector<16x16xf32> to vector<1x16x16xf32>
    %388 = vector.broadcast %386 : vector<16x1x16xf32> to vector<16x16x16xf32>
    %389 = vector.broadcast %387 : vector<1x16x16xf32> to vector<16x16x16xf32>
    %390 = arith.mulf %388, %389 : vector<16x16x16xf32>
    %391 = arith.addf %385, %390 : vector<16x16x16xf32>
    %392 = vector.shape_cast %81 : vector<16x16xf32> to vector<16x1x16xf32>
    %393 = vector.shape_cast %225 : vector<16x16xf32> to vector<1x16x16xf32>
    %394 = vector.broadcast %392 : vector<16x1x16xf32> to vector<16x16x16xf32>
    %395 = vector.broadcast %393 : vector<1x16x16xf32> to vector<16x16x16xf32>
    %396 = arith.mulf %394, %395 : vector<16x16x16xf32>
    %397 = arith.addf %391, %396 : vector<16x16x16xf32>
    %398 = vector.shape_cast %99 : vector<16x16xf32> to vector<16x1x16xf32>
    %399 = vector.shape_cast %243 : vector<16x16xf32> to vector<1x16x16xf32>
    %400 = vector.broadcast %398 : vector<16x1x16xf32> to vector<16x16x16xf32>
    %401 = vector.broadcast %399 : vector<1x16x16xf32> to vector<16x16x16xf32>
    %402 = arith.mulf %400, %401 : vector<16x16x16xf32>
    %403 = arith.addf %397, %402 : vector<16x16x16xf32>
    %404 = vector.shape_cast %117 : vector<16x16xf32> to vector<16x1x16xf32>
    %405 = vector.shape_cast %261 : vector<16x16xf32> to vector<1x16x16xf32>
    %406 = vector.broadcast %404 : vector<16x1x16xf32> to vector<16x16x16xf32>
    %407 = vector.broadcast %405 : vector<1x16x16xf32> to vector<16x16x16xf32>
    %408 = arith.mulf %406, %407 : vector<16x16x16xf32>
    %409 = arith.addf %403, %408 : vector<16x16x16xf32>
    %410 = vector.shape_cast %135 : vector<16x16xf32> to vector<16x1x16xf32>
    %411 = vector.shape_cast %279 : vector<16x16xf32> to vector<1x16x16xf32>
    %412 = vector.broadcast %410 : vector<16x1x16xf32> to vector<16x16x16xf32>
    %413 = vector.broadcast %411 : vector<1x16x16xf32> to vector<16x16x16xf32>
    %414 = arith.mulf %412, %413 : vector<16x16x16xf32>
    %415 = arith.addf %409, %414 : vector<16x16x16xf32>
    %416 = vector.shape_cast %153 : vector<16x16xf32> to vector<16x1x16xf32>
    %417 = vector.shape_cast %297 : vector<16x16xf32> to vector<1x16x16xf32>
    %418 = vector.broadcast %416 : vector<16x1x16xf32> to vector<16x16x16xf32>
    %419 = vector.broadcast %417 : vector<1x16x16xf32> to vector<16x16x16xf32>
    %420 = arith.mulf %418, %419 : vector<16x16x16xf32>
    %421 = arith.addf %415, %420 : vector<16x16x16xf32>
    %cst = arith.constant dense<0xFF800000> : vector<16x16xf32>
    %422 = vector.multi_reduction <maximumf>, %421, %cst [1] : vector<16x16x16xf32> to vector<16x16xf32>
    %423 = vector.shape_cast %422 : vector<16x16xf32> to vector<16x1x16xf32>
    %424 = vector.broadcast %423 : vector<16x1x16xf32> to vector<16x16x16xf32>
    %425 = arith.subf %421, %424 : vector<16x16x16xf32>
    %426 = math.exp %425 : vector<16x16x16xf32>
    %cst_176 = arith.constant dense<0.000000e+00> : vector<16x16xf32>
    %427 = vector.multi_reduction <add>, %426, %cst_176 [1] : vector<16x16x16xf32> to vector<16x16xf32>
    %428 = vector.extract_strided_slice %374 {offsets = [0, 0, 0], sizes = [4, 1, 16], strides = [1, 1, 1]} : vector<4x16x16xf32> to vector<4x1x16xf32>
    %429 = vector.shape_cast %428 : vector<4x1x16xf32> to vector<4x16xf32>
    %430 = vector.shape_cast %429 : vector<4x16xf32> to vector<4x1x16xf32>
    %431 = vector.extract_strided_slice %426 {offsets = [0, 0, 0], sizes = [16, 1, 16], strides = [1, 1, 1]} : vector<16x16x16xf32> to vector<16x1x16xf32>
    %432 = vector.shape_cast %431 : vector<16x1x16xf32> to vector<16x16xf32>
    %433 = vector.shape_cast %432 : vector<16x16xf32> to vector<1x16x16xf32>
    %434 = vector.broadcast %430 : vector<4x1x16xf32> to vector<4x16x16xf32>
    %435 = vector.broadcast %433 : vector<1x16x16xf32> to vector<4x16x16xf32>
    %436 = arith.mulf %434, %435 : vector<4x16x16xf32>
    %437 = vector.extract_strided_slice %374 {offsets = [0, 1, 0], sizes = [4, 1, 16], strides = [1, 1, 1]} : vector<4x16x16xf32> to vector<4x1x16xf32>
    %438 = vector.shape_cast %437 : vector<4x1x16xf32> to vector<4x16xf32>
    %439 = vector.shape_cast %438 : vector<4x16xf32> to vector<4x1x16xf32>
    %440 = vector.extract_strided_slice %426 {offsets = [0, 1, 0], sizes = [16, 1, 16], strides = [1, 1, 1]} : vector<16x16x16xf32> to vector<16x1x16xf32>
    %441 = vector.shape_cast %440 : vector<16x1x16xf32> to vector<16x16xf32>
    %442 = vector.shape_cast %441 : vector<16x16xf32> to vector<1x16x16xf32>
    %443 = vector.broadcast %439 : vector<4x1x16xf32> to vector<4x16x16xf32>
    %444 = vector.broadcast %442 : vector<1x16x16xf32> to vector<4x16x16xf32>
    %445 = arith.mulf %443, %444 : vector<4x16x16xf32>
    %446 = arith.addf %436, %445 : vector<4x16x16xf32>
    %447 = vector.extract_strided_slice %374 {offsets = [0, 2, 0], sizes = [4, 1, 16], strides = [1, 1, 1]} : vector<4x16x16xf32> to vector<4x1x16xf32>
    %448 = vector.shape_cast %447 : vector<4x1x16xf32> to vector<4x16xf32>
    %449 = vector.shape_cast %448 : vector<4x16xf32> to vector<4x1x16xf32>
    %450 = vector.extract_strided_slice %426 {offsets = [0, 2, 0], sizes = [16, 1, 16], strides = [1, 1, 1]} : vector<16x16x16xf32> to vector<16x1x16xf32>
    %451 = vector.shape_cast %450 : vector<16x1x16xf32> to vector<16x16xf32>
    %452 = vector.shape_cast %451 : vector<16x16xf32> to vector<1x16x16xf32>
    %453 = vector.broadcast %449 : vector<4x1x16xf32> to vector<4x16x16xf32>
    %454 = vector.broadcast %452 : vector<1x16x16xf32> to vector<4x16x16xf32>
    %455 = arith.mulf %453, %454 : vector<4x16x16xf32>
    %456 = arith.addf %446, %455 : vector<4x16x16xf32>
    %457 = vector.extract_strided_slice %374 {offsets = [0, 3, 0], sizes = [4, 1, 16], strides = [1, 1, 1]} : vector<4x16x16xf32> to vector<4x1x16xf32>
    %458 = vector.shape_cast %457 : vector<4x1x16xf32> to vector<4x16xf32>
    %459 = vector.shape_cast %458 : vector<4x16xf32> to vector<4x1x16xf32>
    %460 = vector.extract_strided_slice %426 {offsets = [0, 3, 0], sizes = [16, 1, 16], strides = [1, 1, 1]} : vector<16x16x16xf32> to vector<16x1x16xf32>
    %461 = vector.shape_cast %460 : vector<16x1x16xf32> to vector<16x16xf32>
    %462 = vector.shape_cast %461 : vector<16x16xf32> to vector<1x16x16xf32>
    %463 = vector.broadcast %459 : vector<4x1x16xf32> to vector<4x16x16xf32>
    %464 = vector.broadcast %462 : vector<1x16x16xf32> to vector<4x16x16xf32>
    %465 = arith.mulf %463, %464 : vector<4x16x16xf32>
    %466 = arith.addf %456, %465 : vector<4x16x16xf32>
    %467 = vector.extract_strided_slice %374 {offsets = [0, 4, 0], sizes = [4, 1, 16], strides = [1, 1, 1]} : vector<4x16x16xf32> to vector<4x1x16xf32>
    %468 = vector.shape_cast %467 : vector<4x1x16xf32> to vector<4x16xf32>
    %469 = vector.shape_cast %468 : vector<4x16xf32> to vector<4x1x16xf32>
    %470 = vector.extract_strided_slice %426 {offsets = [0, 4, 0], sizes = [16, 1, 16], strides = [1, 1, 1]} : vector<16x16x16xf32> to vector<16x1x16xf32>
    %471 = vector.shape_cast %470 : vector<16x1x16xf32> to vector<16x16xf32>
    %472 = vector.shape_cast %471 : vector<16x16xf32> to vector<1x16x16xf32>
    %473 = vector.broadcast %469 : vector<4x1x16xf32> to vector<4x16x16xf32>
    %474 = vector.broadcast %472 : vector<1x16x16xf32> to vector<4x16x16xf32>
    %475 = arith.mulf %473, %474 : vector<4x16x16xf32>
    %476 = arith.addf %466, %475 : vector<4x16x16xf32>
    %477 = vector.extract_strided_slice %374 {offsets = [0, 5, 0], sizes = [4, 1, 16], strides = [1, 1, 1]} : vector<4x16x16xf32> to vector<4x1x16xf32>
    %478 = vector.shape_cast %477 : vector<4x1x16xf32> to vector<4x16xf32>
    %479 = vector.shape_cast %478 : vector<4x16xf32> to vector<4x1x16xf32>
    %480 = vector.extract_strided_slice %426 {offsets = [0, 5, 0], sizes = [16, 1, 16], strides = [1, 1, 1]} : vector<16x16x16xf32> to vector<16x1x16xf32>
    %481 = vector.shape_cast %480 : vector<16x1x16xf32> to vector<16x16xf32>
    %482 = vector.shape_cast %481 : vector<16x16xf32> to vector<1x16x16xf32>
    %483 = vector.broadcast %479 : vector<4x1x16xf32> to vector<4x16x16xf32>
    %484 = vector.broadcast %482 : vector<1x16x16xf32> to vector<4x16x16xf32>
    %485 = arith.mulf %483, %484 : vector<4x16x16xf32>
    %486 = arith.addf %476, %485 : vector<4x16x16xf32>
    %487 = vector.extract_strided_slice %374 {offsets = [0, 6, 0], sizes = [4, 1, 16], strides = [1, 1, 1]} : vector<4x16x16xf32> to vector<4x1x16xf32>
    %488 = vector.shape_cast %487 : vector<4x1x16xf32> to vector<4x16xf32>
    %489 = vector.shape_cast %488 : vector<4x16xf32> to vector<4x1x16xf32>
    %490 = vector.extract_strided_slice %426 {offsets = [0, 6, 0], sizes = [16, 1, 16], strides = [1, 1, 1]} : vector<16x16x16xf32> to vector<16x1x16xf32>
    %491 = vector.shape_cast %490 : vector<16x1x16xf32> to vector<16x16xf32>
    %492 = vector.shape_cast %491 : vector<16x16xf32> to vector<1x16x16xf32>
    %493 = vector.broadcast %489 : vector<4x1x16xf32> to vector<4x16x16xf32>
    %494 = vector.broadcast %492 : vector<1x16x16xf32> to vector<4x16x16xf32>
    %495 = arith.mulf %493, %494 : vector<4x16x16xf32>
    %496 = arith.addf %486, %495 : vector<4x16x16xf32>
    %497 = vector.extract_strided_slice %374 {offsets = [0, 7, 0], sizes = [4, 1, 16], strides = [1, 1, 1]} : vector<4x16x16xf32> to vector<4x1x16xf32>
    %498 = vector.shape_cast %497 : vector<4x1x16xf32> to vector<4x16xf32>
    %499 = vector.shape_cast %498 : vector<4x16xf32> to vector<4x1x16xf32>
    %500 = vector.extract_strided_slice %426 {offsets = [0, 7, 0], sizes = [16, 1, 16], strides = [1, 1, 1]} : vector<16x16x16xf32> to vector<16x1x16xf32>
    %501 = vector.shape_cast %500 : vector<16x1x16xf32> to vector<16x16xf32>
    %502 = vector.shape_cast %501 : vector<16x16xf32> to vector<1x16x16xf32>
    %503 = vector.broadcast %499 : vector<4x1x16xf32> to vector<4x16x16xf32>
    %504 = vector.broadcast %502 : vector<1x16x16xf32> to vector<4x16x16xf32>
    %505 = arith.mulf %503, %504 : vector<4x16x16xf32>
    %506 = arith.addf %496, %505 : vector<4x16x16xf32>
    %507 = vector.extract_strided_slice %374 {offsets = [0, 8, 0], sizes = [4, 1, 16], strides = [1, 1, 1]} : vector<4x16x16xf32> to vector<4x1x16xf32>
    %508 = vector.shape_cast %507 : vector<4x1x16xf32> to vector<4x16xf32>
    %509 = vector.shape_cast %508 : vector<4x16xf32> to vector<4x1x16xf32>
    %510 = vector.extract_strided_slice %426 {offsets = [0, 8, 0], sizes = [16, 1, 16], strides = [1, 1, 1]} : vector<16x16x16xf32> to vector<16x1x16xf32>
    %511 = vector.shape_cast %510 : vector<16x1x16xf32> to vector<16x16xf32>
    %512 = vector.shape_cast %511 : vector<16x16xf32> to vector<1x16x16xf32>
    %513 = vector.broadcast %509 : vector<4x1x16xf32> to vector<4x16x16xf32>
    %514 = vector.broadcast %512 : vector<1x16x16xf32> to vector<4x16x16xf32>
    %515 = arith.mulf %513, %514 : vector<4x16x16xf32>
    %516 = arith.addf %506, %515 : vector<4x16x16xf32>
    %517 = vector.extract_strided_slice %374 {offsets = [0, 9, 0], sizes = [4, 1, 16], strides = [1, 1, 1]} : vector<4x16x16xf32> to vector<4x1x16xf32>
    %518 = vector.shape_cast %517 : vector<4x1x16xf32> to vector<4x16xf32>
    %519 = vector.shape_cast %518 : vector<4x16xf32> to vector<4x1x16xf32>
    %520 = vector.extract_strided_slice %426 {offsets = [0, 9, 0], sizes = [16, 1, 16], strides = [1, 1, 1]} : vector<16x16x16xf32> to vector<16x1x16xf32>
    %521 = vector.shape_cast %520 : vector<16x1x16xf32> to vector<16x16xf32>
    %522 = vector.shape_cast %521 : vector<16x16xf32> to vector<1x16x16xf32>
    %523 = vector.broadcast %519 : vector<4x1x16xf32> to vector<4x16x16xf32>
    %524 = vector.broadcast %522 : vector<1x16x16xf32> to vector<4x16x16xf32>
    %525 = arith.mulf %523, %524 : vector<4x16x16xf32>
    %526 = arith.addf %516, %525 : vector<4x16x16xf32>
    %527 = vector.extract_strided_slice %374 {offsets = [0, 10, 0], sizes = [4, 1, 16], strides = [1, 1, 1]} : vector<4x16x16xf32> to vector<4x1x16xf32>
    %528 = vector.shape_cast %527 : vector<4x1x16xf32> to vector<4x16xf32>
    %529 = vector.shape_cast %528 : vector<4x16xf32> to vector<4x1x16xf32>
    %530 = vector.extract_strided_slice %426 {offsets = [0, 10, 0], sizes = [16, 1, 16], strides = [1, 1, 1]} : vector<16x16x16xf32> to vector<16x1x16xf32>
    %531 = vector.shape_cast %530 : vector<16x1x16xf32> to vector<16x16xf32>
    %532 = vector.shape_cast %531 : vector<16x16xf32> to vector<1x16x16xf32>
    %533 = vector.broadcast %529 : vector<4x1x16xf32> to vector<4x16x16xf32>
    %534 = vector.broadcast %532 : vector<1x16x16xf32> to vector<4x16x16xf32>
    %535 = arith.mulf %533, %534 : vector<4x16x16xf32>
    %536 = arith.addf %526, %535 : vector<4x16x16xf32>
    %537 = vector.extract_strided_slice %374 {offsets = [0, 11, 0], sizes = [4, 1, 16], strides = [1, 1, 1]} : vector<4x16x16xf32> to vector<4x1x16xf32>
    %538 = vector.shape_cast %537 : vector<4x1x16xf32> to vector<4x16xf32>
    %539 = vector.shape_cast %538 : vector<4x16xf32> to vector<4x1x16xf32>
    %540 = vector.extract_strided_slice %426 {offsets = [0, 11, 0], sizes = [16, 1, 16], strides = [1, 1, 1]} : vector<16x16x16xf32> to vector<16x1x16xf32>
    %541 = vector.shape_cast %540 : vector<16x1x16xf32> to vector<16x16xf32>
    %542 = vector.shape_cast %541 : vector<16x16xf32> to vector<1x16x16xf32>
    %543 = vector.broadcast %539 : vector<4x1x16xf32> to vector<4x16x16xf32>
    %544 = vector.broadcast %542 : vector<1x16x16xf32> to vector<4x16x16xf32>
    %545 = arith.mulf %543, %544 : vector<4x16x16xf32>
    %546 = arith.addf %536, %545 : vector<4x16x16xf32>
    %547 = vector.extract_strided_slice %374 {offsets = [0, 12, 0], sizes = [4, 1, 16], strides = [1, 1, 1]} : vector<4x16x16xf32> to vector<4x1x16xf32>
    %548 = vector.shape_cast %547 : vector<4x1x16xf32> to vector<4x16xf32>
    %549 = vector.shape_cast %548 : vector<4x16xf32> to vector<4x1x16xf32>
    %550 = vector.extract_strided_slice %426 {offsets = [0, 12, 0], sizes = [16, 1, 16], strides = [1, 1, 1]} : vector<16x16x16xf32> to vector<16x1x16xf32>
    %551 = vector.shape_cast %550 : vector<16x1x16xf32> to vector<16x16xf32>
    %552 = vector.shape_cast %551 : vector<16x16xf32> to vector<1x16x16xf32>
    %553 = vector.broadcast %549 : vector<4x1x16xf32> to vector<4x16x16xf32>
    %554 = vector.broadcast %552 : vector<1x16x16xf32> to vector<4x16x16xf32>
    %555 = arith.mulf %553, %554 : vector<4x16x16xf32>
    %556 = arith.addf %546, %555 : vector<4x16x16xf32>
    %557 = vector.extract_strided_slice %374 {offsets = [0, 13, 0], sizes = [4, 1, 16], strides = [1, 1, 1]} : vector<4x16x16xf32> to vector<4x1x16xf32>
    %558 = vector.shape_cast %557 : vector<4x1x16xf32> to vector<4x16xf32>
    %559 = vector.shape_cast %558 : vector<4x16xf32> to vector<4x1x16xf32>
    %560 = vector.extract_strided_slice %426 {offsets = [0, 13, 0], sizes = [16, 1, 16], strides = [1, 1, 1]} : vector<16x16x16xf32> to vector<16x1x16xf32>
    %561 = vector.shape_cast %560 : vector<16x1x16xf32> to vector<16x16xf32>
    %562 = vector.shape_cast %561 : vector<16x16xf32> to vector<1x16x16xf32>
    %563 = vector.broadcast %559 : vector<4x1x16xf32> to vector<4x16x16xf32>
    %564 = vector.broadcast %562 : vector<1x16x16xf32> to vector<4x16x16xf32>
    %565 = arith.mulf %563, %564 : vector<4x16x16xf32>
    %566 = arith.addf %556, %565 : vector<4x16x16xf32>
    %567 = vector.extract_strided_slice %374 {offsets = [0, 14, 0], sizes = [4, 1, 16], strides = [1, 1, 1]} : vector<4x16x16xf32> to vector<4x1x16xf32>
    %568 = vector.shape_cast %567 : vector<4x1x16xf32> to vector<4x16xf32>
    %569 = vector.shape_cast %568 : vector<4x16xf32> to vector<4x1x16xf32>
    %570 = vector.extract_strided_slice %426 {offsets = [0, 14, 0], sizes = [16, 1, 16], strides = [1, 1, 1]} : vector<16x16x16xf32> to vector<16x1x16xf32>
    %571 = vector.shape_cast %570 : vector<16x1x16xf32> to vector<16x16xf32>
    %572 = vector.shape_cast %571 : vector<16x16xf32> to vector<1x16x16xf32>
    %573 = vector.broadcast %569 : vector<4x1x16xf32> to vector<4x16x16xf32>
    %574 = vector.broadcast %572 : vector<1x16x16xf32> to vector<4x16x16xf32>
    %575 = arith.mulf %573, %574 : vector<4x16x16xf32>
    %576 = arith.addf %566, %575 : vector<4x16x16xf32>
    %577 = vector.extract_strided_slice %374 {offsets = [0, 15, 0], sizes = [4, 1, 16], strides = [1, 1, 1]} : vector<4x16x16xf32> to vector<4x1x16xf32>
    %578 = vector.shape_cast %577 : vector<4x1x16xf32> to vector<4x16xf32>
    %579 = vector.shape_cast %578 : vector<4x16xf32> to vector<4x1x16xf32>
    %580 = vector.extract_strided_slice %426 {offsets = [0, 15, 0], sizes = [16, 1, 16], strides = [1, 1, 1]} : vector<16x16x16xf32> to vector<16x1x16xf32>
    %581 = vector.shape_cast %580 : vector<16x1x16xf32> to vector<16x16xf32>
    %582 = vector.shape_cast %581 : vector<16x16xf32> to vector<1x16x16xf32>
    %583 = vector.broadcast %579 : vector<4x1x16xf32> to vector<4x16x16xf32>
    %584 = vector.broadcast %582 : vector<1x16x16xf32> to vector<4x16x16xf32>
    %585 = arith.mulf %583, %584 : vector<4x16x16xf32>
    %586 = arith.addf %576, %585 : vector<4x16x16xf32>
    %cst_177 = arith.constant 1.000000e+00 : f32
    %587 = vector.broadcast %cst_177 : f32 to vector<16x16xf32>
    %588 = arith.divf %587, %427 : vector<16x16xf32>
    %589 = vector.shape_cast %588 : vector<16x16xf32> to vector<1x16x16xf32>
    %590 = vector.broadcast %589 : vector<1x16x16xf32> to vector<4x16x16xf32>
    %591 = arith.mulf %586, %590 : vector<4x16x16xf32>
    %c0_178 = arith.constant 0 : index
    %592 = memref.load %arg9[%c0_178] : memref<1xf32, #tpu.memory_space<smem>>
    %593 = vector.broadcast %592 : f32 to vector<4x16x16xf32>
    %594 = arith.mulf %593, %591 : vector<4x16x16xf32>
    %595 = arith.addf %594, %1 : vector<4x16x16xf32>
    %c0_179 = arith.constant 0 : index
    %c0_180 = arith.constant 0 : index
    %c0_181 = arith.constant 0 : index
    %c0_182 = arith.constant 0 : index
    %596 = vector.load %arg10[%c0_179, %c0_180, %c0_181, %c0_182] : memref<1x4x16x16xf32, #tpu.memory_space<vmem>>, vector<1x4x16x16xf32>
    %597 = vector.shape_cast %596 : vector<1x4x16x16xf32> to vector<4x16x16xf32>
    %598 = vector.shape_cast %595 : vector<4x16x16xf32> to vector<1x4x16x16xf32>
    tpu.vector_store %arg10[%c0_179, %c0_180, %c0_181, %c0_182], %598 {strides = array<i32>} : memref<1x4x16x16xf32, #tpu.memory_space<vmem>>, vector<1x4x16x16xf32>,
    return
  }
  func.func @transform_0(%arg0: i32, %arg1: i32) -> (i32, i32, i32, i32) {
    %c0_i32 = arith.constant 0 : i32
    %c0_i32_0 = arith.constant 0 : i32
    %c0_i32_1 = arith.constant 0 : i32
    return %arg0, %c0_i32, %c0_i32_0, %arg1 : i32, i32, i32, i32
  }
  func.func @transform_1(%arg0: i32, %arg1: i32) -> (i32, i32) {
    %c0_i32 = arith.constant 0 : i32
    %c0_i32_0 = arith.constant 0 : i32
    %c0_i32_1 = arith.constant 0 : i32
    return %c0_i32, %c0_i32_0 : i32, i32
  }
  func.func @transform_2(%arg0: i32, %arg1: i32) -> i32 {
    %c0_i32 = arith.constant 0 : i32
    %c0_i32_0 = arith.constant 0 : i32
    return %c0_i32 : i32
  }
  func.func @transform_3(%arg0: i32, %arg1: i32) -> (i32, i32) {
    %c0_i32 = arith.constant 0 : i32
    %c0_i32_0 = arith.constant 0 : i32
    %c0_i32_1 = arith.constant 0 : i32
    return %c0_i32, %c0_i32_0 : i32, i32
  }
  func.func @transform_4(%arg0: i32, %arg1: i32) -> i32 {
    %c0_i32 = arith.constant 0 : i32
    %c0_i32_0 = arith.constant 0 : i32
    return %c0_i32 : i32
  }
  func.func @transform_5(%arg0: i32, %arg1: i32) -> (i32, i32) {
    %c0_i32 = arith.constant 0 : i32
    %c0_i32_0 = arith.constant 0 : i32
    %c0_i32_1 = arith.constant 0 : i32
    return %c0_i32, %c0_i32_0 : i32, i32
  }
  func.func @transform_6(%arg0: i32, %arg1: i32) -> i32 {
    %c0_i32 = arith.constant 0 : i32
    %c0_i32_0 = arith.constant 0 : i32
    return %c0_i32 : i32
  }
  func.func @transform_7(%arg0: i32, %arg1: i32) -> i32 {
    %c0_i32 = arith.constant 0 : i32
    %c0_i32_0 = arith.constant 0 : i32
    return %c0_i32 : i32
  }
  func.func @transform_8(%arg0: i32, %arg1: i32) -> (i32, i32, i32, i32) {
    %c0_i32 = arith.constant 0 : i32
    %c0_i32_0 = arith.constant 0 : i32
    %c0_i32_1 = arith.constant 0 : i32
    return %arg0, %c0_i32, %c0_i32_0, %arg1 : i32, i32, i32, i32
  }
}

</mosaic_0001>

<llo_original>
// kernel: tpu_custom_call.1
$region0: #{tpu_custom_call.1}
  #allocation0 [shape = 'u32[]', space=smem, size = 0x4, offset = 0x4, fixed_abs, tag = 'smem constant byte address 0x4 - core index']
  #allocation1 [shape = 'u32[144,128]{1,0:T(1,128)}', space=vmem, size = 0x12000, scoped, tag = 'internal scratch']
  #allocation2 [shape = 'f32[1]{0:T(128)S(6)}', space=smem, size = 0x200, scoped, tag = 'scoped memory for tpu_custom_call.1']
  %s0 = inlined_call_operand.hbm [shape: f32[2,4,16,16], index: 0, kind: input, shape index: {}]
  %s1 = inlined_call_operand.vmem [shape: f32[8,4], index: 1, kind: input, shape index: {}]
  %s2 = inlined_call_operand.vmem [shape: f32[8], index: 2, kind: input, shape index: {}]
  %s3 = inlined_call_operand.vmem [shape: f32[8,4], index: 3, kind: input, shape index: {}]
  %s4 = inlined_call_operand.vmem [shape: f32[8], index: 4, kind: input, shape index: {}]
  %s5 = inlined_call_operand.vmem [shape: f32[4,4], index: 5, kind: input, shape index: {}]
  %s6 = inlined_call_operand.vmem [shape: f32[4], index: 6, kind: input, shape index: {}]
  %s7 = inlined_call_operand.<no memory space> [shape: f32[1], index: 7, kind: input, shape index: {}]
  %s8 = inlined_call_operand.hbm [shape: f32[2,4,16,16], index: 8, kind: output, shape index: {}]
  %s9 = sld [smem:[#allocation0]]
  $region93: #{tpu_custom_call.1} parent=0
    _
  %s11 = ssub.s32 1, %s9
  %s12 = scalar_select 0, %s11, %s9
  %13 = sst [smem:[#allocation2]] %s7
  $region1: #{tpu_custom_call.1} parent=0
    #allocation3 [shape = 'u8[65536]{0}', space=vmem, size = 0x10000, scoped, tag = 'input window, operand 0']
    #allocation4 [shape = 's32[2]{0}', space=sflag, size = 0x8, scoped, tag = 'scoped memory for tpu_custom_call.1']
    #allocation5 [shape = 's32[2]{0}', space=sflag, size = 0x8, scoped, tag = 'scoped memory for tpu_custom_call.1']
    #allocation6 [shape = 's32[2]{0}', space=sflag, size = 0x8, scoped, tag = 'scoped memory for tpu_custom_call.1']
    #allocation7 [shape = 'u8[4096]{0}', space=smem, size = 0x1000, scoped, tag = 'input window, operand 1, single buffered']
    #allocation8 [shape = 'u8[512]{0}', space=smem, size = 0x200, scoped, tag = 'input window, operand 2, single buffered']
    #allocation9 [shape = 's32[1]{0}', space=sflag, size = 0x4, scoped, tag = 'scoped memory for tpu_custom_call.1']
    #allocation10 [shape = 'u8[4096]{0}', space=smem, size = 0x1000, scoped, tag = 'input window, operand 3, single buffered']
    #allocation11 [shape = 'u8[512]{0}', space=smem, size = 0x200, scoped, tag = 'input window, operand 4, single buffered']
    #allocation12 [shape = 's32[1]{0}', space=sflag, size = 0x4, scoped, tag = 'scoped memory for tpu_custom_call.1']
    #allocation13 [shape = 'u8[2048]{0}', space=smem, size = 0x800, scoped, tag = 'input window, operand 5, single buffered']
    #allocation14 [shape = 'u8[512]{0}', space=smem, size = 0x200, scoped, tag = 'input window, operand 6, single buffered']
    #allocation15 [shape = 's32[1]{0}', space=sflag, size = 0x4, scoped, tag = 'scoped memory for tpu_custom_call.1']
    #allocation16 [shape = 'u8[65536]{0}', space=vmem, size = 0x10000, scoped, tag = 'output window, operand 0']
    %14 = vsyncpa [#allocation4], 0
    %s15 = scalar_lea.sflag [#allocation4], 1
    %16 = vsyncpa %s15, 0
    %17 = vsyncpa [#allocation6], 0
    %18 = vsyncpa [#allocation9], 0
    %19 = vsyncpa [#allocation12], 0
    %20 = vsyncpa [#allocation15], 0
    %21 = vsyncpa [#allocation5], 0
    %s22 = scalar_lea.sflag [#allocation5], 1
    %23 = vsyncpa %s22, 0
    loop: start=0, step=1, limit=4
    $region2: #{tpu_custom_call.1} parent=1 // loop_pre_header
      _
    $region3: #{tpu_custom_call.1} parent=1 // loop_header
      %s25 = sphi 0, %s29
      %p26 = scmp.ge.s32.totalorder %s25, 4
      %s32 = sphi 0, %s44
      %s33 = sphi 0, %s40
      %s34 = sphi 0, %s32
      %s35 = sphi 0, %s33
      %s36 = sphi 0, %s34
      %s37 = sphi 0, %s35
      %s49 = sphi 0, %s51
      %s52 = sphi 0, %s49
      %s53 = sphi 0, %s52
      %s69 = sphi 0, %s53
      %s73 = sphi 0, %s73
      %s75 = sphi 0, %s73
      %s76 = sphi 0, %s75
      %s90 = sphi 0, %s76
      %s94 = sphi 0, %s94
      %s96 = sphi 0, %s94
      %s97 = sphi 0, %s96
      %s111 = sphi 0, %s97
      %s115 = sphi 0, %s115
      %s117 = sphi 0, %s115
      %s118 = sphi 0, %s117
      %s132 = sphi 0, %s118
      %s136 = sphi 0, %s136
      %s138 = sphi 0, %s136
      %s139 = sphi 0, %s138
      %s153 = sphi 0, %s139
      %s157 = sphi 0, %s157
      %s159 = sphi 0, %s157
      %s160 = sphi 0, %s159
      %s174 = sphi 0, %s160
      %s178 = sphi 0, %s178
      %s180 = sphi 0, %s178
      %s181 = sphi 0, %s180
      %s195 = sphi 0, %s181
      %s199 = sphi 0, %s199
      %s201 = sphi 0, %s199
      %s202 = sphi 0, %s201
      %s216 = sphi 0, %s202
      %s224 = sphi 0, %s226
      %s227 = sphi 0, %s224
      %s228 = sphi 0, %s227
      %s244 = sphi 0, %s228
    $region4: #{tpu_custom_call.1} parent=1 // loop_header_branch
      %28 = sbr.rel (%p26) target = $region8
    $region5: #{tpu_custom_call.1} parent=1 // loop_body
      %s30 = ssub.s32 %s25, 1
      %s31 = ssub.s32 %s25, 2
      %s38 = sadd.s32 1, %s33
      %p39 = scmp.ge.s32.totalorder %s38, 1
      %s40 = scalar_select %p39, 0, %s38
      %s41 = sadd.s32 1, %s32
      %s42 = scalar_select %p39, %s41, %s32
      %p43 = scmp.ge.s32.totalorder %s42, 2
      %s44 = scalar_select %p43, 0, %s42
      %s45 = ssub.s32 %s32, %s44
      %s46 = ssub.s32 %s33, %s40
      %s47 = sor.u32 %s45, %s46
      %p48 = scmp.eq.s32.totalorder %s47, 0
      %s50 = sadd.s32 %s49, 1
      %s51 = scalar_select %p48, %s49, %s50
      %p54 = pneg %p48
      %p55 = scmp.eq.s32.totalorder %s25, 1
      %p56 = por %p54, %p55
      %p57 = scmp.ne.s32.totalorder %s49, %s52
      %p58 = scmp.eq.s32.totalorder %s25, 0
      %p59 = por %p57, %p58
      %p60 = scmp.ne.s32.totalorder %s49, %s52
      %p61 = scmp.eq.s32.totalorder %s30, 1
      %p62 = por %p60, %p61
      %p63 = scmp.ne.s32.totalorder %s52, %s53
      %p64 = scmp.eq.s32.totalorder %s30, 0
      %p65 = por %p63, %p64
      %p66 = scmp.ne.s32.totalorder %s52, %s53
      %p67 = scmp.eq.s32.totalorder %s31, 1
      %p68 = por %p66, %p67
      %p70 = scmp.ne.s32.totalorder %s53, %s69
      %p71 = scmp.eq.s32.totalorder %s31, 0
      %p72 = por %p70, %p71
      %s74 = sadd.s32 %s73, 1
      %p77 = scmp.eq.s32.totalorder %s25, 1
      %p78 = scmp.ne.s32.totalorder %s73, %s75
      %p79 = scmp.eq.s32.totalorder %s25, 0
      %p80 = por %p78, %p79
      %p81 = scmp.ne.s32.totalorder %s73, %s75
      %p82 = scmp.eq.s32.totalorder %s30, 1
      %p83 = por %p81, %p82
      %p84 = scmp.ne.s32.totalorder %s75, %s76
      %p85 = scmp.eq.s32.totalorder %s30, 0
      %p86 = por %p84, %p85
      %p87 = scmp.ne.s32.totalorder %s75, %s76
      %p88 = scmp.eq.s32.totalorder %s31, 1
      %p89 = por %p87, %p88
      %p91 = scmp.ne.s32.totalorder %s76, %s90
      %p92 = scmp.eq.s32.totalorder %s31, 0
      %p93 = por %p91, %p92
      %s95 = sadd.s32 %s94, 1
      %p98 = scmp.eq.s32.totalorder %s25, 1
      %p99 = scmp.ne.s32.totalorder %s94, %s96
      %p100 = scmp.eq.s32.totalorder %s25, 0
      %p101 = por %p99, %p100
      %p102 = scmp.ne.s32.totalorder %s94, %s96
      %p103 = scmp.eq.s32.totalorder %s30, 1
      %p104 = por %p102, %p103
      %p105 = scmp.ne.s32.totalorder %s96, %s97
      %p106 = scmp.eq.s32.totalorder %s30, 0
      %p107 = por %p105, %p106
      %p108 = scmp.ne.s32.totalorder %s96, %s97
      %p109 = scmp.eq.s32.totalorder %s31, 1
      %p110 = por %p108, %p109
      %p112 = scmp.ne.s32.totalorder %s97, %s111
      %p113 = scmp.eq.s32.totalorder %s31, 0
      %p114 = por %p112, %p113
      %s116 = sadd.s32 %s115, 1
      %p119 = scmp.eq.s32.totalorder %s25, 1
      %p120 = scmp.ne.s32.totalorder %s115, %s117
      %p121 = scmp.eq.s32.totalorder %s25, 0
      %p122 = por %p120, %p121
      %p123 = scmp.ne.s32.totalorder %s115, %s117
      %p124 = scmp.eq.s32.totalorder %s30, 1
      %p125 = por %p123, %p124
      %p126 = scmp.ne.s32.totalorder %s117, %s118
      %p127 = scmp.eq.s32.totalorder %s30, 0
      %p128 = por %p126, %p127
      %p129 = scmp.ne.s32.totalorder %s117, %s118
      %p130 = scmp.eq.s32.totalorder %s31, 1
      %p131 = por %p129, %p130
      %p133 = scmp.ne.s32.totalorder %s118, %s132
      %p134 = scmp.eq.s32.totalorder %s31, 0
      %p135 = por %p133, %p134
      %s137 = sadd.s32 %s136, 1
      %p140 = scmp.eq.s32.totalorder %s25, 1
      %p141 = scmp.ne.s32.totalorder %s136, %s138
      %p142 = scmp.eq.s32.totalorder %s25, 0
      %p143 = por %p141, %p142
      %p144 = scmp.ne.s32.totalorder %s136, %s138
      %p145 = scmp.eq.s32.totalorder %s30, 1
      %p146 = por %p144, %p145
      %p147 = scmp.ne.s32.totalorder %s138, %s139
      %p148 = scmp.eq.s32.totalorder %s30, 0
      %p149 = por %p147, %p148
      %p150 = scmp.ne.s32.totalorder %s138, %s139
      %p151 = scmp.eq.s32.totalorder %s31, 1
      %p152 = por %p150, %p151
      %p154 = scmp.ne.s32.totalorder %s139, %s153
      %p155 = scmp.eq.s32.totalorder %s31, 0
      %p156 = por %p154, %p155
      %s158 = sadd.s32 %s157, 1
      %p161 = scmp.eq.s32.totalorder %s25, 1
      %p162 = scmp.ne.s32.totalorder %s157, %s159
      %p163 = scmp.eq.s32.totalorder %s25, 0
      %p164 = por %p162, %p163
      %p165 = scmp.ne.s32.totalorder %s157, %s159
      %p166 = scmp.eq.s32.totalorder %s30, 1
      %p167 = por %p165, %p166
      %p168 = scmp.ne.s32.totalorder %s159, %s160
      %p169 = scmp.eq.s32.totalorder %s30, 0
      %p170 = por %p168, %p169
      %p171 = scmp.ne.s32.totalorder %s159, %s160
      %p172 = scmp.eq.s32.totalorder %s31, 1
      %p173 = por %p171, %p172
      %p175 = scmp.ne.s32.totalorder %s160, %s174
      %p176 = scmp.eq.s32.totalorder %s31, 0
      %p177 = por %p175, %p176
      %s179 = sadd.s32 %s178, 1
      %p182 = scmp.eq.s32.totalorder %s25, 1
      %p183 = scmp.ne.s32.totalorder %s178, %s180
      %p184 = scmp.eq.s32.totalorder %s25, 0
      %p185 = por %p183, %p184
      %p186 = scmp.ne.s32.totalorder %s178, %s180
      %p187 = scmp.eq.s32.totalorder %s30, 1
      %p188 = por %p186, %p187
      %p189 = scmp.ne.s32.totalorder %s180, %s181
      %p190 = scmp.eq.s32.totalorder %s30, 0
      %p191 = por %p189, %p190
      %p192 = scmp.ne.s32.totalorder %s180, %s181
      %p193 = scmp.eq.s32.totalorder %s31, 1
      %p194 = por %p192, %p193
      %p196 = scmp.ne.s32.totalorder %s181, %s195
      %p197 = scmp.eq.s32.totalorder %s31, 0
      %p198 = por %p196, %p197
      %s200 = sadd.s32 %s199, 1
      %p203 = scmp.eq.s32.totalorder %s25, 1
      %p204 = scmp.ne.s32.totalorder %s199, %s201
      %p205 = scmp.eq.s32.totalorder %s25, 0
      %p206 = por %p204, %p205
      %p207 = scmp.ne.s32.totalorder %s199, %s201
      %p208 = scmp.eq.s32.totalorder %s30, 1
      %p209 = por %p207, %p208
      %p210 = scmp.ne.s32.totalorder %s201, %s202
      %p211 = scmp.eq.s32.totalorder %s30, 0
      %p212 = por %p210, %p211
      %p213 = scmp.ne.s32.totalorder %s201, %s202
      %p214 = scmp.eq.s32.totalorder %s31, 1
      %p215 = por %p213, %p214
      %p217 = scmp.ne.s32.totalorder %s202, %s216
      %p218 = scmp.eq.s32.totalorder %s31, 0
      %p219 = por %p217, %p218
      %s220 = ssub.s32 %s32, %s44
      %s221 = ssub.s32 %s33, %s40
      %s222 = sor.u32 %s220, %s221
      %p223 = scmp.eq.s32.totalorder %s222, 0
      %s225 = sadd.s32 %s224, 1
      %s226 = scalar_select %p223, %s224, %s225
      %p229 = pneg %p223
      %p230 = scmp.eq.s32.totalorder %s25, 1
      %p231 = por %p229, %p230
      %p232 = scmp.ne.s32.totalorder %s224, %s227
      %p233 = scmp.eq.s32.totalorder %s25, 0
      %p234 = por %p232, %p233
      %p235 = scmp.ne.s32.totalorder %s224, %s227
      %p236 = scmp.eq.s32.totalorder %s30, 1
      %p237 = por %p235, %p236
      %p238 = scmp.ne.s32.totalorder %s227, %s228
      %p239 = scmp.eq.s32.totalorder %s30, 0
      %p240 = por %p238, %p239
      %p241 = scmp.ne.s32.totalorder %s227, %s228
      %p242 = scmp.eq.s32.totalorder %s31, 1
      %p243 = por %p241, %p242
      %p245 = scmp.ne.s32.totalorder %s228, %s244
      %p246 = scmp.eq.s32.totalorder %s31, 0
      %p247 = por %p245, %p246
      %p248 = scmp.le.s32.totalorder 1, %s25
      %p249 = scmp.lt.s32.totalorder %s25, 3
      %p250 = pnand %p248, %p249
      %p251 = pneg %p250
      // Predicated region
      $region9: #{tpu_custom_call.1} parent=5 // pred_check
        _
      $region10: #{tpu_custom_call.1} parent=5 // pred_check_branch
        %253 = sbr.rel (%p250) target = $region12
      $region11: #{tpu_custom_call.1} parent=5 // pred_region
        %s254 = ssub.s32 %s25, 1
        // Predicated region
        $region13: #{tpu_custom_call.1} parent=11 // pred_check
          %p255 = pneg %p86
        $region14: #{tpu_custom_call.1} parent=11 // pred_check_branch
          %257 = sbr.rel (%p255) target = $region16
        $region15: #{tpu_custom_call.1} parent=11 // pred_region
          %s259 = ssub.s32 128, 128
          %260 = vsyncadd [#allocation6], %s259
          %s262 = sshll.u32 %s1, 4
          %s263 = int_to_ptr.vmem [resolvable:$true] %s262
          %265 = dma.vmem_to_smem %s263, 128, [#allocation7], [#allocation6]
        $region16: #{tpu_custom_call.1} parent=11 // pred_fallthru
          _
        // Predicated region
        $region17: #{tpu_custom_call.1} parent=11 // pred_check
          %p266 = pneg %p107
        $region18: #{tpu_custom_call.1} parent=11 // pred_check_branch
          %268 = sbr.rel (%p266) target = $region20
        $region19: #{tpu_custom_call.1} parent=11 // pred_region
          %s270 = ssub.s32 16, 16
          %271 = vsyncadd [#allocation9], %s270
          %s273 = sshll.u32 %s2, 4
          %s274 = int_to_ptr.vmem [resolvable:$true] %s273
          %276 = dma.vmem_to_smem %s274, 16, [#allocation8], [#allocation9]
        $region20: #{tpu_custom_call.1} parent=11 // pred_fallthru
          _
        // Predicated region
        $region21: #{tpu_custom_call.1} parent=11 // pred_check
          %p277 = pneg %p128
        $region22: #{tpu_custom_call.1} parent=11 // pred_check_branch
          %279 = sbr.rel (%p277) target = $region24
        $region23: #{tpu_custom_call.1} parent=11 // pred_region
          %s281 = ssub.s32 128, 128
          %282 = vsyncadd [#allocation9], %s281
          %s284 = sshll.u32 %s3, 4
          %s285 = int_to_ptr.vmem [resolvable:$true] %s284
          %287 = dma.vmem_to_smem %s285, 128, [#allocation10], [#allocation9]
        $region24: #{tpu_custom_call.1} parent=11 // pred_fallthru
          _
        // Predicated region
        $region25: #{tpu_custom_call.1} parent=11 // pred_check
          %p288 = pneg %p149
        $region26: #{tpu_custom_call.1} parent=11 // pred_check_branch
          %290 = sbr.rel (%p288) target = $region28
        $region27: #{tpu_custom_call.1} parent=11 // pred_region
          %s292 = ssub.s32 16, 16
          %293 = vsyncadd [#allocation12], %s292
          %s295 = sshll.u32 %s4, 4
          %s296 = int_to_ptr.vmem [resolvable:$true] %s295
          %298 = dma.vmem_to_smem %s296, 16, [#allocation11], [#allocation12]
        $region28: #{tpu_custom_call.1} parent=11 // pred_fallthru
          _
        // Predicated region
        $region29: #{tpu_custom_call.1} parent=11 // pred_check
          %p299 = pneg %p170
        $region30: #{tpu_custom_call.1} parent=11 // pred_check_branch
          %301 = sbr.rel (%p299) target = $region32
        $region31: #{tpu_custom_call.1} parent=11 // pred_region
          %s303 = ssub.s32 64, 64
          %304 = vsyncadd [#allocation12], %s303
          %s306 = sshll.u32 %s5, 4
          %s307 = int_to_ptr.vmem [resolvable:$true] %s306
          %309 = dma.vmem_to_smem %s307, 64, [#allocation13], [#allocation12]
        $region32: #{tpu_custom_call.1} parent=11 // pred_fallthru
          _
        // Predicated region
        $region33: #{tpu_custom_call.1} parent=11 // pred_check
          %p310 = pneg %p191
        $region34: #{tpu_custom_call.1} parent=11 // pred_check_branch
          %312 = sbr.rel (%p310) target = $region36
        $region35: #{tpu_custom_call.1} parent=11 // pred_region
          %s314 = ssub.s32 16, 16
          %315 = vsyncadd [#allocation15], %s314
          %s317 = sshll.u32 %s6, 4
          %s318 = int_to_ptr.vmem [resolvable:$true] %s317
          %320 = dma.vmem_to_smem %s318, 16, [#allocation14], [#allocation15]
        $region36: #{tpu_custom_call.1} parent=11 // pred_fallthru
          _
        // Predicated region
        $region37: #{tpu_custom_call.1} parent=11 // pred_check
          %p321 = pneg %p212
        $region38: #{tpu_custom_call.1} parent=11 // pred_check_branch
          %323 = sbr.rel (%p321) target = $region40
        $region39: #{tpu_custom_call.1} parent=11 // pred_region
          _
        $region40: #{tpu_custom_call.1} parent=11 // pred_fallthru
          _
      $region12: #{tpu_custom_call.1} parent=5 // pred_fallthru
        _
      %p324 = scmp.lt.s32.totalorder %s25, 2
      // Predicated region
      $region41: #{tpu_custom_call.1} parent=5 // pred_check
        %p325 = pneg %p324
      $region42: #{tpu_custom_call.1} parent=5 // pred_check_branch
        %327 = sbr.rel (%p325) target = $region44
      $region43: #{tpu_custom_call.1} parent=5 // pred_region
        // Predicated region
        $region45: #{tpu_custom_call.1} parent=43 // pred_check
          %p328 = pneg %p59
        $region46: #{tpu_custom_call.1} parent=43 // pred_check_branch
          %330 = sbr.rel (%p328) target = $region48
        $region47: #{tpu_custom_call.1} parent=43 // pred_region
          %s331 = sand.u32 %s49, 1
          %s332 = scalar_lea.sflag [#allocation4], %s331
          %s333 = sand.u32 %s49, 1
          %s334 = smul.addr %s333, 64
          %s335 = scalar_lea.vmem [#allocation3], %s334
          %s337 = ssub.s32 1024, 1024
          %338 = vsyncadd %s332, %s337
          %s339 = smul.addr %s32, 8
          %s340 = sadd.s32 %s33, %s339
          %s341 = smul.addr %s340, 128
          %s342 = scalar_lea.hbm %s0, %s341
          %s343 = sshll.u32 %s335, 4
          %s344 = int_to_ptr.vmem [resolvable:$true] %s343
          %349 = dma.hbm_to_vmem [thread:$0]  %s342, 1024, %s344, %s332, 128, 128, 8
        $region48: #{tpu_custom_call.1} parent=43 // pred_fallthru
          _
      $region44: #{tpu_custom_call.1} parent=5 // pred_fallthru
        _
      %p350 = scmp.le.s32.totalorder 1, %s25
      %p351 = scmp.lt.s32.totalorder %s25, 3
      %p352 = pnand %p350, %p351
      %p353 = pneg %p352
      // Predicated region
      $region49: #{tpu_custom_call.1} parent=5 // pred_check
        _
      $region50: #{tpu_custom_call.1} parent=5 // pred_check_branch
        %355 = sbr.rel (%p352) target = $region52
      $region51: #{tpu_custom_call.1} parent=5 // pred_region
        %s356 = ssub.s32 %s25, 1
        %s357 = sand.u32 %s52, 1
        %s358 = scalar_lea.sflag [#allocation4], %s357
        %s359 = sand.u32 %s52, 1
        %s360 = smul.addr %s359, 64
        %s361 = scalar_lea.vmem [#allocation3], %s360
        // Predicated region
        $region53: #{tpu_custom_call.1} parent=51 // pred_check
          %p362 = pneg %p65
        $region54: #{tpu_custom_call.1} parent=51 // pred_check_branch
          %364 = sbr.rel (%p362) target = $region56
        $region55: #{tpu_custom_call.1} parent=51 // pred_region
          %365 = dma.done %s358, 1024
        $region56: #{tpu_custom_call.1} parent=51 // pred_fallthru
          _
        // Predicated region
        $region57: #{tpu_custom_call.1} parent=51 // pred_check
          %p366 = pneg %p86
        $region58: #{tpu_custom_call.1} parent=51 // pred_check_branch
          %368 = sbr.rel (%p366) target = $region60
        $region59: #{tpu_custom_call.1} parent=51 // pred_region
          %369 = dma.done [#allocation6], 128
        $region60: #{tpu_custom_call.1} parent=51 // pred_fallthru
          _
        // Predicated region
        $region61: #{tpu_custom_call.1} parent=51 // pred_check
          %p370 = pneg %p107
        $region62: #{tpu_custom_call.1} parent=51 // pred_check_branch
          %372 = sbr.rel (%p370) target = $region64
        $region63: #{tpu_custom_call.1} parent=51 // pred_region
          %373 = dma.done [#allocation9], 16
        $region64: #{tpu_custom_call.1} parent=51 // pred_fallthru
          _
        // Predicated region
        $region65: #{tpu_custom_call.1} parent=51 // pred_check
          %p374 = pneg %p128
        $region66: #{tpu_custom_call.1} parent=51 // pred_check_branch
          %376 = sbr.rel (%p374) target = $region68
        $region67: #{tpu_custom_call.1} parent=51 // pred_region
          %377 = dma.done [#allocation9], 128
        $region68: #{tpu_custom_call.1} parent=51 // pred_fallthru
          _
        // Predicated region
        $region69: #{tpu_custom_call.1} parent=51 // pred_check
          %p378 = pneg %p149
        $region70: #{tpu_custom_call.1} parent=51 // pred_check_branch
          %380 = sbr.rel (%p378) target = $region72
        $region71: #{tpu_custom_call.1} parent=51 // pred_region
          %381 = dma.done [#allocation12], 16
        $region72: #{tpu_custom_call.1} parent=51 // pred_fallthru
          _
        // Predicated region
        $region73: #{tpu_custom_call.1} parent=51 // pred_check
          %p382 = pneg %p170
        $region74: #{tpu_custom_call.1} parent=51 // pred_check_branch
          %384 = sbr.rel (%p382) target = $region76
        $region75: #{tpu_custom_call.1} parent=51 // pred_region
          %385 = dma.done [#allocation12], 64
        $region76: #{tpu_custom_call.1} parent=51 // pred_fallthru
          _
        // Predicated region
        $region77: #{tpu_custom_call.1} parent=51 // pred_check
          %p386 = pneg %p191
        $region78: #{tpu_custom_call.1} parent=51 // pred_check_branch
          %388 = sbr.rel (%p386) target = $region80
        $region79: #{tpu_custom_call.1} parent=51 // pred_region
          %389 = dma.done [#allocation15], 16
        $region80: #{tpu_custom_call.1} parent=51 // pred_fallthru
          _
        %390 = sfence
        %s391 = sand.u32 %s52, 1
        %s392 = scalar_lea.sflag [#allocation4], %s391
        %s393 = sand.u32 %s52, 1
        %s394 = smul.addr %s393, 64
        %s395 = scalar_lea.vmem [#allocation3], %s394
        %p396 = pneg %p65
        %p397 = pneg %p62
        %p398 = pneg %p86
        %p399 = pneg %p83
        %p400 = pneg %p107
        %p401 = pneg %p104
        %p402 = pneg %p128
        %p403 = pneg %p125
        %p404 = pneg %p149
        %p405 = pneg %p146
        %p406 = pneg %p170
        %p407 = pneg %p167
        %p408 = pneg %p191
        %p409 = pneg %p188
        %p410 = pneg %p212
        %p411 = pneg %p209
        %p412 = pneg %p240
        %p413 = pneg %p237
        %s414 = sand.u32 %s227, 1
        %s415 = scalar_lea.sflag [#allocation5], %s414
        %s416 = sand.u32 %s227, 1
        %s417 = smul.addr %s416, 64
        %s418 = scalar_lea.vmem [#allocation16], %s417
        %v419 = vld [vmem:[%s361] sm:$0xff]
        %v420 = vld [vmem:[%s361 + $0x8] sm:$0xff]
        %v421 = vld [vmem:[%s361 + $0x10] sm:$0xff]
        %v422 = vld [vmem:[%s361 + $0x18] sm:$0xff]
        %v423 = vld [vmem:[%s361 + $0x20] sm:$0xff]
        %v424 = vld [vmem:[%s361 + $0x28] sm:$0xff]
        %v425 = vld [vmem:[%s361 + $0x30] sm:$0xff]
        %v426 = vld [vmem:[%s361 + $0x38] sm:$0xff]
        %s427 = sld [smem:[#allocation7]]
        %v428 = vstv %s427
        %v429 = vmul.f32 %v419, %v428
        %v430 = vmul.f32 %v420, %v428
        %s431 = sld [smem:[#allocation7 + $0x1]]
        %v432 = vstv %s431
        %v433 = vmul.f32 %v421, %v432
        %v434 = vmul.f32 %v422, %v432
        %v435 = vadd.f32 %v429, %v433
        %v436 = vadd.f32 %v430, %v434
        %s437 = sld [smem:[#allocation7 + $0x2]]
        %v438 = vstv %s437
        %v439 = vmul.f32 %v423, %v438
        %v440 = vmul.f32 %v424, %v438
        %v441 = vadd.f32 %v435, %v439
        %v442 = vadd.f32 %v436, %v440
        %s443 = sld [smem:[#allocation7 + $0x3]]
        %v444 = vstv %s443
        %v445 = vmul.f32 %v425, %v444
        %v446 = vmul.f32 %v426, %v444
        %v447 = vadd.f32 %v441, %v445
        %v448 = vadd.f32 %v442, %v446
        %s449 = sld [smem:[#allocation8]]
        %v450 = vstv %s449
        %v451 = vadd.f32 %v447, %v450
        %v452 = vadd.f32 %v448, %v450
        %s453 = sld [smem:[#allocation7 + $0x80]]
        %v454 = vstv %s453
        %v455 = vmul.f32 %v419, %v454
        %v456 = vmul.f32 %v420, %v454
        %s457 = sld [smem:[#allocation7 + $0x81]]
        %v458 = vstv %s457
        %v459 = vmul.f32 %v421, %v458
        %v460 = vmul.f32 %v422, %v458
        %v461 = vadd.f32 %v455, %v459
        %v462 = vadd.f32 %v456, %v460
        %s463 = sld [smem:[#allocation7 + $0x82]]
        %v464 = vstv %s463
        %v465 = vmul.f32 %v423, %v464
        %v466 = vmul.f32 %v424, %v464
        %v467 = vadd.f32 %v461, %v465
        %v468 = vadd.f32 %v462, %v466
        %s469 = sld [smem:[#allocation7 + $0x83]]
        %v470 = vstv %s469
        %v471 = vmul.f32 %v425, %v470
        %v472 = vmul.f32 %v426, %v470
        %v473 = vadd.f32 %v467, %v471
        %v474 = vadd.f32 %v468, %v472
        %s475 = sld [smem:[#allocation8 + $0x1]]
        %v476 = vstv %s475
        %v477 = vadd.f32 %v473, %v476
        %v478 = vadd.f32 %v474, %v476
        %s479 = sld [smem:[#allocation7 + $0x100]]
        %v480 = vstv %s479
        %v481 = vmul.f32 %v419, %v480
        %v482 = vmul.f32 %v420, %v480
        %s483 = sld [smem:[#allocation7 + $0x101]]
        %v484 = vstv %s483
        %v485 = vmul.f32 %v421, %v484
        %v486 = vmul.f32 %v422, %v484
        %v487 = vadd.f32 %v481, %v485
        %v488 = vadd.f32 %v482, %v486
        %s489 = sld [smem:[#allocation7 + $0x102]]
        %v490 = vstv %s489
        %v491 = vmul.f32 %v423, %v490
        %v492 = vmul.f32 %v424, %v490
        %v493 = vadd.f32 %v487, %v491
        %v494 = vadd.f32 %v488, %v492
        %s495 = sld [smem:[#allocation7 + $0x103]]
        %v496 = vstv %s495
        %v497 = vmul.f32 %v425, %v496
        %v498 = vmul.f32 %v426, %v496
        %v499 = vadd.f32 %v493, %v497
        %v500 = vadd.f32 %v494, %v498
        %s501 = sld [smem:[#allocation8 + $0x2]]
        %v502 = vstv %s501
        %v503 = vadd.f32 %v499, %v502
        %v504 = vadd.f32 %v500, %v502
        %s505 = sld [smem:[#allocation7 + $0x180]]
        %v506 = vstv %s505
        %v507 = vmul.f32 %v419, %v506
        %v508 = vmul.f32 %v420, %v506
        %s509 = sld [smem:[#allocation7 + $0x181]]
        %v510 = vstv %s509
        %v511 = vmul.f32 %v421, %v510
        %v512 = vmul.f32 %v422, %v510
        %v513 = vadd.f32 %v507, %v511
        %v514 = vadd.f32 %v508, %v512
        %s515 = sld [smem:[#allocation7 + $0x182]]
        %v516 = vstv %s515
        %v517 = vmul.f32 %v423, %v516
        %v518 = vmul.f32 %v424, %v516
        %v519 = vadd.f32 %v513, %v517
        %v520 = vadd.f32 %v514, %v518
        %s521 = sld [smem:[#allocation7 + $0x183]]
        %v522 = vstv %s521
        %v523 = vmul.f32 %v425, %v522
        %v524 = vmul.f32 %v426, %v522
        %v525 = vadd.f32 %v519, %v523
        %v526 = vadd.f32 %v520, %v524
        %s527 = sld [smem:[#allocation8 + $0x3]]
        %v528 = vstv %s527
        %v529 = vadd.f32 %v525, %v528
        %v530 = vadd.f32 %v526, %v528
        %s531 = sld [smem:[#allocation7 + $0x200]]
        %v532 = vstv %s531
        %v533 = vmul.f32 %v419, %v532
        %v534 = vmul.f32 %v420, %v532
        %s535 = sld [smem:[#allocation7 + $0x201]]
        %v536 = vstv %s535
        %v537 = vmul.f32 %v421, %v536
        %v538 = vmul.f32 %v422, %v536
        %v539 = vadd.f32 %v533, %v537
        %v540 = vadd.f32 %v534, %v538
        %s541 = sld [smem:[#allocation7 + $0x202]]
        %v542 = vstv %s541
        %v543 = vmul.f32 %v423, %v542
        %v544 = vmul.f32 %v424, %v542
        %v545 = vadd.f32 %v539, %v543
        %v546 = vadd.f32 %v540, %v544
        %s547 = sld [smem:[#allocation7 + $0x203]]
        %v548 = vstv %s547
        %v549 = vmul.f32 %v425, %v548
        %v550 = vmul.f32 %v426, %v548
        %v551 = vadd.f32 %v545, %v549
        %v552 = vadd.f32 %v546, %v550
        %s553 = sld [smem:[#allocation8 + $0x4]]
        %v554 = vstv %s553
        %v555 = vadd.f32 %v551, %v554
        %v556 = vadd.f32 %v552, %v554
        %s557 = sld [smem:[#allocation7 + $0x280]]
        %v558 = vstv %s557
        %v559 = vmul.f32 %v419, %v558
        %v560 = vmul.f32 %v420, %v558
        %s561 = sld [smem:[#allocation7 + $0x281]]
        %v562 = vstv %s561
        %v563 = vmul.f32 %v421, %v562
        %v564 = vmul.f32 %v422, %v562
        %v565 = vadd.f32 %v559, %v563
        %v566 = vadd.f32 %v560, %v564
        %s567 = sld [smem:[#allocation7 + $0x282]]
        %v568 = vstv %s567
        %v569 = vmul.f32 %v423, %v568
        %v570 = vmul.f32 %v424, %v568
        %v571 = vadd.f32 %v565, %v569
        %v572 = vadd.f32 %v566, %v570
        %s573 = sld [smem:[#allocation7 + $0x283]]
        %v574 = vstv %s573
        %v575 = vmul.f32 %v425, %v574
        %v576 = vmul.f32 %v426, %v574
        %v577 = vadd.f32 %v571, %v575
        %v578 = vadd.f32 %v572, %v576
        %s579 = sld [smem:[#allocation8 + $0x5]]
        %v580 = vstv %s579
        %v581 = vadd.f32 %v577, %v580
        %v582 = vadd.f32 %v578, %v580
        %s583 = sld [smem:[#allocation7 + $0x300]]
        %v584 = vstv %s583
        %v585 = vmul.f32 %v419, %v584
        %v586 = vmul.f32 %v420, %v584
        %s587 = sld [smem:[#allocation7 + $0x301]]
        %v588 = vstv %s587
        %v589 = vmul.f32 %v421, %v588
        %v590 = vmul.f32 %v422, %v588
        %v591 = vadd.f32 %v585, %v589
        %v592 = vadd.f32 %v586, %v590
        %s593 = sld [smem:[#allocation7 + $0x302]]
        %v594 = vstv %s593
        %v595 = vmul.f32 %v423, %v594
        %v596 = vmul.f32 %v424, %v594
        %v597 = vadd.f32 %v591, %v595
        %v598 = vadd.f32 %v592, %v596
        %s599 = sld [smem:[#allocation7 + $0x303]]
        %v600 = vstv %s599
        %v601 = vmul.f32 %v425, %v600
        %v602 = vmul.f32 %v426, %v600
        %v603 = vadd.f32 %v597, %v601
        %v604 = vadd.f32 %v598, %v602
        %s605 = sld [smem:[#allocation8 + $0x6]]
        %v606 = vstv %s605
        %v607 = vadd.f32 %v603, %v606
        %v608 = vadd.f32 %v604, %v606
        %s609 = sld [smem:[#allocation7 + $0x380]]
        %v610 = vstv %s609
        %v611 = vmul.f32 %v419, %v610
        %v612 = vmul.f32 %v420, %v610
        %s613 = sld [smem:[#allocation7 + $0x381]]
        %v614 = vstv %s613
        %v615 = vmul.f32 %v421, %v614
        %v616 = vmul.f32 %v422, %v614
        %v617 = vadd.f32 %v611, %v615
        %v618 = vadd.f32 %v612, %v616
        %s619 = sld [smem:[#allocation7 + $0x382]]
        %v620 = vstv %s619
        %v621 = vmul.f32 %v423, %v620
        %v622 = vmul.f32 %v424, %v620
        %v623 = vadd.f32 %v617, %v621
        %v624 = vadd.f32 %v618, %v622
        %s625 = sld [smem:[#allocation7 + $0x383]]
        %v626 = vstv %s625
        %v627 = vmul.f32 %v425, %v626
        %v628 = vmul.f32 %v426, %v626
        %v629 = vadd.f32 %v623, %v627
        %v630 = vadd.f32 %v624, %v628
        %s631 = sld [smem:[#allocation8 + $0x7]]
        %v632 = vstv %s631
        %v633 = vadd.f32 %v629, %v632
        %v634 = vadd.f32 %v630, %v632
        %s635 = sld [smem:[#allocation10]]
        %v636 = vstv %s635
        %v637 = vmul.f32 %v419, %v636
        %v638 = vmul.f32 %v420, %v636
        %s639 = sld [smem:[#allocation10 + $0x1]]
        %v640 = vstv %s639
        %v641 = vmul.f32 %v421, %v640
        %v642 = vmul.f32 %v422, %v640
        %v643 = vadd.f32 %v637, %v641
        %v644 = vadd.f32 %v638, %v642
        %s645 = sld [smem:[#allocation10 + $0x2]]
        %v646 = vstv %s645
        %v647 = vmul.f32 %v423, %v646
        %v648 = vmul.f32 %v424, %v646
        %v649 = vadd.f32 %v643, %v647
        %v650 = vadd.f32 %v644, %v648
        %s651 = sld [smem:[#allocation10 + $0x3]]
        %v652 = vstv %s651
        %v653 = vmul.f32 %v425, %v652
        %v654 = vmul.f32 %v426, %v652
        %v655 = vadd.f32 %v649, %v653
        %v656 = vadd.f32 %v650, %v654
        %s657 = sld [smem:[#allocation11]]
        %v658 = vstv %s657
        %v659 = vadd.f32 %v655, %v658
        %v660 = vadd.f32 %v656, %v658
        %s661 = sld [smem:[#allocation10 + $0x80]]
        %v662 = vstv %s661
        %v663 = vmul.f32 %v419, %v662
        %v664 = vmul.f32 %v420, %v662
        %s665 = sld [smem:[#allocation10 + $0x81]]
        %v666 = vstv %s665
        %v667 = vmul.f32 %v421, %v666
        %v668 = vmul.f32 %v422, %v666
        %v669 = vadd.f32 %v663, %v667
        %v670 = vadd.f32 %v664, %v668
        %s671 = sld [smem:[#allocation10 + $0x82]]
        %v672 = vstv %s671
        %v673 = vmul.f32 %v423, %v672
        %v674 = vmul.f32 %v424, %v672
        %v675 = vadd.f32 %v669, %v673
        %v676 = vadd.f32 %v670, %v674
        %s677 = sld [smem:[#allocation10 + $0x83]]
        %v678 = vstv %s677
        %v679 = vmul.f32 %v425, %v678
        %v680 = vmul.f32 %v426, %v678
        %v681 = vadd.f32 %v675, %v679
        %v682 = vadd.f32 %v676, %v680
        %s683 = sld [smem:[#allocation11 + $0x1]]
        %v684 = vstv %s683
        %v685 = vadd.f32 %v681, %v684
        %v686 = vadd.f32 %v682, %v684
        %s687 = sld [smem:[#allocation10 + $0x100]]
        %v688 = vstv %s687
        %v689 = vmul.f32 %v419, %v688
        %v690 = vmul.f32 %v420, %v688
        %s691 = sld [smem:[#allocation10 + $0x101]]
        %v692 = vstv %s691
        %v693 = vmul.f32 %v421, %v692
        %v694 = vmul.f32 %v422, %v692
        %v695 = vadd.f32 %v689, %v693
        %v696 = vadd.f32 %v690, %v694
        %s697 = sld [smem:[#allocation10 + $0x102]]
        %v698 = vstv %s697
        %v699 = vmul.f32 %v423, %v698
        %v700 = vmul.f32 %v424, %v698
        %v701 = vadd.f32 %v695, %v699
        %v702 = vadd.f32 %v696, %v700
        %s703 = sld [smem:[#allocation10 + $0x103]]
        %v704 = vstv %s703
        %v705 = vmul.f32 %v425, %v704
        %v706 = vmul.f32 %v426, %v704
        %v707 = vadd.f32 %v701, %v705
        %v708 = vadd.f32 %v702, %v706
        %s709 = sld [smem:[#allocation11 + $0x2]]
        %v710 = vstv %s709
        %v711 = vadd.f32 %v707, %v710
        %v712 = vadd.f32 %v708, %v710
        %s713 = sld [smem:[#allocation10 + $0x180]]
        %v714 = vstv %s713
        %v715 = vmul.f32 %v419, %v714
        %v716 = vmul.f32 %v420, %v714
        %s717 = sld [smem:[#allocation10 + $0x181]]
        %v718 = vstv %s717
        %v719 = vmul.f32 %v421, %v718
        %v720 = vmul.f32 %v422, %v718
        %v721 = vadd.f32 %v715, %v719
        %v722 = vadd.f32 %v716, %v720
        %s723 = sld [smem:[#allocation10 + $0x182]]
        %v724 = vstv %s723
        %v725 = vmul.f32 %v423, %v724
        %v726 = vmul.f32 %v424, %v724
        %v727 = vadd.f32 %v721, %v725
        %v728 = vadd.f32 %v722, %v726
        %s729 = sld [smem:[#allocation10 + $0x183]]
        %v730 = vstv %s729
        %v731 = vmul.f32 %v425, %v730
        %v732 = vmul.f32 %v426, %v730
        %v733 = vadd.f32 %v727, %v731
        %v734 = vadd.f32 %v728, %v732
        %s735 = sld [smem:[#allocation11 + $0x3]]
        %v736 = vstv %s735
        %v737 = vadd.f32 %v733, %v736
        %v738 = vadd.f32 %v734, %v736
        %s739 = sld [smem:[#allocation10 + $0x200]]
        %v740 = vstv %s739
        %v741 = vmul.f32 %v419, %v740
        %v742 = vmul.f32 %v420, %v740
        %s743 = sld [smem:[#allocation10 + $0x201]]
        %v744 = vstv %s743
        %v745 = vmul.f32 %v421, %v744
        %v746 = vmul.f32 %v422, %v744
        %v747 = vadd.f32 %v741, %v745
        %v748 = vadd.f32 %v742, %v746
        %s749 = sld [smem:[#allocation10 + $0x202]]
        %v750 = vstv %s749
        %v751 = vmul.f32 %v423, %v750
        %v752 = vmul.f32 %v424, %v750
        %v753 = vadd.f32 %v747, %v751
        %v754 = vadd.f32 %v748, %v752
        %s755 = sld [smem:[#allocation10 + $0x203]]
        %v756 = vstv %s755
        %v757 = vmul.f32 %v425, %v756
        %v758 = vmul.f32 %v426, %v756
        %v759 = vadd.f32 %v753, %v757
        %v760 = vadd.f32 %v754, %v758
        %s761 = sld [smem:[#allocation11 + $0x4]]
        %v762 = vstv %s761
        %v763 = vadd.f32 %v759, %v762
        %v764 = vadd.f32 %v760, %v762
        %s765 = sld [smem:[#allocation10 + $0x280]]
        %v766 = vstv %s765
        %v767 = vmul.f32 %v419, %v766
        %v768 = vmul.f32 %v420, %v766
        %s769 = sld [smem:[#allocation10 + $0x281]]
        %v770 = vstv %s769
        %v771 = vmul.f32 %v421, %v770
        %v772 = vmul.f32 %v422, %v770
        %v773 = vadd.f32 %v767, %v771
        %v774 = vadd.f32 %v768, %v772
        %s775 = sld [smem:[#allocation10 + $0x282]]
        %v776 = vstv %s775
        %v777 = vmul.f32 %v423, %v776
        %v778 = vmul.f32 %v424, %v776
        %v779 = vadd.f32 %v773, %v777
        %v780 = vadd.f32 %v774, %v778
        %s781 = sld [smem:[#allocation10 + $0x283]]
        %v782 = vstv %s781
        %v783 = vmul.f32 %v425, %v782
        %v784 = vmul.f32 %v426, %v782
        %v785 = vadd.f32 %v779, %v783
        %v786 = vadd.f32 %v780, %v784
        %s787 = sld [smem:[#allocation11 + $0x5]]
        %v788 = vstv %s787
        %v789 = vadd.f32 %v785, %v788
        %v790 = vadd.f32 %v786, %v788
        %s791 = sld [smem:[#allocation10 + $0x300]]
        %v792 = vstv %s791
        %v793 = vmul.f32 %v419, %v792
        %v794 = vmul.f32 %v420, %v792
        %s795 = sld [smem:[#allocation10 + $0x301]]
        %v796 = vstv %s795
        %v797 = vmul.f32 %v421, %v796
        %v798 = vmul.f32 %v422, %v796
        %v799 = vadd.f32 %v793, %v797
        %v800 = vadd.f32 %v794, %v798
        %s801 = sld [smem:[#allocation10 + $0x302]]
        %v802 = vstv %s801
        %v803 = vmul.f32 %v423, %v802
        %v804 = vmul.f32 %v424, %v802
        %v805 = vadd.f32 %v799, %v803
        %v806 = vadd.f32 %v800, %v804
        %s807 = sld [smem:[#allocation10 + $0x303]]
        %v808 = vstv %s807
        %v809 = vmul.f32 %v425, %v808
        %v810 = vmul.f32 %v426, %v808
        %v811 = vadd.f32 %v805, %v809
        %v812 = vadd.f32 %v806, %v810
        %s813 = sld [smem:[#allocation11 + $0x6]]
        %v814 = vstv %s813
        %v815 = vadd.f32 %v811, %v814
        %v816 = vadd.f32 %v812, %v814
        %s817 = sld [smem:[#allocation10 + $0x380]]
        %v818 = vstv %s817
        %v819 = vmul.f32 %v419, %v818
        %v820 = vmul.f32 %v420, %v818
        %s821 = sld [smem:[#allocation10 + $0x381]]
        %v822 = vstv %s821
        %v823 = vmul.f32 %v421, %v822
        %v824 = vmul.f32 %v422, %v822
        %v825 = vadd.f32 %v819, %v823
        %v826 = vadd.f32 %v820, %v824
        %s827 = sld [smem:[#allocation10 + $0x382]]
        %v828 = vstv %s827
        %v829 = vmul.f32 %v423, %v828
        %v830 = vmul.f32 %v424, %v828
        %v831 = vadd.f32 %v825, %v829
        %v832 = vadd.f32 %v826, %v830
        %s833 = sld [smem:[#allocation10 + $0x383]]
        %v834 = vstv %s833
        %v835 = vmul.f32 %v425, %v834
        %v836 = vmul.f32 %v426, %v834
        %v837 = vadd.f32 %v831, %v835
        %v838 = vadd.f32 %v832, %v836
        %s839 = sld [smem:[#allocation11 + $0x7]]
        %v840 = vstv %s839
        %v841 = vadd.f32 %v837, %v840
        %v842 = vadd.f32 %v838, %v840
        %s843 = sld [smem:[#allocation13]]
        %v844 = vstv %s843
        %v845 = vmul.f32 %v419, %v844
        %v846 = vmul.f32 %v420, %v844
        %s847 = sld [smem:[#allocation13 + $0x1]]
        %v848 = vstv %s847
        %v849 = vmul.f32 %v421, %v848
        %v850 = vmul.f32 %v422, %v848
        %v851 = vadd.f32 %v845, %v849
        %v852 = vadd.f32 %v846, %v850
        %s853 = sld [smem:[#allocation13 + $0x2]]
        %v854 = vstv %s853
        %v855 = vmul.f32 %v423, %v854
        %v856 = vmul.f32 %v424, %v854
        %v857 = vadd.f32 %v851, %v855
        %v858 = vadd.f32 %v852, %v856
        %s859 = sld [smem:[#allocation13 + $0x3]]
        %v860 = vstv %s859
        %v861 = vmul.f32 %v425, %v860
        %v862 = vmul.f32 %v426, %v860
        %v863 = vadd.f32 %v857, %v861
        %v864 = vadd.f32 %v858, %v862
        %s865 = sld [smem:[#allocation14]]
        %v866 = vstv %s865
        %v867 = vadd.f32 %v863, %v866
        %v868 = vadd.f32 %v864, %v866
        %s869 = sld [smem:[#allocation13 + $0x80]]
        %v870 = vstv %s869
        %v871 = vmul.f32 %v419, %v870
        %v872 = vmul.f32 %v420, %v870
        %s873 = sld [smem:[#allocation13 + $0x81]]
        %v874 = vstv %s873
        %v875 = vmul.f32 %v421, %v874
        %v876 = vmul.f32 %v422, %v874
        %v877 = vadd.f32 %v871, %v875
        %v878 = vadd.f32 %v872, %v876
        %s879 = sld [smem:[#allocation13 + $0x82]]
        %v880 = vstv %s879
        %v881 = vmul.f32 %v423, %v880
        %v882 = vmul.f32 %v424, %v880
        %v883 = vadd.f32 %v877, %v881
        %v884 = vadd.f32 %v878, %v882
        %s885 = sld [smem:[#allocation13 + $0x83]]
        %v886 = vstv %s885
        %v887 = vmul.f32 %v425, %v886
        %v888 = vmul.f32 %v426, %v886
        %v889 = vadd.f32 %v883, %v887
        %v890 = vadd.f32 %v884, %v888
        %s891 = sld [smem:[#allocation14 + $0x1]]
        %v892 = vstv %s891
        %v893 = vadd.f32 %v889, %v892
        %v894 = vadd.f32 %v890, %v892
        %s895 = sld [smem:[#allocation13 + $0x100]]
        %v896 = vstv %s895
        %v897 = vmul.f32 %v419, %v896
        %v898 = vmul.f32 %v420, %v896
        %s899 = sld [smem:[#allocation13 + $0x101]]
        %v900 = vstv %s899
        %v901 = vmul.f32 %v421, %v900
        %v902 = vmul.f32 %v422, %v900
        %v903 = vadd.f32 %v897, %v901
        %v904 = vadd.f32 %v898, %v902
        %s905 = sld [smem:[#allocation13 + $0x102]]
        %v906 = vstv %s905
        %v907 = vmul.f32 %v423, %v906
        %v908 = vmul.f32 %v424, %v906
        %v909 = vadd.f32 %v903, %v907
        %v910 = vadd.f32 %v904, %v908
        %s911 = sld [smem:[#allocation13 + $0x103]]
        %v912 = vstv %s911
        %v913 = vmul.f32 %v425, %v912
        %v914 = vmul.f32 %v426, %v912
        %v915 = vadd.f32 %v909, %v913
        %v916 = vadd.f32 %v910, %v914
        %s917 = sld [smem:[#allocation14 + $0x2]]
        %v918 = vstv %s917
        %v919 = vadd.f32 %v915, %v918
        %v920 = vadd.f32 %v916, %v918
        %s921 = sld [smem:[#allocation13 + $0x180]]
        %v922 = vstv %s921
        %v923 = vmul.f32 %v419, %v922
        %v924 = vmul.f32 %v420, %v922
        %s925 = sld [smem:[#allocation13 + $0x181]]
        %v926 = vstv %s925
        %v927 = vmul.f32 %v421, %v926
        %v928 = vmul.f32 %v422, %v926
        %v929 = vadd.f32 %v923, %v927
        %v930 = vadd.f32 %v924, %v928
        %s931 = sld [smem:[#allocation13 + $0x182]]
        %v932 = vstv %s931
        %v933 = vmul.f32 %v423, %v932
        %v934 = vmul.f32 %v424, %v932
        %v935 = vadd.f32 %v929, %v933
        %v936 = vadd.f32 %v930, %v934
        %s937 = sld [smem:[#allocation13 + $0x183]]
        %v938 = vstv %s937
        %v939 = vmul.f32 %v425, %v938
        %v940 = vmul.f32 %v426, %v938
        %v941 = vadd.f32 %v935, %v939
        %v942 = vadd.f32 %v936, %v940
        %s943 = sld [smem:[#allocation14 + $0x3]]
        %v944 = vstv %s943
        %v945 = vadd.f32 %v941, %v944
        %v946 = vadd.f32 %v942, %v944
        %v949 = vcombine.high %v451, %v451
        %v951 = vunpack.c.l.s4 1966171168
        %v952 = vunpack.c.0.s8 %v951
        %v953 = vlaneseq
        %v954 = vshrl.u32 %v953, 7
        %v955 = vsub.s32 %v952, %v954
        %v956 = vrot.slane %v451, %v955
        %v958 = vunpack.c.l.s4 1966171168
        %v959 = vunpack.c.0.s8 %v958
        %v960 = vlaneseq
        %v961 = vshrl.u32 %v960, 7
        %v962 = vsub.s32 %v959, %v961
        %v963 = vrot.slane %v949, %v962
        %v964 = vcombine.high %v956, %v956
        %v965 = vcombine.high %v963, %v963
        %v967 = vunpack.c.l.s4 1966171168
        %v968 = vunpack.c.0.s8 %v967
        %v969 = vlaneseq
        %v970 = vshrl.u32 %v969, 7
        %v971 = vsub.s32 %v968, %v970
        %v972 = vrot.slane %v956, %v971
        %v974 = vunpack.c.l.s4 1966171168
        %v975 = vunpack.c.0.s8 %v974
        %v976 = vlaneseq
        %v977 = vshrl.u32 %v976, 7
        %v978 = vsub.s32 %v975, %v977
        %v979 = vrot.slane %v963, %v978
        %v981 = vunpack.c.l.s4 1966171168
        %v982 = vunpack.c.0.s8 %v981
        %v983 = vlaneseq
        %v984 = vshrl.u32 %v983, 7
        %v985 = vsub.s32 %v982, %v984
        %v986 = vrot.slane %v964, %v985
        %v988 = vunpack.c.l.s4 1966171168
        %v989 = vunpack.c.0.s8 %v988
        %v990 = vlaneseq
        %v991 = vshrl.u32 %v990, 7
        %v992 = vsub.s32 %v989, %v991
        %v993 = vrot.slane %v965, %v992
        %v994 = vcombine.high %v972, %v972
        %v995 = vcombine.high %v979, %v979
        %v996 = vcombine.high %v986, %v986
        %v997 = vcombine.high %v993, %v993
        %v998 = vcombine.high %v452, %v452
        %v1000 = vunpack.c.l.s4 1966171168
        %v1001 = vunpack.c.0.s8 %v1000
        %v1002 = vlaneseq
        %v1003 = vshrl.u32 %v1002, 7
        %v1004 = vsub.s32 %v1001, %v1003
        %v1005 = vrot.slane %v452, %v1004
        %v1007 = vunpack.c.l.s4 1966171168
        %v1008 = vunpack.c.0.s8 %v1007
        %v1009 = vlaneseq
        %v1010 = vshrl.u32 %v1009, 7
        %v1011 = vsub.s32 %v1008, %v1010
        %v1012 = vrot.slane %v998, %v1011
        %v1013 = vcombine.high %v1005, %v1005
        %v1014 = vcombine.high %v1012, %v1012
        %v1016 = vunpack.c.l.s4 1966171168
        %v1017 = vunpack.c.0.s8 %v1016
        %v1018 = vlaneseq
        %v1019 = vshrl.u32 %v1018, 7
        %v1020 = vsub.s32 %v1017, %v1019
        %v1021 = vrot.slane %v1005, %v1020
        %v1023 = vunpack.c.l.s4 1966171168
        %v1024 = vunpack.c.0.s8 %v1023
        %v1025 = vlaneseq
        %v1026 = vshrl.u32 %v1025, 7
        %v1027 = vsub.s32 %v1024, %v1026
        %v1028 = vrot.slane %v1012, %v1027
        %v1030 = vunpack.c.l.s4 1966171168
        %v1031 = vunpack.c.0.s8 %v1030
        %v1032 = vlaneseq
        %v1033 = vshrl.u32 %v1032, 7
        %v1034 = vsub.s32 %v1031, %v1033
        %v1035 = vrot.slane %v1013, %v1034
        %v1037 = vunpack.c.l.s4 1966171168
        %v1038 = vunpack.c.0.s8 %v1037
        %v1039 = vlaneseq
        %v1040 = vshrl.u32 %v1039, 7
        %v1041 = vsub.s32 %v1038, %v1040
        %v1042 = vrot.slane %v1014, %v1041
        %v1043 = vcombine.high %v1021, %v1021
        %v1044 = vcombine.high %v1028, %v1028
        %v1045 = vcombine.high %v1035, %v1035
        %v1046 = vcombine.high %v1042, %v1042
        %v1047 = vlaneseq
        %v1048 = vshrl.u32 %v1047, 7
        %v1049 = vsub.s32 0, %v1048
        %v1050 = vrot.slane %v972, %v1049
        %v1051 = vlaneseq
        %v1052 = vshrl.u32 %v1051, 7
        %v1053 = vsub.s32 0, %v1052
        %v1054 = vrot.slane %v986, %v1053
        %v1055 = vlaneseq
        %v1056 = vshrl.u32 %v1055, 7
        %v1057 = vsub.s32 0, %v1056
        %v1058 = vrot.slane %v994, %v1057
        %v1059 = vlaneseq
        %v1060 = vshrl.u32 %v1059, 7
        %v1061 = vsub.s32 0, %v1060
        %v1062 = vrot.slane %v996, %v1061
        %v1063 = vlaneseq
        %v1064 = vshrl.u32 %v1063, 7
        %v1065 = vsub.s32 0, %v1064
        %v1066 = vrot.slane %v979, %v1065
        %v1067 = vlaneseq
        %v1068 = vshrl.u32 %v1067, 7
        %v1069 = vsub.s32 0, %v1068
        %v1070 = vrot.slane %v993, %v1069
        %v1071 = vlaneseq
        %v1072 = vshrl.u32 %v1071, 7
        %v1073 = vsub.s32 0, %v1072
        %v1074 = vrot.slane %v995, %v1073
        %v1075 = vlaneseq
        %v1076 = vshrl.u32 %v1075, 7
        %v1077 = vsub.s32 0, %v1076
        %v1078 = vrot.slane %v997, %v1077
        %v1079 = vlaneseq
        %v1080 = vshrl.u32 %v1079, 7
        %v1081 = vsub.s32 0, %v1080
        %v1082 = vrot.slane %v1021, %v1081
        %v1083 = vlaneseq
        %v1084 = vshrl.u32 %v1083, 7
        %v1085 = vsub.s32 0, %v1084
        %v1086 = vrot.slane %v1035, %v1085
        %v1087 = vlaneseq
        %v1088 = vshrl.u32 %v1087, 7
        %v1089 = vsub.s32 0, %v1088
        %v1090 = vrot.slane %v1043, %v1089
        %v1091 = vlaneseq
        %v1092 = vshrl.u32 %v1091, 7
        %v1093 = vsub.s32 0, %v1092
        %v1094 = vrot.slane %v1045, %v1093
        %v1095 = vlaneseq
        %v1096 = vshrl.u32 %v1095, 7
        %v1097 = vsub.s32 0, %v1096
        %v1098 = vrot.slane %v1028, %v1097
        %v1099 = vlaneseq
        %v1100 = vshrl.u32 %v1099, 7
        %v1101 = vsub.s32 0, %v1100
        %v1102 = vrot.slane %v1042, %v1101
        %v1103 = vlaneseq
        %v1104 = vshrl.u32 %v1103, 7
        %v1105 = vsub.s32 0, %v1104
        %v1106 = vrot.slane %v1044, %v1105
        %v1107 = vlaneseq
        %v1108 = vshrl.u32 %v1107, 7
        %v1109 = vsub.s32 0, %v1108
        %v1110 = vrot.slane %v1046, %v1109
        %v1127 = vmul.f32 %v1050, %v659
        %v1128 = vmul.f32 %v1050, %v660
        %v1129 = vmul.f32 %v1054, %v659
        %v1130 = vmul.f32 %v1054, %v660
        %v1131 = vmul.f32 %v1058, %v659
        %v1132 = vmul.f32 %v1058, %v660
        %v1133 = vmul.f32 %v1062, %v659
        %v1134 = vmul.f32 %v1062, %v660
        %v1135 = vmul.f32 %v1066, %v659
        %v1136 = vmul.f32 %v1066, %v660
        %v1137 = vmul.f32 %v1070, %v659
        %v1138 = vmul.f32 %v1070, %v660
        %v1139 = vmul.f32 %v1074, %v659
        %v1140 = vmul.f32 %v1074, %v660
        %v1141 = vmul.f32 %v1078, %v659
        %v1142 = vmul.f32 %v1078, %v660
        %v1143 = vmul.f32 %v1082, %v659
        %v1144 = vmul.f32 %v1082, %v660
        %v1145 = vmul.f32 %v1086, %v659
        %v1146 = vmul.f32 %v1086, %v660
        %v1147 = vmul.f32 %v1090, %v659
        %v1148 = vmul.f32 %v1090, %v660
        %v1149 = vmul.f32 %v1094, %v659
        %v1150 = vmul.f32 %v1094, %v660
        %v1151 = vmul.f32 %v1098, %v659
        %v1152 = vmul.f32 %v1098, %v660
        %v1153 = vmul.f32 %v1102, %v659
        %v1154 = vmul.f32 %v1102, %v660
        %v1155 = vmul.f32 %v1106, %v659
        %v1156 = vmul.f32 %v1106, %v660
        %v1157 = vmul.f32 %v1110, %v659
        %v1158 = vmul.f32 %v1110, %v660
        %v1161 = vcombine.high %v477, %v477
        %v1163 = vunpack.c.l.s4 1966171168
        %v1164 = vunpack.c.0.s8 %v1163
        %v1165 = vlaneseq
        %v1166 = vshrl.u32 %v1165, 7
        %v1167 = vsub.s32 %v1164, %v1166
        %v1168 = vrot.slane %v477, %v1167
        %v1170 = vunpack.c.l.s4 1966171168
        %v1171 = vunpack.c.0.s8 %v1170
        %v1172 = vlaneseq
        %v1173 = vshrl.u32 %v1172, 7
        %v1174 = vsub.s32 %v1171, %v1173
        %v1175 = vrot.slane %v1161, %v1174
        %v1176 = vcombine.high %v1168, %v1168
        %v1177 = vcombine.high %v1175, %v1175
        %v1179 = vunpack.c.l.s4 1966171168
        %v1180 = vunpack.c.0.s8 %v1179
        %v1181 = vlaneseq
        %v1182 = vshrl.u32 %v1181, 7
        %v1183 = vsub.s32 %v1180, %v1182
        %v1184 = vrot.slane %v1168, %v1183
        %v1186 = vunpack.c.l.s4 1966171168
        %v1187 = vunpack.c.0.s8 %v1186
        %v1188 = vlaneseq
        %v1189 = vshrl.u32 %v1188, 7
        %v1190 = vsub.s32 %v1187, %v1189
        %v1191 = vrot.slane %v1175, %v1190
        %v1193 = vunpack.c.l.s4 1966171168
        %v1194 = vunpack.c.0.s8 %v1193
        %v1195 = vlaneseq
        %v1196 = vshrl.u32 %v1195, 7
        %v1197 = vsub.s32 %v1194, %v1196
        %v1198 = vrot.slane %v1176, %v1197
        %v1200 = vunpack.c.l.s4 1966171168
        %v1201 = vunpack.c.0.s8 %v1200
        %v1202 = vlaneseq
        %v1203 = vshrl.u32 %v1202, 7
        %v1204 = vsub.s32 %v1201, %v1203
        %v1205 = vrot.slane %v1177, %v1204
        %v1206 = vcombine.high %v1184, %v1184
        %v1207 = vcombine.high %v1191, %v1191
        %v1208 = vcombine.high %v1198, %v1198
        %v1209 = vcombine.high %v1205, %v1205
        %v1210 = vcombine.high %v478, %v478
        %v1212 = vunpack.c.l.s4 1966171168
        %v1213 = vunpack.c.0.s8 %v1212
        %v1214 = vlaneseq
        %v1215 = vshrl.u32 %v1214, 7
        %v1216 = vsub.s32 %v1213, %v1215
        %v1217 = vrot.slane %v478, %v1216
        %v1219 = vunpack.c.l.s4 1966171168
        %v1220 = vunpack.c.0.s8 %v1219
        %v1221 = vlaneseq
        %v1222 = vshrl.u32 %v1221, 7
        %v1223 = vsub.s32 %v1220, %v1222
        %v1224 = vrot.slane %v1210, %v1223
        %v1225 = vcombine.high %v1217, %v1217
        %v1226 = vcombine.high %v1224, %v1224
        %v1228 = vunpack.c.l.s4 1966171168
        %v1229 = vunpack.c.0.s8 %v1228
        %v1230 = vlaneseq
        %v1231 = vshrl.u32 %v1230, 7
        %v1232 = vsub.s32 %v1229, %v1231
        %v1233 = vrot.slane %v1217, %v1232
        %v1235 = vunpack.c.l.s4 1966171168
        %v1236 = vunpack.c.0.s8 %v1235
        %v1237 = vlaneseq
        %v1238 = vshrl.u32 %v1237, 7
        %v1239 = vsub.s32 %v1236, %v1238
        %v1240 = vrot.slane %v1224, %v1239
        %v1242 = vunpack.c.l.s4 1966171168
        %v1243 = vunpack.c.0.s8 %v1242
        %v1244 = vlaneseq
        %v1245 = vshrl.u32 %v1244, 7
        %v1246 = vsub.s32 %v1243, %v1245
        %v1247 = vrot.slane %v1225, %v1246
        %v1249 = vunpack.c.l.s4 1966171168
        %v1250 = vunpack.c.0.s8 %v1249
        %v1251 = vlaneseq
        %v1252 = vshrl.u32 %v1251, 7
        %v1253 = vsub.s32 %v1250, %v1252
        %v1254 = vrot.slane %v1226, %v1253
        %v1255 = vcombine.high %v1233, %v1233
        %v1256 = vcombine.high %v1240, %v1240
        %v1257 = vcombine.high %v1247, %v1247
        %v1258 = vcombine.high %v1254, %v1254
        %v1259 = vlaneseq
        %v1260 = vshrl.u32 %v1259, 7
        %v1261 = vsub.s32 0, %v1260
        %v1262 = vrot.slane %v1184, %v1261
        %v1263 = vlaneseq
        %v1264 = vshrl.u32 %v1263, 7
        %v1265 = vsub.s32 0, %v1264
        %v1266 = vrot.slane %v1198, %v1265
        %v1267 = vlaneseq
        %v1268 = vshrl.u32 %v1267, 7
        %v1269 = vsub.s32 0, %v1268
        %v1270 = vrot.slane %v1206, %v1269
        %v1271 = vlaneseq
        %v1272 = vshrl.u32 %v1271, 7
        %v1273 = vsub.s32 0, %v1272
        %v1274 = vrot.slane %v1208, %v1273
        %v1275 = vlaneseq
        %v1276 = vshrl.u32 %v1275, 7
        %v1277 = vsub.s32 0, %v1276
        %v1278 = vrot.slane %v1191, %v1277
        %v1279 = vlaneseq
        %v1280 = vshrl.u32 %v1279, 7
        %v1281 = vsub.s32 0, %v1280
        %v1282 = vrot.slane %v1205, %v1281
        %v1283 = vlaneseq
        %v1284 = vshrl.u32 %v1283, 7
        %v1285 = vsub.s32 0, %v1284
        %v1286 = vrot.slane %v1207, %v1285
        %v1287 = vlaneseq
        %v1288 = vshrl.u32 %v1287, 7
        %v1289 = vsub.s32 0, %v1288
        %v1290 = vrot.slane %v1209, %v1289
        %v1291 = vlaneseq
        %v1292 = vshrl.u32 %v1291, 7
        %v1293 = vsub.s32 0, %v1292
        %v1294 = vrot.slane %v1233, %v1293
        %v1295 = vlaneseq
        %v1296 = vshrl.u32 %v1295, 7
        %v1297 = vsub.s32 0, %v1296
        %v1298 = vrot.slane %v1247, %v1297
        %v1299 = vlaneseq
        %v1300 = vshrl.u32 %v1299, 7
        %v1301 = vsub.s32 0, %v1300
        %v1302 = vrot.slane %v1255, %v1301
        %v1303 = vlaneseq
        %v1304 = vshrl.u32 %v1303, 7
        %v1305 = vsub.s32 0, %v1304
        %v1306 = vrot.slane %v1257, %v1305
        %v1307 = vlaneseq
        %v1308 = vshrl.u32 %v1307, 7
        %v1309 = vsub.s32 0, %v1308
        %v1310 = vrot.slane %v1240, %v1309
        %v1311 = vlaneseq
        %v1312 = vshrl.u32 %v1311, 7
        %v1313 = vsub.s32 0, %v1312
        %v1314 = vrot.slane %v1254, %v1313
        %v1315 = vlaneseq
        %v1316 = vshrl.u32 %v1315, 7
        %v1317 = vsub.s32 0, %v1316
        %v1318 = vrot.slane %v1256, %v1317
        %v1319 = vlaneseq
        %v1320 = vshrl.u32 %v1319, 7
        %v1321 = vsub.s32 0, %v1320
        %v1322 = vrot.slane %v1258, %v1321
        %v1339 = vmul.f32 %v1262, %v685
        %v1340 = vmul.f32 %v1262, %v686
        %v1341 = vmul.f32 %v1266, %v685
        %v1342 = vmul.f32 %v1266, %v686
        %v1343 = vmul.f32 %v1270, %v685
        %v1344 = vmul.f32 %v1270, %v686
        %v1345 = vmul.f32 %v1274, %v685
        %v1346 = vmul.f32 %v1274, %v686
        %v1347 = vmul.f32 %v1278, %v685
        %v1348 = vmul.f32 %v1278, %v686
        %v1349 = vmul.f32 %v1282, %v685
        %v1350 = vmul.f32 %v1282, %v686
        %v1351 = vmul.f32 %v1286, %v685
        %v1352 = vmul.f32 %v1286, %v686
        %v1353 = vmul.f32 %v1290, %v685
        %v1354 = vmul.f32 %v1290, %v686
        %v1355 = vmul.f32 %v1294, %v685
        %v1356 = vmul.f32 %v1294, %v686
        %v1357 = vmul.f32 %v1298, %v685
        %v1358 = vmul.f32 %v1298, %v686
        %v1359 = vmul.f32 %v1302, %v685
        %v1360 = vmul.f32 %v1302, %v686
        %v1361 = vmul.f32 %v1306, %v685
        %v1362 = vmul.f32 %v1306, %v686
        %v1363 = vmul.f32 %v1310, %v685
        %v1364 = vmul.f32 %v1310, %v686
        %v1365 = vmul.f32 %v1314, %v685
        %v1366 = vmul.f32 %v1314, %v686
        %v1367 = vmul.f32 %v1318, %v685
        %v1368 = vmul.f32 %v1318, %v686
        %v1369 = vmul.f32 %v1322, %v685
        %v1370 = vmul.f32 %v1322, %v686
        %v1371 = vadd.f32 %v1127, %v1339
        %v1372 = vadd.f32 %v1128, %v1340
        %v1373 = vadd.f32 %v1129, %v1341
        %v1374 = vadd.f32 %v1130, %v1342
        %v1375 = vadd.f32 %v1131, %v1343
        %v1376 = vadd.f32 %v1132, %v1344
        %v1377 = vadd.f32 %v1133, %v1345
        %v1378 = vadd.f32 %v1134, %v1346
        %v1379 = vadd.f32 %v1135, %v1347
        %v1380 = vadd.f32 %v1136, %v1348
        %v1381 = vadd.f32 %v1137, %v1349
        %v1382 = vadd.f32 %v1138, %v1350
        %v1383 = vadd.f32 %v1139, %v1351
        %v1384 = vadd.f32 %v1140, %v1352
        %v1385 = vadd.f32 %v1141, %v1353
        %v1386 = vadd.f32 %v1142, %v1354
        %v1387 = vadd.f32 %v1143, %v1355
        %v1388 = vadd.f32 %v1144, %v1356
        %v1389 = vadd.f32 %v1145, %v1357
        %v1390 = vadd.f32 %v1146, %v1358
        %v1391 = vadd.f32 %v1147, %v1359
        %v1392 = vadd.f32 %v1148, %v1360
        %v1393 = vadd.f32 %v1149, %v1361
        %v1394 = vadd.f32 %v1150, %v1362
        %v1395 = vadd.f32 %v1151, %v1363
        %v1396 = vadd.f32 %v1152, %v1364
        %v1397 = vadd.f32 %v1153, %v1365
        %v1398 = vadd.f32 %v1154, %v1366
        %v1399 = vadd.f32 %v1155, %v1367
        %v1400 = vadd.f32 %v1156, %v1368
        %v1401 = vadd.f32 %v1157, %v1369
        %v1402 = vadd.f32 %v1158, %v1370
        %v1405 = vcombine.high %v503, %v503
        %v1407 = vunpack.c.l.s4 1966171168
        %v1408 = vunpack.c.0.s8 %v1407
        %v1409 = vlaneseq
        %v1410 = vshrl.u32 %v1409, 7
        %v1411 = vsub.s32 %v1408, %v1410
        %v1412 = vrot.slane %v503, %v1411
        %v1414 = vunpack.c.l.s4 1966171168
        %v1415 = vunpack.c.0.s8 %v1414
        %v1416 = vlaneseq
        %v1417 = vshrl.u32 %v1416, 7
        %v1418 = vsub.s32 %v1415, %v1417
        %v1419 = vrot.slane %v1405, %v1418
        %v1420 = vcombine.high %v1412, %v1412
        %v1421 = vcombine.high %v1419, %v1419
        %v1423 = vunpack.c.l.s4 1966171168
        %v1424 = vunpack.c.0.s8 %v1423
        %v1425 = vlaneseq
        %v1426 = vshrl.u32 %v1425, 7
        %v1427 = vsub.s32 %v1424, %v1426
        %v1428 = vrot.slane %v1412, %v1427
        %v1430 = vunpack.c.l.s4 1966171168
        %v1431 = vunpack.c.0.s8 %v1430
        %v1432 = vlaneseq
        %v1433 = vshrl.u32 %v1432, 7
        %v1434 = vsub.s32 %v1431, %v1433
        %v1435 = vrot.slane %v1419, %v1434
        %v1437 = vunpack.c.l.s4 1966171168
        %v1438 = vunpack.c.0.s8 %v1437
        %v1439 = vlaneseq
        %v1440 = vshrl.u32 %v1439, 7
        %v1441 = vsub.s32 %v1438, %v1440
        %v1442 = vrot.slane %v1420, %v1441
        %v1444 = vunpack.c.l.s4 1966171168
        %v1445 = vunpack.c.0.s8 %v1444
        %v1446 = vlaneseq
        %v1447 = vshrl.u32 %v1446, 7
        %v1448 = vsub.s32 %v1445, %v1447
        %v1449 = vrot.slane %v1421, %v1448
        %v1450 = vcombine.high %v1428, %v1428
        %v1451 = vcombine.high %v1435, %v1435
        %v1452 = vcombine.high %v1442, %v1442
        %v1453 = vcombine.high %v1449, %v1449
        %v1454 = vcombine.high %v504, %v504
        %v1456 = vunpack.c.l.s4 1966171168
        %v1457 = vunpack.c.0.s8 %v1456
        %v1458 = vlaneseq
        %v1459 = vshrl.u32 %v1458, 7
        %v1460 = vsub.s32 %v1457, %v1459
        %v1461 = vrot.slane %v504, %v1460
        %v1463 = vunpack.c.l.s4 1966171168
        %v1464 = vunpack.c.0.s8 %v1463
        %v1465 = vlaneseq
        %v1466 = vshrl.u32 %v1465, 7
        %v1467 = vsub.s32 %v1464, %v1466
        %v1468 = vrot.slane %v1454, %v1467
        %v1469 = vcombine.high %v1461, %v1461
        %v1470 = vcombine.high %v1468, %v1468
        %v1472 = vunpack.c.l.s4 1966171168
        %v1473 = vunpack.c.0.s8 %v1472
        %v1474 = vlaneseq
        %v1475 = vshrl.u32 %v1474, 7
        %v1476 = vsub.s32 %v1473, %v1475
        %v1477 = vrot.slane %v1461, %v1476
        %v1479 = vunpack.c.l.s4 1966171168
        %v1480 = vunpack.c.0.s8 %v1479
        %v1481 = vlaneseq
        %v1482 = vshrl.u32 %v1481, 7
        %v1483 = vsub.s32 %v1480, %v1482
        %v1484 = vrot.slane %v1468, %v1483
        %v1486 = vunpack.c.l.s4 1966171168
        %v1487 = vunpack.c.0.s8 %v1486
        %v1488 = vlaneseq
        %v1489 = vshrl.u32 %v1488, 7
        %v1490 = vsub.s32 %v1487, %v1489
        %v1491 = vrot.slane %v1469, %v1490
        %v1493 = vunpack.c.l.s4 1966171168
        %v1494 = vunpack.c.0.s8 %v1493
        %v1495 = vlaneseq
        %v1496 = vshrl.u32 %v1495, 7
        %v1497 = vsub.s32 %v1494, %v1496
        %v1498 = vrot.slane %v1470, %v1497
        %v1499 = vcombine.high %v1477, %v1477
        %v1500 = vcombine.high %v1484, %v1484
        %v1501 = vcombine.high %v1491, %v1491
        %v1502 = vcombine.high %v1498, %v1498
        %v1503 = vlaneseq
        %v1504 = vshrl.u32 %v1503, 7
        %v1505 = vsub.s32 0, %v1504
        %v1506 = vrot.slane %v1428, %v1505
        %v1507 = vlaneseq
        %v1508 = vshrl.u32 %v1507, 7
        %v1509 = vsub.s32 0, %v1508
        %v1510 = vrot.slane %v1442, %v1509
        %v1511 = vlaneseq
        %v1512 = vshrl.u32 %v1511, 7
        %v1513 = vsub.s32 0, %v1512
        %v1514 = vrot.slane %v1450, %v1513
        %v1515 = vlaneseq
        %v1516 = vshrl.u32 %v1515, 7
        %v1517 = vsub.s32 0, %v1516
        %v1518 = vrot.slane %v1452, %v1517
        %v1519 = vlaneseq
        %v1520 = vshrl.u32 %v1519, 7
        %v1521 = vsub.s32 0, %v1520
        %v1522 = vrot.slane %v1435, %v1521
        %v1523 = vlaneseq
        %v1524 = vshrl.u32 %v1523, 7
        %v1525 = vsub.s32 0, %v1524
        %v1526 = vrot.slane %v1449, %v1525
        %v1527 = vlaneseq
        %v1528 = vshrl.u32 %v1527, 7
        %v1529 = vsub.s32 0, %v1528
        %v1530 = vrot.slane %v1451, %v1529
        %v1531 = vlaneseq
        %v1532 = vshrl.u32 %v1531, 7
        %v1533 = vsub.s32 0, %v1532
        %v1534 = vrot.slane %v1453, %v1533
        %v1535 = vlaneseq
        %v1536 = vshrl.u32 %v1535, 7
        %v1537 = vsub.s32 0, %v1536
        %v1538 = vrot.slane %v1477, %v1537
        %v1539 = vlaneseq
        %v1540 = vshrl.u32 %v1539, 7
        %v1541 = vsub.s32 0, %v1540
        %v1542 = vrot.slane %v1491, %v1541
        %v1543 = vlaneseq
        %v1544 = vshrl.u32 %v1543, 7
        %v1545 = vsub.s32 0, %v1544
        %v1546 = vrot.slane %v1499, %v1545
        %v1547 = vlaneseq
        %v1548 = vshrl.u32 %v1547, 7
        %v1549 = vsub.s32 0, %v1548
        %v1550 = vrot.slane %v1501, %v1549
        %v1551 = vlaneseq
        %v1552 = vshrl.u32 %v1551, 7
        %v1553 = vsub.s32 0, %v1552
        %v1554 = vrot.slane %v1484, %v1553
        %v1555 = vlaneseq
        %v1556 = vshrl.u32 %v1555, 7
        %v1557 = vsub.s32 0, %v1556
        %v1558 = vrot.slane %v1498, %v1557
        %v1559 = vlaneseq
        %v1560 = vshrl.u32 %v1559, 7
        %v1561 = vsub.s32 0, %v1560
        %v1562 = vrot.slane %v1500, %v1561
        %v1563 = vlaneseq
        %v1564 = vshrl.u32 %v1563, 7
        %v1565 = vsub.s32 0, %v1564
        %v1566 = vrot.slane %v1502, %v1565
        %v1583 = vmul.f32 %v1506, %v711
        %v1584 = vmul.f32 %v1506, %v712
        %v1585 = vmul.f32 %v1510, %v711
        %v1586 = vmul.f32 %v1510, %v712
        %v1587 = vmul.f32 %v1514, %v711
        %v1588 = vmul.f32 %v1514, %v712
        %v1589 = vmul.f32 %v1518, %v711
        %v1590 = vmul.f32 %v1518, %v712
        %v1591 = vmul.f32 %v1522, %v711
        %v1592 = vmul.f32 %v1522, %v712
        %v1593 = vmul.f32 %v1526, %v711
        %v1594 = vmul.f32 %v1526, %v712
        %v1595 = vmul.f32 %v1530, %v711
        %v1596 = vmul.f32 %v1530, %v712
        %v1597 = vmul.f32 %v1534, %v711
        %v1598 = vmul.f32 %v1534, %v712
        %v1599 = vmul.f32 %v1538, %v711
        %v1600 = vmul.f32 %v1538, %v712
        %v1601 = vmul.f32 %v1542, %v711
        %v1602 = vmul.f32 %v1542, %v712
        %v1603 = vmul.f32 %v1546, %v711
        %v1604 = vmul.f32 %v1546, %v712
        %v1605 = vmul.f32 %v1550, %v711
        %v1606 = vmul.f32 %v1550, %v712
        %v1607 = vmul.f32 %v1554, %v711
        %v1608 = vmul.f32 %v1554, %v712
        %v1609 = vmul.f32 %v1558, %v711
        %v1610 = vmul.f32 %v1558, %v712
        %v1611 = vmul.f32 %v1562, %v711
        %v1612 = vmul.f32 %v1562, %v712
        %v1613 = vmul.f32 %v1566, %v711
        %v1614 = vmul.f32 %v1566, %v712
        %v1615 = vadd.f32 %v1371, %v1583
        %v1616 = vadd.f32 %v1372, %v1584
        %v1617 = vadd.f32 %v1373, %v1585
        %v1618 = vadd.f32 %v1374, %v1586
        %v1619 = vadd.f32 %v1375, %v1587
        %v1620 = vadd.f32 %v1376, %v1588
        %v1621 = vadd.f32 %v1377, %v1589
        %v1622 = vadd.f32 %v1378, %v1590
        %v1623 = vadd.f32 %v1379, %v1591
        %v1624 = vadd.f32 %v1380, %v1592
        %v1625 = vadd.f32 %v1381, %v1593
        %v1626 = vadd.f32 %v1382, %v1594
        %v1627 = vadd.f32 %v1383, %v1595
        %v1628 = vadd.f32 %v1384, %v1596
        %v1629 = vadd.f32 %v1385, %v1597
        %v1630 = vadd.f32 %v1386, %v1598
        %v1631 = vadd.f32 %v1387, %v1599
        %v1632 = vadd.f32 %v1388, %v1600
        %v1633 = vadd.f32 %v1389, %v1601
        %v1634 = vadd.f32 %v1390, %v1602
        %v1635 = vadd.f32 %v1391, %v1603
        %v1636 = vadd.f32 %v1392, %v1604
        %v1637 = vadd.f32 %v1393, %v1605
        %v1638 = vadd.f32 %v1394, %v1606
        %v1639 = vadd.f32 %v1395, %v1607
        %v1640 = vadd.f32 %v1396, %v1608
        %v1641 = vadd.f32 %v1397, %v1609
        %v1642 = vadd.f32 %v1398, %v1610
        %v1643 = vadd.f32 %v1399, %v1611
        %v1644 = vadd.f32 %v1400, %v1612
        %v1645 = vadd.f32 %v1401, %v1613
        %v1646 = vadd.f32 %v1402, %v1614
        %v1649 = vcombine.high %v529, %v529
        %v1651 = vunpack.c.l.s4 1966171168
        %v1652 = vunpack.c.0.s8 %v1651
        %v1653 = vlaneseq
        %v1654 = vshrl.u32 %v1653, 7
        %v1655 = vsub.s32 %v1652, %v1654
        %v1656 = vrot.slane %v529, %v1655
        %v1658 = vunpack.c.l.s4 1966171168
        %v1659 = vunpack.c.0.s8 %v1658
        %v1660 = vlaneseq
        %v1661 = vshrl.u32 %v1660, 7
        %v1662 = vsub.s32 %v1659, %v1661
        %v1663 = vrot.slane %v1649, %v1662
        %v1664 = vcombine.high %v1656, %v1656
        %v1665 = vcombine.high %v1663, %v1663
        %v1667 = vunpack.c.l.s4 1966171168
        %v1668 = vunpack.c.0.s8 %v1667
        %v1669 = vlaneseq
        %v1670 = vshrl.u32 %v1669, 7
        %v1671 = vsub.s32 %v1668, %v1670
        %v1672 = vrot.slane %v1656, %v1671
        %v1674 = vunpack.c.l.s4 1966171168
        %v1675 = vunpack.c.0.s8 %v1674
        %v1676 = vlaneseq
        %v1677 = vshrl.u32 %v1676, 7
        %v1678 = vsub.s32 %v1675, %v1677
        %v1679 = vrot.slane %v1663, %v1678
        %v1681 = vunpack.c.l.s4 1966171168
        %v1682 = vunpack.c.0.s8 %v1681
        %v1683 = vlaneseq
        %v1684 = vshrl.u32 %v1683, 7
        %v1685 = vsub.s32 %v1682, %v1684
        %v1686 = vrot.slane %v1664, %v1685
        %v1688 = vunpack.c.l.s4 1966171168
        %v1689 = vunpack.c.0.s8 %v1688
        %v1690 = vlaneseq
        %v1691 = vshrl.u32 %v1690, 7
        %v1692 = vsub.s32 %v1689, %v1691
        %v1693 = vrot.slane %v1665, %v1692
        %v1694 = vcombine.high %v1672, %v1672
        %v1695 = vcombine.high %v1679, %v1679
        %v1696 = vcombine.high %v1686, %v1686
        %v1697 = vcombine.high %v1693, %v1693
        %v1698 = vcombine.high %v530, %v530
        %v1700 = vunpack.c.l.s4 1966171168
        %v1701 = vunpack.c.0.s8 %v1700
        %v1702 = vlaneseq
        %v1703 = vshrl.u32 %v1702, 7
        %v1704 = vsub.s32 %v1701, %v1703
        %v1705 = vrot.slane %v530, %v1704
        %v1707 = vunpack.c.l.s4 1966171168
        %v1708 = vunpack.c.0.s8 %v1707
        %v1709 = vlaneseq
        %v1710 = vshrl.u32 %v1709, 7
        %v1711 = vsub.s32 %v1708, %v1710
        %v1712 = vrot.slane %v1698, %v1711
        %v1713 = vcombine.high %v1705, %v1705
        %v1714 = vcombine.high %v1712, %v1712
        %v1716 = vunpack.c.l.s4 1966171168
        %v1717 = vunpack.c.0.s8 %v1716
        %v1718 = vlaneseq
        %v1719 = vshrl.u32 %v1718, 7
        %v1720 = vsub.s32 %v1717, %v1719
        %v1721 = vrot.slane %v1705, %v1720
        %v1723 = vunpack.c.l.s4 1966171168
        %v1724 = vunpack.c.0.s8 %v1723
        %v1725 = vlaneseq
        %v1726 = vshrl.u32 %v1725, 7
        %v1727 = vsub.s32 %v1724, %v1726
        %v1728 = vrot.slane %v1712, %v1727
        %v1730 = vunpack.c.l.s4 1966171168
        %v1731 = vunpack.c.0.s8 %v1730
        %v1732 = vlaneseq
        %v1733 = vshrl.u32 %v1732, 7
        %v1734 = vsub.s32 %v1731, %v1733
        %v1735 = vrot.slane %v1713, %v1734
        %v1737 = vunpack.c.l.s4 1966171168
        %v1738 = vunpack.c.0.s8 %v1737
        %v1739 = vlaneseq
        %v1740 = vshrl.u32 %v1739, 7
        %v1741 = vsub.s32 %v1738, %v1740
        %v1742 = vrot.slane %v1714, %v1741
        %v1743 = vcombine.high %v1721, %v1721
        %v1744 = vcombine.high %v1728, %v1728
        %v1745 = vcombine.high %v1735, %v1735
        %v1746 = vcombine.high %v1742, %v1742
        %v1747 = vlaneseq
        %v1748 = vshrl.u32 %v1747, 7
        %v1749 = vsub.s32 0, %v1748
        %v1750 = vrot.slane %v1672, %v1749
        %v1751 = vlaneseq
        %v1752 = vshrl.u32 %v1751, 7
        %v1753 = vsub.s32 0, %v1752
        %v1754 = vrot.slane %v1686, %v1753
        %v1755 = vlaneseq
        %v1756 = vshrl.u32 %v1755, 7
        %v1757 = vsub.s32 0, %v1756
        %v1758 = vrot.slane %v1694, %v1757
        %v1759 = vlaneseq
        %v1760 = vshrl.u32 %v1759, 7
        %v1761 = vsub.s32 0, %v1760
        %v1762 = vrot.slane %v1696, %v1761
        %v1763 = vlaneseq
        %v1764 = vshrl.u32 %v1763, 7
        %v1765 = vsub.s32 0, %v1764
        %v1766 = vrot.slane %v1679, %v1765
        %v1767 = vlaneseq
        %v1768 = vshrl.u32 %v1767, 7
        %v1769 = vsub.s32 0, %v1768
        %v1770 = vrot.slane %v1693, %v1769
        %v1771 = vlaneseq
        %v1772 = vshrl.u32 %v1771, 7
        %v1773 = vsub.s32 0, %v1772
        %v1774 = vrot.slane %v1695, %v1773
        %v1775 = vlaneseq
        %v1776 = vshrl.u32 %v1775, 7
        %v1777 = vsub.s32 0, %v1776
        %v1778 = vrot.slane %v1697, %v1777
        %v1779 = vlaneseq
        %v1780 = vshrl.u32 %v1779, 7
        %v1781 = vsub.s32 0, %v1780
        %v1782 = vrot.slane %v1721, %v1781
        %v1783 = vlaneseq
        %v1784 = vshrl.u32 %v1783, 7
        %v1785 = vsub.s32 0, %v1784
        %v1786 = vrot.slane %v1735, %v1785
        %v1787 = vlaneseq
        %v1788 = vshrl.u32 %v1787, 7
        %v1789 = vsub.s32 0, %v1788
        %v1790 = vrot.slane %v1743, %v1789
        %v1791 = vlaneseq
        %v1792 = vshrl.u32 %v1791, 7
        %v1793 = vsub.s32 0, %v1792
        %v1794 = vrot.slane %v1745, %v1793
        %v1795 = vlaneseq
        %v1796 = vshrl.u32 %v1795, 7
        %v1797 = vsub.s32 0, %v1796
        %v1798 = vrot.slane %v1728, %v1797
        %v1799 = vlaneseq
        %v1800 = vshrl.u32 %v1799, 7
        %v1801 = vsub.s32 0, %v1800
        %v1802 = vrot.slane %v1742, %v1801
        %v1803 = vlaneseq
        %v1804 = vshrl.u32 %v1803, 7
        %v1805 = vsub.s32 0, %v1804
        %v1806 = vrot.slane %v1744, %v1805
        %v1807 = vlaneseq
        %v1808 = vshrl.u32 %v1807, 7
        %v1809 = vsub.s32 0, %v1808
        %v1810 = vrot.slane %v1746, %v1809
        %v1827 = vmul.f32 %v1750, %v737
        %v1828 = vmul.f32 %v1750, %v738
        %v1829 = vmul.f32 %v1754, %v737
        %v1830 = vmul.f32 %v1754, %v738
        %v1831 = vmul.f32 %v1758, %v737
        %v1832 = vmul.f32 %v1758, %v738
        %v1833 = vmul.f32 %v1762, %v737
        %v1834 = vmul.f32 %v1762, %v738
        %v1835 = vmul.f32 %v1766, %v737
        %v1836 = vmul.f32 %v1766, %v738
        %v1837 = vmul.f32 %v1770, %v737
        %v1838 = vmul.f32 %v1770, %v738
        %v1839 = vmul.f32 %v1774, %v737
        %v1840 = vmul.f32 %v1774, %v738
        %v1841 = vmul.f32 %v1778, %v737
        %v1842 = vmul.f32 %v1778, %v738
        %v1843 = vmul.f32 %v1782, %v737
        %v1844 = vmul.f32 %v1782, %v738
        %v1845 = vmul.f32 %v1786, %v737
        %v1846 = vmul.f32 %v1786, %v738
        %v1847 = vmul.f32 %v1790, %v737
        %v1848 = vmul.f32 %v1790, %v738
        %v1849 = vmul.f32 %v1794, %v737
        %v1850 = vmul.f32 %v1794, %v738
        %v1851 = vmul.f32 %v1798, %v737
        %v1852 = vmul.f32 %v1798, %v738
        %v1853 = vmul.f32 %v1802, %v737
        %v1854 = vmul.f32 %v1802, %v738
        %v1855 = vmul.f32 %v1806, %v737
        %v1856 = vmul.f32 %v1806, %v738
        %v1857 = vmul.f32 %v1810, %v737
        %v1858 = vmul.f32 %v1810, %v738
        %v1859 = vadd.f32 %v1615, %v1827
        %v1860 = vadd.f32 %v1616, %v1828
        %v1861 = vadd.f32 %v1617, %v1829
        %v1862 = vadd.f32 %v1618, %v1830
        %v1863 = vadd.f32 %v1619, %v1831
        %v1864 = vadd.f32 %v1620, %v1832
        %v1865 = vadd.f32 %v1621, %v1833
        %v1866 = vadd.f32 %v1622, %v1834
        %v1867 = vadd.f32 %v1623, %v1835
        %v1868 = vadd.f32 %v1624, %v1836
        %v1869 = vadd.f32 %v1625, %v1837
        %v1870 = vadd.f32 %v1626, %v1838
        %v1871 = vadd.f32 %v1627, %v1839
        %v1872 = vadd.f32 %v1628, %v1840
        %v1873 = vadd.f32 %v1629, %v1841
        %v1874 = vadd.f32 %v1630, %v1842
        %v1875 = vadd.f32 %v1631, %v1843
        %v1876 = vadd.f32 %v1632, %v1844
        %v1877 = vadd.f32 %v1633, %v1845
        %v1878 = vadd.f32 %v1634, %v1846
        %v1879 = vadd.f32 %v1635, %v1847
        %v1880 = vadd.f32 %v1636, %v1848
        %v1881 = vadd.f32 %v1637, %v1849
        %v1882 = vadd.f32 %v1638, %v1850
        %v1883 = vadd.f32 %v1639, %v1851
        %v1884 = vadd.f32 %v1640, %v1852
        %v1885 = vadd.f32 %v1641, %v1853
        %v1886 = vadd.f32 %v1642, %v1854
        %v1887 = vadd.f32 %v1643, %v1855
        %v1888 = vadd.f32 %v1644, %v1856
        %v1889 = vadd.f32 %v1645, %v1857
        %v1890 = vadd.f32 %v1646, %v1858
        %v1893 = vcombine.high %v555, %v555
        %v1895 = vunpack.c.l.s4 1966171168
        %v1896 = vunpack.c.0.s8 %v1895
        %v1897 = vlaneseq
        %v1898 = vshrl.u32 %v1897, 7
        %v1899 = vsub.s32 %v1896, %v1898
        %v1900 = vrot.slane %v555, %v1899
        %v1902 = vunpack.c.l.s4 1966171168
        %v1903 = vunpack.c.0.s8 %v1902
        %v1904 = vlaneseq
        %v1905 = vshrl.u32 %v1904, 7
        %v1906 = vsub.s32 %v1903, %v1905
        %v1907 = vrot.slane %v1893, %v1906
        %v1908 = vcombine.high %v1900, %v1900
        %v1909 = vcombine.high %v1907, %v1907
        %v1911 = vunpack.c.l.s4 1966171168
        %v1912 = vunpack.c.0.s8 %v1911
        %v1913 = vlaneseq
        %v1914 = vshrl.u32 %v1913, 7
        %v1915 = vsub.s32 %v1912, %v1914
        %v1916 = vrot.slane %v1900, %v1915
        %v1918 = vunpack.c.l.s4 1966171168
        %v1919 = vunpack.c.0.s8 %v1918
        %v1920 = vlaneseq
        %v1921 = vshrl.u32 %v1920, 7
        %v1922 = vsub.s32 %v1919, %v1921
        %v1923 = vrot.slane %v1907, %v1922
        %v1925 = vunpack.c.l.s4 1966171168
        %v1926 = vunpack.c.0.s8 %v1925
        %v1927 = vlaneseq
        %v1928 = vshrl.u32 %v1927, 7
        %v1929 = vsub.s32 %v1926, %v1928
        %v1930 = vrot.slane %v1908, %v1929
        %v1932 = vunpack.c.l.s4 1966171168
        %v1933 = vunpack.c.0.s8 %v1932
        %v1934 = vlaneseq
        %v1935 = vshrl.u32 %v1934, 7
        %v1936 = vsub.s32 %v1933, %v1935
        %v1937 = vrot.slane %v1909, %v1936
        %v1938 = vcombine.high %v1916, %v1916
        %v1939 = vcombine.high %v1923, %v1923
        %v1940 = vcombine.high %v1930, %v1930
        %v1941 = vcombine.high %v1937, %v1937
        %v1942 = vcombine.high %v556, %v556
        %v1944 = vunpack.c.l.s4 1966171168
        %v1945 = vunpack.c.0.s8 %v1944
        %v1946 = vlaneseq
        %v1947 = vshrl.u32 %v1946, 7
        %v1948 = vsub.s32 %v1945, %v1947
        %v1949 = vrot.slane %v556, %v1948
        %v1951 = vunpack.c.l.s4 1966171168
        %v1952 = vunpack.c.0.s8 %v1951
        %v1953 = vlaneseq
        %v1954 = vshrl.u32 %v1953, 7
        %v1955 = vsub.s32 %v1952, %v1954
        %v1956 = vrot.slane %v1942, %v1955
        %v1957 = vcombine.high %v1949, %v1949
        %v1958 = vcombine.high %v1956, %v1956
        %v1960 = vunpack.c.l.s4 1966171168
        %v1961 = vunpack.c.0.s8 %v1960
        %v1962 = vlaneseq
        %v1963 = vshrl.u32 %v1962, 7
        %v1964 = vsub.s32 %v1961, %v1963
        %v1965 = vrot.slane %v1949, %v1964
        %v1967 = vunpack.c.l.s4 1966171168
        %v1968 = vunpack.c.0.s8 %v1967
        %v1969 = vlaneseq
        %v1970 = vshrl.u32 %v1969, 7
        %v1971 = vsub.s32 %v1968, %v1970
        %v1972 = vrot.slane %v1956, %v1971
        %v1974 = vunpack.c.l.s4 1966171168
        %v1975 = vunpack.c.0.s8 %v1974
        %v1976 = vlaneseq
        %v1977 = vshrl.u32 %v1976, 7
        %v1978 = vsub.s32 %v1975, %v1977
        %v1979 = vrot.slane %v1957, %v1978
        %v1981 = vunpack.c.l.s4 1966171168
        %v1982 = vunpack.c.0.s8 %v1981
        %v1983 = vlaneseq
        %v1984 = vshrl.u32 %v1983, 7
        %v1985 = vsub.s32 %v1982, %v1984
        %v1986 = vrot.slane %v1958, %v1985
        %v1987 = vcombine.high %v1965, %v1965
        %v1988 = vcombine.high %v1972, %v1972
        %v1989 = vcombine.high %v1979, %v1979
        %v1990 = vcombine.high %v1986, %v1986
        %v1991 = vlaneseq
        %v1992 = vshrl.u32 %v1991, 7
        %v1993 = vsub.s32 0, %v1992
        %v1994 = vrot.slane %v1916, %v1993
        %v1995 = vlaneseq
        %v1996 = vshrl.u32 %v1995, 7
        %v1997 = vsub.s32 0, %v1996
        %v1998 = vrot.slane %v1930, %v1997
        %v1999 = vlaneseq
        %v2000 = vshrl.u32 %v1999, 7
        %v2001 = vsub.s32 0, %v2000
        %v2002 = vrot.slane %v1938, %v2001
        %v2003 = vlaneseq
        %v2004 = vshrl.u32 %v2003, 7
        %v2005 = vsub.s32 0, %v2004
        %v2006 = vrot.slane %v1940, %v2005
        %v2007 = vlaneseq
        %v2008 = vshrl.u32 %v2007, 7
        %v2009 = vsub.s32 0, %v2008
        %v2010 = vrot.slane %v1923, %v2009
        %v2011 = vlaneseq
        %v2012 = vshrl.u32 %v2011, 7
        %v2013 = vsub.s32 0, %v2012
        %v2014 = vrot.slane %v1937, %v2013
        %v2015 = vlaneseq
        %v2016 = vshrl.u32 %v2015, 7
        %v2017 = vsub.s32 0, %v2016
        %v2018 = vrot.slane %v1939, %v2017
        %v2019 = vlaneseq
        %v2020 = vshrl.u32 %v2019, 7
        %v2021 = vsub.s32 0, %v2020
        %v2022 = vrot.slane %v1941, %v2021
        %v2023 = vlaneseq
        %v2024 = vshrl.u32 %v2023, 7
        %v2025 = vsub.s32 0, %v2024
        %v2026 = vrot.slane %v1965, %v2025
        %v2027 = vlaneseq
        %v2028 = vshrl.u32 %v2027, 7
        %v2029 = vsub.s32 0, %v2028
        %v2030 = vrot.slane %v1979, %v2029
        %v2031 = vlaneseq
        %v2032 = vshrl.u32 %v2031, 7
        %v2033 = vsub.s32 0, %v2032
        %v2034 = vrot.slane %v1987, %v2033
        %v2035 = vlaneseq
        %v2036 = vshrl.u32 %v2035, 7
        %v2037 = vsub.s32 0, %v2036
        %v2038 = vrot.slane %v1989, %v2037
        %v2039 = vlaneseq
        %v2040 = vshrl.u32 %v2039, 7
        %v2041 = vsub.s32 0, %v2040
        %v2042 = vrot.slane %v1972, %v2041
        %v2043 = vlaneseq
        %v2044 = vshrl.u32 %v2043, 7
        %v2045 = vsub.s32 0, %v2044
        %v2046 = vrot.slane %v1986, %v2045
        %v2047 = vlaneseq
        %v2048 = vshrl.u32 %v2047, 7
        %v2049 = vsub.s32 0, %v2048
        %v2050 = vrot.slane %v1988, %v2049
        %v2051 = vlaneseq
        %v2052 = vshrl.u32 %v2051, 7
        %v2053 = vsub.s32 0, %v2052
        %v2054 = vrot.slane %v1990, %v2053
        %v2071 = vmul.f32 %v1994, %v763
        %v2072 = vmul.f32 %v1994, %v764
        %v2073 = vmul.f32 %v1998, %v763
        %v2074 = vmul.f32 %v1998, %v764
        %v2075 = vmul.f32 %v2002, %v763
        %v2076 = vmul.f32 %v2002, %v764
        %v2077 = vmul.f32 %v2006, %v763
        %v2078 = vmul.f32 %v2006, %v764
        %v2079 = vmul.f32 %v2010, %v763
        %v2080 = vmul.f32 %v2010, %v764
        %v2081 = vmul.f32 %v2014, %v763
        %v2082 = vmul.f32 %v2014, %v764
        %v2083 = vmul.f32 %v2018, %v763
        %v2084 = vmul.f32 %v2018, %v764
        %v2085 = vmul.f32 %v2022, %v763
        %v2086 = vmul.f32 %v2022, %v764
        %v2087 = vmul.f32 %v2026, %v763
        %v2088 = vmul.f32 %v2026, %v764
        %v2089 = vmul.f32 %v2030, %v763
        %v2090 = vmul.f32 %v2030, %v764
        %v2091 = vmul.f32 %v2034, %v763
        %v2092 = vmul.f32 %v2034, %v764
        %v2093 = vmul.f32 %v2038, %v763
        %v2094 = vmul.f32 %v2038, %v764
        %v2095 = vmul.f32 %v2042, %v763
        %v2096 = vmul.f32 %v2042, %v764
        %v2097 = vmul.f32 %v2046, %v763
        %v2098 = vmul.f32 %v2046, %v764
        %v2099 = vmul.f32 %v2050, %v763
        %v2100 = vmul.f32 %v2050, %v764
        %v2101 = vmul.f32 %v2054, %v763
        %v2102 = vmul.f32 %v2054, %v764
        %v2103 = vadd.f32 %v1859, %v2071
        %v2104 = vadd.f32 %v1860, %v2072
        %v2105 = vadd.f32 %v1861, %v2073
        %v2106 = vadd.f32 %v1862, %v2074
        %v2107 = vadd.f32 %v1863, %v2075
        %v2108 = vadd.f32 %v1864, %v2076
        %v2109 = vadd.f32 %v1865, %v2077
        %v2110 = vadd.f32 %v1866, %v2078
        %v2111 = vadd.f32 %v1867, %v2079
        %v2112 = vadd.f32 %v1868, %v2080
        %v2113 = vadd.f32 %v1869, %v2081
        %v2114 = vadd.f32 %v1870, %v2082
        %v2115 = vadd.f32 %v1871, %v2083
        %v2116 = vadd.f32 %v1872, %v2084
        %v2117 = vadd.f32 %v1873, %v2085
        %v2118 = vadd.f32 %v1874, %v2086
        %v2119 = vadd.f32 %v1875, %v2087
        %v2120 = vadd.f32 %v1876, %v2088
        %v2121 = vadd.f32 %v1877, %v2089
        %v2122 = vadd.f32 %v1878, %v2090
        %v2123 = vadd.f32 %v1879, %v2091
        %v2124 = vadd.f32 %v1880, %v2092
        %v2125 = vadd.f32 %v1881, %v2093
        %v2126 = vadd.f32 %v1882, %v2094
        %v2127 = vadd.f32 %v1883, %v2095
        %v2128 = vadd.f32 %v1884, %v2096
        %v2129 = vadd.f32 %v1885, %v2097
        %v2130 = vadd.f32 %v1886, %v2098
        %v2131 = vadd.f32 %v1887, %v2099
        %v2132 = vadd.f32 %v1888, %v2100
        %v2133 = vadd.f32 %v1889, %v2101
        %v2134 = vadd.f32 %v1890, %v2102
        %v2137 = vcombine.high %v581, %v581
        %v2139 = vunpack.c.l.s4 1966171168
        %v2140 = vunpack.c.0.s8 %v2139
        %v2141 = vlaneseq
        %v2142 = vshrl.u32 %v2141, 7
        %v2143 = vsub.s32 %v2140, %v2142
        %v2144 = vrot.slane %v581, %v2143
        %v2146 = vunpack.c.l.s4 1966171168
        %v2147 = vunpack.c.0.s8 %v2146
        %v2148 = vlaneseq
        %v2149 = vshrl.u32 %v2148, 7
        %v2150 = vsub.s32 %v2147, %v2149
        %v2151 = vrot.slane %v2137, %v2150
        %v2152 = vcombine.high %v2144, %v2144
        %v2153 = vcombine.high %v2151, %v2151
        %v2155 = vunpack.c.l.s4 1966171168
        %v2156 = vunpack.c.0.s8 %v2155
        %v2157 = vlaneseq
        %v2158 = vshrl.u32 %v2157, 7
        %v2159 = vsub.s32 %v2156, %v2158
        %v2160 = vrot.slane %v2144, %v2159
        %v2162 = vunpack.c.l.s4 1966171168
        %v2163 = vunpack.c.0.s8 %v2162
        %v2164 = vlaneseq
        %v2165 = vshrl.u32 %v2164, 7
        %v2166 = vsub.s32 %v2163, %v2165
        %v2167 = vrot.slane %v2151, %v2166
        %v2169 = vunpack.c.l.s4 1966171168
        %v2170 = vunpack.c.0.s8 %v2169
        %v2171 = vlaneseq
        %v2172 = vshrl.u32 %v2171, 7
        %v2173 = vsub.s32 %v2170, %v2172
        %v2174 = vrot.slane %v2152, %v2173
        %v2176 = vunpack.c.l.s4 1966171168
        %v2177 = vunpack.c.0.s8 %v2176
        %v2178 = vlaneseq
        %v2179 = vshrl.u32 %v2178, 7
        %v2180 = vsub.s32 %v2177, %v2179
        %v2181 = vrot.slane %v2153, %v2180
        %v2182 = vcombine.high %v2160, %v2160
        %v2183 = vcombine.high %v2167, %v2167
        %v2184 = vcombine.high %v2174, %v2174
        %v2185 = vcombine.high %v2181, %v2181
        %v2186 = vcombine.high %v582, %v582
        %v2188 = vunpack.c.l.s4 1966171168
        %v2189 = vunpack.c.0.s8 %v2188
        %v2190 = vlaneseq
        %v2191 = vshrl.u32 %v2190, 7
        %v2192 = vsub.s32 %v2189, %v2191
        %v2193 = vrot.slane %v582, %v2192
        %v2195 = vunpack.c.l.s4 1966171168
        %v2196 = vunpack.c.0.s8 %v2195
        %v2197 = vlaneseq
        %v2198 = vshrl.u32 %v2197, 7
        %v2199 = vsub.s32 %v2196, %v2198
        %v2200 = vrot.slane %v2186, %v2199
        %v2201 = vcombine.high %v2193, %v2193
        %v2202 = vcombine.high %v2200, %v2200
        %v2204 = vunpack.c.l.s4 1966171168
        %v2205 = vunpack.c.0.s8 %v2204
        %v2206 = vlaneseq
        %v2207 = vshrl.u32 %v2206, 7
        %v2208 = vsub.s32 %v2205, %v2207
        %v2209 = vrot.slane %v2193, %v2208
        %v2211 = vunpack.c.l.s4 1966171168
        %v2212 = vunpack.c.0.s8 %v2211
        %v2213 = vlaneseq
        %v2214 = vshrl.u32 %v2213, 7
        %v2215 = vsub.s32 %v2212, %v2214
        %v2216 = vrot.slane %v2200, %v2215
        %v2218 = vunpack.c.l.s4 1966171168
        %v2219 = vunpack.c.0.s8 %v2218
        %v2220 = vlaneseq
        %v2221 = vshrl.u32 %v2220, 7
        %v2222 = vsub.s32 %v2219, %v2221
        %v2223 = vrot.slane %v2201, %v2222
        %v2225 = vunpack.c.l.s4 1966171168
        %v2226 = vunpack.c.0.s8 %v2225
        %v2227 = vlaneseq
        %v2228 = vshrl.u32 %v2227, 7
        %v2229 = vsub.s32 %v2226, %v2228
        %v2230 = vrot.slane %v2202, %v2229
        %v2231 = vcombine.high %v2209, %v2209
        %v2232 = vcombine.high %v2216, %v2216
        %v2233 = vcombine.high %v2223, %v2223
        %v2234 = vcombine.high %v2230, %v2230
        %v2235 = vlaneseq
        %v2236 = vshrl.u32 %v2235, 7
        %v2237 = vsub.s32 0, %v2236
        %v2238 = vrot.slane %v2160, %v2237
        %v2239 = vlaneseq
        %v2240 = vshrl.u32 %v2239, 7
        %v2241 = vsub.s32 0, %v2240
        %v2242 = vrot.slane %v2174, %v2241
        %v2243 = vlaneseq
        %v2244 = vshrl.u32 %v2243, 7
        %v2245 = vsub.s32 0, %v2244
        %v2246 = vrot.slane %v2182, %v2245
        %v2247 = vlaneseq
        %v2248 = vshrl.u32 %v2247, 7
        %v2249 = vsub.s32 0, %v2248
        %v2250 = vrot.slane %v2184, %v2249
        %v2251 = vlaneseq
        %v2252 = vshrl.u32 %v2251, 7
        %v2253 = vsub.s32 0, %v2252
        %v2254 = vrot.slane %v2167, %v2253
        %v2255 = vlaneseq
        %v2256 = vshrl.u32 %v2255, 7
        %v2257 = vsub.s32 0, %v2256
        %v2258 = vrot.slane %v2181, %v2257
        %v2259 = vlaneseq
        %v2260 = vshrl.u32 %v2259, 7
        %v2261 = vsub.s32 0, %v2260
        %v2262 = vrot.slane %v2183, %v2261
        %v2263 = vlaneseq
        %v2264 = vshrl.u32 %v2263, 7
        %v2265 = vsub.s32 0, %v2264
        %v2266 = vrot.slane %v2185, %v2265
        %v2267 = vlaneseq
        %v2268 = vshrl.u32 %v2267, 7
        %v2269 = vsub.s32 0, %v2268
        %v2270 = vrot.slane %v2209, %v2269
        %v2271 = vlaneseq
        %v2272 = vshrl.u32 %v2271, 7
        %v2273 = vsub.s32 0, %v2272
        %v2274 = vrot.slane %v2223, %v2273
        %v2275 = vlaneseq
        %v2276 = vshrl.u32 %v2275, 7
        %v2277 = vsub.s32 0, %v2276
        %v2278 = vrot.slane %v2231, %v2277
        %v2279 = vlaneseq
        %v2280 = vshrl.u32 %v2279, 7
        %v2281 = vsub.s32 0, %v2280
        %v2282 = vrot.slane %v2233, %v2281
        %v2283 = vlaneseq
        %v2284 = vshrl.u32 %v2283, 7
        %v2285 = vsub.s32 0, %v2284
        %v2286 = vrot.slane %v2216, %v2285
        %v2287 = vlaneseq
        %v2288 = vshrl.u32 %v2287, 7
        %v2289 = vsub.s32 0, %v2288
        %v2290 = vrot.slane %v2230, %v2289
        %v2291 = vlaneseq
        %v2292 = vshrl.u32 %v2291, 7
        %v2293 = vsub.s32 0, %v2292
        %v2294 = vrot.slane %v2232, %v2293
        %v2295 = vlaneseq
        %v2296 = vshrl.u32 %v2295, 7
        %v2297 = vsub.s32 0, %v2296
        %v2298 = vrot.slane %v2234, %v2297
        %v2315 = vmul.f32 %v2238, %v789
        %v2316 = vmul.f32 %v2238, %v790
        %v2317 = vmul.f32 %v2242, %v789
        %v2318 = vmul.f32 %v2242, %v790
        %v2319 = vmul.f32 %v2246, %v789
        %v2320 = vmul.f32 %v2246, %v790
        %v2321 = vmul.f32 %v2250, %v789
        %v2322 = vmul.f32 %v2250, %v790
        %v2323 = vmul.f32 %v2254, %v789
        %v2324 = vmul.f32 %v2254, %v790
        %v2325 = vmul.f32 %v2258, %v789
        %v2326 = vmul.f32 %v2258, %v790
        %v2327 = vmul.f32 %v2262, %v789
        %v2328 = vmul.f32 %v2262, %v790
        %v2329 = vmul.f32 %v2266, %v789
        %v2330 = vmul.f32 %v2266, %v790
        %v2331 = vmul.f32 %v2270, %v789
        %v2332 = vmul.f32 %v2270, %v790
        %v2333 = vmul.f32 %v2274, %v789
        %v2334 = vmul.f32 %v2274, %v790
        %v2335 = vmul.f32 %v2278, %v789
        %v2336 = vmul.f32 %v2278, %v790
        %v2337 = vmul.f32 %v2282, %v789
        %v2338 = vmul.f32 %v2282, %v790
        %v2339 = vmul.f32 %v2286, %v789
        %v2340 = vmul.f32 %v2286, %v790
        %v2341 = vmul.f32 %v2290, %v789
        %v2342 = vmul.f32 %v2290, %v790
        %v2343 = vmul.f32 %v2294, %v789
        %v2344 = vmul.f32 %v2294, %v790
        %v2345 = vmul.f32 %v2298, %v789
        %v2346 = vmul.f32 %v2298, %v790
        %v2347 = vadd.f32 %v2103, %v2315
        %v2348 = vadd.f32 %v2104, %v2316
        %v2349 = vadd.f32 %v2105, %v2317
        %v2350 = vadd.f32 %v2106, %v2318
        %v2351 = vadd.f32 %v2107, %v2319
        %v2352 = vadd.f32 %v2108, %v2320
        %v2353 = vadd.f32 %v2109, %v2321
        %v2354 = vadd.f32 %v2110, %v2322
        %v2355 = vadd.f32 %v2111, %v2323
        %v2356 = vadd.f32 %v2112, %v2324
        %v2357 = vadd.f32 %v2113, %v2325
        %v2358 = vadd.f32 %v2114, %v2326
        %v2359 = vadd.f32 %v2115, %v2327
        %v2360 = vadd.f32 %v2116, %v2328
        %v2361 = vadd.f32 %v2117, %v2329
        %v2362 = vadd.f32 %v2118, %v2330
        %v2363 = vadd.f32 %v2119, %v2331
        %v2364 = vadd.f32 %v2120, %v2332
        %v2365 = vadd.f32 %v2121, %v2333
        %v2366 = vadd.f32 %v2122, %v2334
        %v2367 = vadd.f32 %v2123, %v2335
        %v2368 = vadd.f32 %v2124, %v2336
        %v2369 = vadd.f32 %v2125, %v2337
        %v2370 = vadd.f32 %v2126, %v2338
        %v2371 = vadd.f32 %v2127, %v2339
        %v2372 = vadd.f32 %v2128, %v2340
        %v2373 = vadd.f32 %v2129, %v2341
        %v2374 = vadd.f32 %v2130, %v2342
        %v2375 = vadd.f32 %v2131, %v2343
        %v2376 = vadd.f32 %v2132, %v2344
        %v2377 = vadd.f32 %v2133, %v2345
        %v2378 = vadd.f32 %v2134, %v2346
        %v2381 = vcombine.high %v607, %v607
        %v2383 = vunpack.c.l.s4 1966171168
        %v2384 = vunpack.c.0.s8 %v2383
        %v2385 = vlaneseq
        %v2386 = vshrl.u32 %v2385, 7
        %v2387 = vsub.s32 %v2384, %v2386
        %v2388 = vrot.slane %v607, %v2387
        %v2390 = vunpack.c.l.s4 1966171168
        %v2391 = vunpack.c.0.s8 %v2390
        %v2392 = vlaneseq
        %v2393 = vshrl.u32 %v2392, 7
        %v2394 = vsub.s32 %v2391, %v2393
        %v2395 = vrot.slane %v2381, %v2394
        %v2396 = vcombine.high %v2388, %v2388
        %v2397 = vcombine.high %v2395, %v2395
        %v2399 = vunpack.c.l.s4 1966171168
        %v2400 = vunpack.c.0.s8 %v2399
        %v2401 = vlaneseq
        %v2402 = vshrl.u32 %v2401, 7
        %v2403 = vsub.s32 %v2400, %v2402
        %v2404 = vrot.slane %v2388, %v2403
        %v2406 = vunpack.c.l.s4 1966171168
        %v2407 = vunpack.c.0.s8 %v2406
        %v2408 = vlaneseq
        %v2409 = vshrl.u32 %v2408, 7
        %v2410 = vsub.s32 %v2407, %v2409
        %v2411 = vrot.slane %v2395, %v2410
        %v2413 = vunpack.c.l.s4 1966171168
        %v2414 = vunpack.c.0.s8 %v2413
        %v2415 = vlaneseq
        %v2416 = vshrl.u32 %v2415, 7
        %v2417 = vsub.s32 %v2414, %v2416
        %v2418 = vrot.slane %v2396, %v2417
        %v2420 = vunpack.c.l.s4 1966171168
        %v2421 = vunpack.c.0.s8 %v2420
        %v2422 = vlaneseq
        %v2423 = vshrl.u32 %v2422, 7
        %v2424 = vsub.s32 %v2421, %v2423
        %v2425 = vrot.slane %v2397, %v2424
        %v2426 = vcombine.high %v2404, %v2404
        %v2427 = vcombine.high %v2411, %v2411
        %v2428 = vcombine.high %v2418, %v2418
        %v2429 = vcombine.high %v2425, %v2425
        %v2430 = vcombine.high %v608, %v608
        %v2432 = vunpack.c.l.s4 1966171168
        %v2433 = vunpack.c.0.s8 %v2432
        %v2434 = vlaneseq
        %v2435 = vshrl.u32 %v2434, 7
        %v2436 = vsub.s32 %v2433, %v2435
        %v2437 = vrot.slane %v608, %v2436
        %v2439 = vunpack.c.l.s4 1966171168
        %v2440 = vunpack.c.0.s8 %v2439
        %v2441 = vlaneseq
        %v2442 = vshrl.u32 %v2441, 7
        %v2443 = vsub.s32 %v2440, %v2442
        %v2444 = vrot.slane %v2430, %v2443
        %v2445 = vcombine.high %v2437, %v2437
        %v2446 = vcombine.high %v2444, %v2444
        %v2448 = vunpack.c.l.s4 1966171168
        %v2449 = vunpack.c.0.s8 %v2448
        %v2450 = vlaneseq
        %v2451 = vshrl.u32 %v2450, 7
        %v2452 = vsub.s32 %v2449, %v2451
        %v2453 = vrot.slane %v2437, %v2452
        %v2455 = vunpack.c.l.s4 1966171168
        %v2456 = vunpack.c.0.s8 %v2455
        %v2457 = vlaneseq
        %v2458 = vshrl.u32 %v2457, 7
        %v2459 = vsub.s32 %v2456, %v2458
        %v2460 = vrot.slane %v2444, %v2459
        %v2462 = vunpack.c.l.s4 1966171168
        %v2463 = vunpack.c.0.s8 %v2462
        %v2464 = vlaneseq
        %v2465 = vshrl.u32 %v2464, 7
        %v2466 = vsub.s32 %v2463, %v2465
        %v2467 = vrot.slane %v2445, %v2466
        %v2469 = vunpack.c.l.s4 1966171168
        %v2470 = vunpack.c.0.s8 %v2469
        %v2471 = vlaneseq
        %v2472 = vshrl.u32 %v2471, 7
        %v2473 = vsub.s32 %v2470, %v2472
        %v2474 = vrot.slane %v2446, %v2473
        %v2475 = vcombine.high %v2453, %v2453
        %v2476 = vcombine.high %v2460, %v2460
        %v2477 = vcombine.high %v2467, %v2467
        %v2478 = vcombine.high %v2474, %v2474
        %v2479 = vlaneseq
        %v2480 = vshrl.u32 %v2479, 7
        %v2481 = vsub.s32 0, %v2480
        %v2482 = vrot.slane %v2404, %v2481
        %v2483 = vlaneseq
        %v2484 = vshrl.u32 %v2483, 7
        %v2485 = vsub.s32 0, %v2484
        %v2486 = vrot.slane %v2418, %v2485
        %v2487 = vlaneseq
        %v2488 = vshrl.u32 %v2487, 7
        %v2489 = vsub.s32 0, %v2488
        %v2490 = vrot.slane %v2426, %v2489
        %v2491 = vlaneseq
        %v2492 = vshrl.u32 %v2491, 7
        %v2493 = vsub.s32 0, %v2492
        %v2494 = vrot.slane %v2428, %v2493
        %v2495 = vlaneseq
        %v2496 = vshrl.u32 %v2495, 7
        %v2497 = vsub.s32 0, %v2496
        %v2498 = vrot.slane %v2411, %v2497
        %v2499 = vlaneseq
        %v2500 = vshrl.u32 %v2499, 7
        %v2501 = vsub.s32 0, %v2500
        %v2502 = vrot.slane %v2425, %v2501
        %v2503 = vlaneseq
        %v2504 = vshrl.u32 %v2503, 7
        %v2505 = vsub.s32 0, %v2504
        %v2506 = vrot.slane %v2427, %v2505
        %v2507 = vlaneseq
        %v2508 = vshrl.u32 %v2507, 7
        %v2509 = vsub.s32 0, %v2508
        %v2510 = vrot.slane %v2429, %v2509
        %v2511 = vlaneseq
        %v2512 = vshrl.u32 %v2511, 7
        %v2513 = vsub.s32 0, %v2512
        %v2514 = vrot.slane %v2453, %v2513
        %v2515 = vlaneseq
        %v2516 = vshrl.u32 %v2515, 7
        %v2517 = vsub.s32 0, %v2516
        %v2518 = vrot.slane %v2467, %v2517
        %v2519 = vlaneseq
        %v2520 = vshrl.u32 %v2519, 7
        %v2521 = vsub.s32 0, %v2520
        %v2522 = vrot.slane %v2475, %v2521
        %v2523 = vlaneseq
        %v2524 = vshrl.u32 %v2523, 7
        %v2525 = vsub.s32 0, %v2524
        %v2526 = vrot.slane %v2477, %v2525
        %v2527 = vlaneseq
        %v2528 = vshrl.u32 %v2527, 7
        %v2529 = vsub.s32 0, %v2528
        %v2530 = vrot.slane %v2460, %v2529
        %v2531 = vlaneseq
        %v2532 = vshrl.u32 %v2531, 7
        %v2533 = vsub.s32 0, %v2532
        %v2534 = vrot.slane %v2474, %v2533
        %v2535 = vlaneseq
        %v2536 = vshrl.u32 %v2535, 7
        %v2537 = vsub.s32 0, %v2536
        %v2538 = vrot.slane %v2476, %v2537
        %v2539 = vlaneseq
        %v2540 = vshrl.u32 %v2539, 7
        %v2541 = vsub.s32 0, %v2540
        %v2542 = vrot.slane %v2478, %v2541
        %v2559 = vmul.f32 %v2482, %v815
        %v2560 = vmul.f32 %v2482, %v816
        %v2561 = vmul.f32 %v2486, %v815
        %v2562 = vmul.f32 %v2486, %v816
        %v2563 = vmul.f32 %v2490, %v815
        %v2564 = vmul.f32 %v2490, %v816
        %v2565 = vmul.f32 %v2494, %v815
        %v2566 = vmul.f32 %v2494, %v816
        %v2567 = vmul.f32 %v2498, %v815
        %v2568 = vmul.f32 %v2498, %v816
        %v2569 = vmul.f32 %v2502, %v815
        %v2570 = vmul.f32 %v2502, %v816
        %v2571 = vmul.f32 %v2506, %v815
        %v2572 = vmul.f32 %v2506, %v816
        %v2573 = vmul.f32 %v2510, %v815
        %v2574 = vmul.f32 %v2510, %v816
        %v2575 = vmul.f32 %v2514, %v815
        %v2576 = vmul.f32 %v2514, %v816
        %v2577 = vmul.f32 %v2518, %v815
        %v2578 = vmul.f32 %v2518, %v816
        %v2579 = vmul.f32 %v2522, %v815
        %v2580 = vmul.f32 %v2522, %v816
        %v2581 = vmul.f32 %v2526, %v815
        %v2582 = vmul.f32 %v2526, %v816
        %v2583 = vmul.f32 %v2530, %v815
        %v2584 = vmul.f32 %v2530, %v816
        %v2585 = vmul.f32 %v2534, %v815
        %v2586 = vmul.f32 %v2534, %v816
        %v2587 = vmul.f32 %v2538, %v815
        %v2588 = vmul.f32 %v2538, %v816
        %v2589 = vmul.f32 %v2542, %v815
        %v2590 = vmul.f32 %v2542, %v816
        %v2591 = vadd.f32 %v2347, %v2559
        %v2592 = vadd.f32 %v2348, %v2560
        %v2593 = vadd.f32 %v2349, %v2561
        %v2594 = vadd.f32 %v2350, %v2562
        %v2595 = vadd.f32 %v2351, %v2563
        %v2596 = vadd.f32 %v2352, %v2564
        %v2597 = vadd.f32 %v2353, %v2565
        %v2598 = vadd.f32 %v2354, %v2566
        %v2599 = vadd.f32 %v2355, %v2567
        %v2600 = vadd.f32 %v2356, %v2568
        %v2601 = vadd.f32 %v2357, %v2569
        %v2602 = vadd.f32 %v2358, %v2570
        %v2603 = vadd.f32 %v2359, %v2571
        %v2604 = vadd.f32 %v2360, %v2572
        %v2605 = vadd.f32 %v2361, %v2573
        %v2606 = vadd.f32 %v2362, %v2574
        %v2607 = vadd.f32 %v2363, %v2575
        %v2608 = vadd.f32 %v2364, %v2576
        %v2609 = vadd.f32 %v2365, %v2577
        %v2610 = vadd.f32 %v2366, %v2578
        %v2611 = vadd.f32 %v2367, %v2579
        %v2612 = vadd.f32 %v2368, %v2580
        %v2613 = vadd.f32 %v2369, %v2581
        %v2614 = vadd.f32 %v2370, %v2582
        %v2615 = vadd.f32 %v2371, %v2583
        %v2616 = vadd.f32 %v2372, %v2584
        %v2617 = vadd.f32 %v2373, %v2585
        %v2618 = vadd.f32 %v2374, %v2586
        %v2619 = vadd.f32 %v2375, %v2587
        %v2620 = vadd.f32 %v2376, %v2588
        %v2621 = vadd.f32 %v2377, %v2589
        %v2622 = vadd.f32 %v2378, %v2590
        %v2625 = vcombine.high %v633, %v633
        %v2627 = vunpack.c.l.s4 1966171168
        %v2628 = vunpack.c.0.s8 %v2627
        %v2629 = vlaneseq
        %v2630 = vshrl.u32 %v2629, 7
        %v2631 = vsub.s32 %v2628, %v2630
        %v2632 = vrot.slane %v633, %v2631
        %v2634 = vunpack.c.l.s4 1966171168
        %v2635 = vunpack.c.0.s8 %v2634
        %v2636 = vlaneseq
        %v2637 = vshrl.u32 %v2636, 7
        %v2638 = vsub.s32 %v2635, %v2637
        %v2639 = vrot.slane %v2625, %v2638
        %v2640 = vcombine.high %v2632, %v2632
        %v2641 = vcombine.high %v2639, %v2639
        %v2643 = vunpack.c.l.s4 1966171168
        %v2644 = vunpack.c.0.s8 %v2643
        %v2645 = vlaneseq
        %v2646 = vshrl.u32 %v2645, 7
        %v2647 = vsub.s32 %v2644, %v2646
        %v2648 = vrot.slane %v2632, %v2647
        %v2650 = vunpack.c.l.s4 1966171168
        %v2651 = vunpack.c.0.s8 %v2650
        %v2652 = vlaneseq
        %v2653 = vshrl.u32 %v2652, 7
        %v2654 = vsub.s32 %v2651, %v2653
        %v2655 = vrot.slane %v2639, %v2654
        %v2657 = vunpack.c.l.s4 1966171168
        %v2658 = vunpack.c.0.s8 %v2657
        %v2659 = vlaneseq
        %v2660 = vshrl.u32 %v2659, 7
        %v2661 = vsub.s32 %v2658, %v2660
        %v2662 = vrot.slane %v2640, %v2661
        %v2664 = vunpack.c.l.s4 1966171168
        %v2665 = vunpack.c.0.s8 %v2664
        %v2666 = vlaneseq
        %v2667 = vshrl.u32 %v2666, 7
        %v2668 = vsub.s32 %v2665, %v2667
        %v2669 = vrot.slane %v2641, %v2668
        %v2670 = vcombine.high %v2648, %v2648
        %v2671 = vcombine.high %v2655, %v2655
        %v2672 = vcombine.high %v2662, %v2662
        %v2673 = vcombine.high %v2669, %v2669
        %v2674 = vcombine.high %v634, %v634
        %v2676 = vunpack.c.l.s4 1966171168
        %v2677 = vunpack.c.0.s8 %v2676
        %v2678 = vlaneseq
        %v2679 = vshrl.u32 %v2678, 7
        %v2680 = vsub.s32 %v2677, %v2679
        %v2681 = vrot.slane %v634, %v2680
        %v2683 = vunpack.c.l.s4 1966171168
        %v2684 = vunpack.c.0.s8 %v2683
        %v2685 = vlaneseq
        %v2686 = vshrl.u32 %v2685, 7
        %v2687 = vsub.s32 %v2684, %v2686
        %v2688 = vrot.slane %v2674, %v2687
        %v2689 = vcombine.high %v2681, %v2681
        %v2690 = vcombine.high %v2688, %v2688
        %v2692 = vunpack.c.l.s4 1966171168
        %v2693 = vunpack.c.0.s8 %v2692
        %v2694 = vlaneseq
        %v2695 = vshrl.u32 %v2694, 7
        %v2696 = vsub.s32 %v2693, %v2695
        %v2697 = vrot.slane %v2681, %v2696
        %v2699 = vunpack.c.l.s4 1966171168
        %v2700 = vunpack.c.0.s8 %v2699
        %v2701 = vlaneseq
        %v2702 = vshrl.u32 %v2701, 7
        %v2703 = vsub.s32 %v2700, %v2702
        %v2704 = vrot.slane %v2688, %v2703
        %v2706 = vunpack.c.l.s4 1966171168
        %v2707 = vunpack.c.0.s8 %v2706
        %v2708 = vlaneseq
        %v2709 = vshrl.u32 %v2708, 7
        %v2710 = vsub.s32 %v2707, %v2709
        %v2711 = vrot.slane %v2689, %v2710
        %v2713 = vunpack.c.l.s4 1966171168
        %v2714 = vunpack.c.0.s8 %v2713
        %v2715 = vlaneseq
        %v2716 = vshrl.u32 %v2715, 7
        %v2717 = vsub.s32 %v2714, %v2716
        %v2718 = vrot.slane %v2690, %v2717
        %v2719 = vcombine.high %v2697, %v2697
        %v2720 = vcombine.high %v2704, %v2704
        %v2721 = vcombine.high %v2711, %v2711
        %v2722 = vcombine.high %v2718, %v2718
        %v2723 = vlaneseq
        %v2724 = vshrl.u32 %v2723, 7
        %v2725 = vsub.s32 0, %v2724
        %v2726 = vrot.slane %v2648, %v2725
        %v2727 = vlaneseq
        %v2728 = vshrl.u32 %v2727, 7
        %v2729 = vsub.s32 0, %v2728
        %v2730 = vrot.slane %v2662, %v2729
        %v2731 = vlaneseq
        %v2732 = vshrl.u32 %v2731, 7
        %v2733 = vsub.s32 0, %v2732
        %v2734 = vrot.slane %v2670, %v2733
        %v2735 = vlaneseq
        %v2736 = vshrl.u32 %v2735, 7
        %v2737 = vsub.s32 0, %v2736
        %v2738 = vrot.slane %v2672, %v2737
        %v2739 = vlaneseq
        %v2740 = vshrl.u32 %v2739, 7
        %v2741 = vsub.s32 0, %v2740
        %v2742 = vrot.slane %v2655, %v2741
        %v2743 = vlaneseq
        %v2744 = vshrl.u32 %v2743, 7
        %v2745 = vsub.s32 0, %v2744
        %v2746 = vrot.slane %v2669, %v2745
        %v2747 = vlaneseq
        %v2748 = vshrl.u32 %v2747, 7
        %v2749 = vsub.s32 0, %v2748
        %v2750 = vrot.slane %v2671, %v2749
        %v2751 = vlaneseq
        %v2752 = vshrl.u32 %v2751, 7
        %v2753 = vsub.s32 0, %v2752
        %v2754 = vrot.slane %v2673, %v2753
        %v2755 = vlaneseq
        %v2756 = vshrl.u32 %v2755, 7
        %v2757 = vsub.s32 0, %v2756
        %v2758 = vrot.slane %v2697, %v2757
        %v2759 = vlaneseq
        %v2760 = vshrl.u32 %v2759, 7
        %v2761 = vsub.s32 0, %v2760
        %v2762 = vrot.slane %v2711, %v2761
        %v2763 = vlaneseq
        %v2764 = vshrl.u32 %v2763, 7
        %v2765 = vsub.s32 0, %v2764
        %v2766 = vrot.slane %v2719, %v2765
        %v2767 = vlaneseq
        %v2768 = vshrl.u32 %v2767, 7
        %v2769 = vsub.s32 0, %v2768
        %v2770 = vrot.slane %v2721, %v2769
        %v2771 = vlaneseq
        %v2772 = vshrl.u32 %v2771, 7
        %v2773 = vsub.s32 0, %v2772
        %v2774 = vrot.slane %v2704, %v2773
        %v2775 = vlaneseq
        %v2776 = vshrl.u32 %v2775, 7
        %v2777 = vsub.s32 0, %v2776
        %v2778 = vrot.slane %v2718, %v2777
        %v2779 = vlaneseq
        %v2780 = vshrl.u32 %v2779, 7
        %v2781 = vsub.s32 0, %v2780
        %v2782 = vrot.slane %v2720, %v2781
        %v2783 = vlaneseq
        %v2784 = vshrl.u32 %v2783, 7
        %v2785 = vsub.s32 0, %v2784
        %v2786 = vrot.slane %v2722, %v2785
        %v2803 = vmul.f32 %v2726, %v841
        %v2804 = vmul.f32 %v2726, %v842
        %v2805 = vmul.f32 %v2730, %v841
        %v2806 = vmul.f32 %v2730, %v842
        %v2807 = vmul.f32 %v2734, %v841
        %v2808 = vmul.f32 %v2734, %v842
        %v2809 = vmul.f32 %v2738, %v841
        %v2810 = vmul.f32 %v2738, %v842
        %v2811 = vmul.f32 %v2742, %v841
        %v2812 = vmul.f32 %v2742, %v842
        %v2813 = vmul.f32 %v2746, %v841
        %v2814 = vmul.f32 %v2746, %v842
        %v2815 = vmul.f32 %v2750, %v841
        %v2816 = vmul.f32 %v2750, %v842
        %v2817 = vmul.f32 %v2754, %v841
        %v2818 = vmul.f32 %v2754, %v842
        %v2819 = vmul.f32 %v2758, %v841
        %v2820 = vmul.f32 %v2758, %v842
        %v2821 = vmul.f32 %v2762, %v841
        %v2822 = vmul.f32 %v2762, %v842
        %v2823 = vmul.f32 %v2766, %v841
        %v2824 = vmul.f32 %v2766, %v842
        %v2825 = vmul.f32 %v2770, %v841
        %v2826 = vmul.f32 %v2770, %v842
        %v2827 = vmul.f32 %v2774, %v841
        %v2828 = vmul.f32 %v2774, %v842
        %v2829 = vmul.f32 %v2778, %v841
        %v2830 = vmul.f32 %v2778, %v842
        %v2831 = vmul.f32 %v2782, %v841
        %v2832 = vmul.f32 %v2782, %v842
        %v2833 = vmul.f32 %v2786, %v841
        %v2834 = vmul.f32 %v2786, %v842
        %v2835 = vadd.f32 %v2591, %v2803
        %v2836 = vadd.f32 %v2592, %v2804
        %v2837 = vadd.f32 %v2593, %v2805
        %v2838 = vadd.f32 %v2594, %v2806
        %v2839 = vadd.f32 %v2595, %v2807
        %v2840 = vadd.f32 %v2596, %v2808
        %v2841 = vadd.f32 %v2597, %v2809
        %v2842 = vadd.f32 %v2598, %v2810
        %v2843 = vadd.f32 %v2599, %v2811
        %v2844 = vadd.f32 %v2600, %v2812
        %v2845 = vadd.f32 %v2601, %v2813
        %v2846 = vadd.f32 %v2602, %v2814
        %v2847 = vadd.f32 %v2603, %v2815
        %v2848 = vadd.f32 %v2604, %v2816
        %v2849 = vadd.f32 %v2605, %v2817
        %v2850 = vadd.f32 %v2606, %v2818
        %v2851 = vadd.f32 %v2607, %v2819
        %v2852 = vadd.f32 %v2608, %v2820
        %v2853 = vadd.f32 %v2609, %v2821
        %v2854 = vadd.f32 %v2610, %v2822
        %v2855 = vadd.f32 %v2611, %v2823
        %v2856 = vadd.f32 %v2612, %v2824
        %v2857 = vadd.f32 %v2613, %v2825
        %v2858 = vadd.f32 %v2614, %v2826
        %v2859 = vadd.f32 %v2615, %v2827
        %v2860 = vadd.f32 %v2616, %v2828
        %v2861 = vadd.f32 %v2617, %v2829
        %v2862 = vadd.f32 %v2618, %v2830
        %v2863 = vadd.f32 %v2619, %v2831
        %v2864 = vadd.f32 %v2620, %v2832
        %v2865 = vadd.f32 %v2621, %v2833
        %v2866 = vadd.f32 %v2622, %v2834
        %vm2867 = vcmask 130048
        %v2868 = vsel %vm2867, %v2835, -inf
        %v2869 = vsel %vm2867, %v2836, -inf
        %v2870 = vmax.f32 %v2868, %v2869
        %v2871 = vrot.slane %v2870, 4
        %v2872 = vmax.f32 %v2870, %v2871
        %v2873 = vrot.slane %v2872, 2
        %v2874 = vmax.f32 %v2872, %v2873
        %v2875 = vrot.slane %v2874, 1
        %v2876 = vmax.f32 %v2874, %v2875
        %v2877 = vsel %vm2867, %v2837, -inf
        %v2878 = vsel %vm2867, %v2838, -inf
        %v2879 = vmax.f32 %v2877, %v2878
        %v2880 = vrot.slane %v2879, 4
        %v2881 = vmax.f32 %v2879, %v2880
        %v2882 = vrot.slane %v2881, 2
        %v2883 = vmax.f32 %v2881, %v2882
        %v2884 = vrot.slane %v2883, 1
        %v2885 = vmax.f32 %v2883, %v2884
        %v2886 = vsel %vm2867, %v2839, -inf
        %v2887 = vsel %vm2867, %v2840, -inf
        %v2888 = vmax.f32 %v2886, %v2887
        %v2889 = vrot.slane %v2888, 4
        %v2890 = vmax.f32 %v2888, %v2889
        %v2891 = vrot.slane %v2890, 2
        %v2892 = vmax.f32 %v2890, %v2891
        %v2893 = vrot.slane %v2892, 1
        %v2894 = vmax.f32 %v2892, %v2893
        %v2895 = vsel %vm2867, %v2841, -inf
        %v2896 = vsel %vm2867, %v2842, -inf
        %v2897 = vmax.f32 %v2895, %v2896
        %v2898 = vrot.slane %v2897, 4
        %v2899 = vmax.f32 %v2897, %v2898
        %v2900 = vrot.slane %v2899, 2
        %v2901 = vmax.f32 %v2899, %v2900
        %v2902 = vrot.slane %v2901, 1
        %v2903 = vmax.f32 %v2901, %v2902
        %v2904 = vsel %vm2867, %v2843, -inf
        %v2905 = vsel %vm2867, %v2844, -inf
        %v2906 = vmax.f32 %v2904, %v2905
        %v2907 = vrot.slane %v2906, 4
        %v2908 = vmax.f32 %v2906, %v2907
        %v2909 = vrot.slane %v2908, 2
        %v2910 = vmax.f32 %v2908, %v2909
        %v2911 = vrot.slane %v2910, 1
        %v2912 = vmax.f32 %v2910, %v2911
        %v2913 = vsel %vm2867, %v2845, -inf
        %v2914 = vsel %vm2867, %v2846, -inf
        %v2915 = vmax.f32 %v2913, %v2914
        %v2916 = vrot.slane %v2915, 4
        %v2917 = vmax.f32 %v2915, %v2916
        %v2918 = vrot.slane %v2917, 2
        %v2919 = vmax.f32 %v2917, %v2918
        %v2920 = vrot.slane %v2919, 1
        %v2921 = vmax.f32 %v2919, %v2920
        %v2922 = vsel %vm2867, %v2847, -inf
        %v2923 = vsel %vm2867, %v2848, -inf
        %v2924 = vmax.f32 %v2922, %v2923
        %v2925 = vrot.slane %v2924, 4
        %v2926 = vmax.f32 %v2924, %v2925
        %v2927 = vrot.slane %v2926, 2
        %v2928 = vmax.f32 %v2926, %v2927
        %v2929 = vrot.slane %v2928, 1
        %v2930 = vmax.f32 %v2928, %v2929
        %v2931 = vsel %vm2867, %v2849, -inf
        %v2932 = vsel %vm2867, %v2850, -inf
        %v2933 = vmax.f32 %v2931, %v2932
        %v2934 = vrot.slane %v2933, 4
        %v2935 = vmax.f32 %v2933, %v2934
        %v2936 = vrot.slane %v2935, 2
        %v2937 = vmax.f32 %v2935, %v2936
        %v2938 = vrot.slane %v2937, 1
        %v2939 = vmax.f32 %v2937, %v2938
        %v2940 = vsel %vm2867, %v2851, -inf
        %v2941 = vsel %vm2867, %v2852, -inf
        %v2942 = vmax.f32 %v2940, %v2941
        %v2943 = vrot.slane %v2942, 4
        %v2944 = vmax.f32 %v2942, %v2943
        %v2945 = vrot.slane %v2944, 2
        %v2946 = vmax.f32 %v2944, %v2945
        %v2947 = vrot.slane %v2946, 1
        %v2948 = vmax.f32 %v2946, %v2947
        %v2949 = vsel %vm2867, %v2853, -inf
        %v2950 = vsel %vm2867, %v2854, -inf
        %v2951 = vmax.f32 %v2949, %v2950
        %v2952 = vrot.slane %v2951, 4
        %v2953 = vmax.f32 %v2951, %v2952
        %v2954 = vrot.slane %v2953, 2
        %v2955 = vmax.f32 %v2953, %v2954
        %v2956 = vrot.slane %v2955, 1
        %v2957 = vmax.f32 %v2955, %v2956
        %v2958 = vsel %vm2867, %v2855, -inf
        %v2959 = vsel %vm2867, %v2856, -inf
        %v2960 = vmax.f32 %v2958, %v2959
        %v2961 = vrot.slane %v2960, 4
        %v2962 = vmax.f32 %v2960, %v2961
        %v2963 = vrot.slane %v2962, 2
        %v2964 = vmax.f32 %v2962, %v2963
        %v2965 = vrot.slane %v2964, 1
        %v2966 = vmax.f32 %v2964, %v2965
        %v2967 = vsel %vm2867, %v2857, -inf
        %v2968 = vsel %vm2867, %v2858, -inf
        %v2969 = vmax.f32 %v2967, %v2968
        %v2970 = vrot.slane %v2969, 4
        %v2971 = vmax.f32 %v2969, %v2970
        %v2972 = vrot.slane %v2971, 2
        %v2973 = vmax.f32 %v2971, %v2972
        %v2974 = vrot.slane %v2973, 1
        %v2975 = vmax.f32 %v2973, %v2974
        %v2976 = vsel %vm2867, %v2859, -inf
        %v2977 = vsel %vm2867, %v2860, -inf
        %v2978 = vmax.f32 %v2976, %v2977
        %v2979 = vrot.slane %v2978, 4
        %v2980 = vmax.f32 %v2978, %v2979
        %v2981 = vrot.slane %v2980, 2
        %v2982 = vmax.f32 %v2980, %v2981
        %v2983 = vrot.slane %v2982, 1
        %v2984 = vmax.f32 %v2982, %v2983
        %v2985 = vsel %vm2867, %v2861, -inf
        %v2986 = vsel %vm2867, %v2862, -inf
        %v2987 = vmax.f32 %v2985, %v2986
        %v2988 = vrot.slane %v2987, 4
        %v2989 = vmax.f32 %v2987, %v2988
        %v2990 = vrot.slane %v2989, 2
        %v2991 = vmax.f32 %v2989, %v2990
        %v2992 = vrot.slane %v2991, 1
        %v2993 = vmax.f32 %v2991, %v2992
        %v2994 = vsel %vm2867, %v2863, -inf
        %v2995 = vsel %vm2867, %v2864, -inf
        %v2996 = vmax.f32 %v2994, %v2995
        %v2997 = vrot.slane %v2996, 4
        %v2998 = vmax.f32 %v2996, %v2997
        %v2999 = vrot.slane %v2998, 2
        %v3000 = vmax.f32 %v2998, %v2999
        %v3001 = vrot.slane %v3000, 1
        %v3002 = vmax.f32 %v3000, %v3001
        %v3003 = vsel %vm2867, %v2865, -inf
        %v3004 = vsel %vm2867, %v2866, -inf
        %v3005 = vmax.f32 %v3003, %v3004
        %v3006 = vrot.slane %v3005, 4
        %v3007 = vmax.f32 %v3005, %v3006
        %v3008 = vrot.slane %v3007, 2
        %v3009 = vmax.f32 %v3007, %v3008
        %v3010 = vrot.slane %v3009, 1
        %v3011 = vmax.f32 %v3009, %v3010
        %v3012 = vsub.f32 %v2835, %v2876
        %v3013 = vsub.f32 %v2836, %v2876
        %v3014 = vsub.f32 %v2837, %v2885
        %v3015 = vsub.f32 %v2838, %v2885
        %v3016 = vsub.f32 %v2839, %v2894
        %v3017 = vsub.f32 %v2840, %v2894
        %v3018 = vsub.f32 %v2841, %v2903
        %v3019 = vsub.f32 %v2842, %v2903
        %v3020 = vsub.f32 %v2843, %v2912
        %v3021 = vsub.f32 %v2844, %v2912
        %v3022 = vsub.f32 %v2845, %v2921
        %v3023 = vsub.f32 %v2846, %v2921
        %v3024 = vsub.f32 %v2847, %v2930
        %v3025 = vsub.f32 %v2848, %v2930
        %v3026 = vsub.f32 %v2849, %v2939
        %v3027 = vsub.f32 %v2850, %v2939
        %v3028 = vsub.f32 %v2851, %v2948
        %v3029 = vsub.f32 %v2852, %v2948
        %v3030 = vsub.f32 %v2853, %v2957
        %v3031 = vsub.f32 %v2854, %v2957
        %v3032 = vsub.f32 %v2855, %v2966
        %v3033 = vsub.f32 %v2856, %v2966
        %v3034 = vsub.f32 %v2857, %v2975
        %v3035 = vsub.f32 %v2858, %v2975
        %v3036 = vsub.f32 %v2859, %v2984
        %v3037 = vsub.f32 %v2860, %v2984
        %v3038 = vsub.f32 %v2861, %v2993
        %v3039 = vsub.f32 %v2862, %v2993
        %v3040 = vsub.f32 %v2863, %v3002
        %v3041 = vsub.f32 %v2864, %v3002
        %v3042 = vsub.f32 %v2865, %v3011
        %v3043 = vsub.f32 %v2866, %v3011
        %v3044 = vmul.f32 %v3012, 1.442695
        %v3045 = vpow.pop %v3044
        %v3046 = vmul.f32 %v3013, 1.442695
        %v3047 = vpow.pop %v3046
        %v3048 = vmul.f32 %v3014, 1.442695
        %v3049 = vpow.pop %v3048
        %v3050 = vmul.f32 %v3015, 1.442695
        %v3051 = vpow.pop %v3050
        %v3052 = vmul.f32 %v3016, 1.442695
        %v3053 = vpow.pop %v3052
        %v3054 = vmul.f32 %v3017, 1.442695
        %v3055 = vpow.pop %v3054
        %v3056 = vmul.f32 %v3018, 1.442695
        %v3057 = vpow.pop %v3056
        %v3058 = vmul.f32 %v3019, 1.442695
        %v3059 = vpow.pop %v3058
        %v3060 = vmul.f32 %v3020, 1.442695
        %v3061 = vpow.pop %v3060
        %v3062 = vmul.f32 %v3021, 1.442695
        %v3063 = vpow.pop %v3062
        %v3064 = vmul.f32 %v3022, 1.442695
        %v3065 = vpow.pop %v3064
        %v3066 = vmul.f32 %v3023, 1.442695
        %v3067 = vpow.pop %v3066
        %v3068 = vmul.f32 %v3024, 1.442695
        %v3069 = vpow.pop %v3068
        %v3070 = vmul.f32 %v3025, 1.442695
        %v3071 = vpow.pop %v3070
        %v3072 = vmul.f32 %v3026, 1.442695
        %v3073 = vpow.pop %v3072
        %v3074 = vmul.f32 %v3027, 1.442695
        %v3075 = vpow.pop %v3074
        %v3076 = vmul.f32 %v3028, 1.442695
        %v3077 = vpow.pop %v3076
        %v3078 = vmul.f32 %v3029, 1.442695
        %v3079 = vpow.pop %v3078
        %v3080 = vmul.f32 %v3030, 1.442695
        %v3081 = vpow.pop %v3080
        %v3082 = vmul.f32 %v3031, 1.442695
        %v3083 = vpow.pop %v3082
        %v3084 = vmul.f32 %v3032, 1.442695
        %v3085 = vpow.pop %v3084
        %v3086 = vmul.f32 %v3033, 1.442695
        %v3087 = vpow.pop %v3086
        %v3088 = vmul.f32 %v3034, 1.442695
        %v3089 = vpow.pop %v3088
        %v3090 = vmul.f32 %v3035, 1.442695
        %v3091 = vpow.pop %v3090
        %v3092 = vmul.f32 %v3036, 1.442695
        %v3093 = vpow.pop %v3092
        %v3094 = vmul.f32 %v3037, 1.442695
        %v3095 = vpow.pop %v3094
        %v3096 = vmul.f32 %v3038, 1.442695
        %v3097 = vpow.pop %v3096
        %v3098 = vmul.f32 %v3039, 1.442695
        %v3099 = vpow.pop %v3098
        %v3100 = vmul.f32 %v3040, 1.442695
        %v3101 = vpow.pop %v3100
        %v3102 = vmul.f32 %v3041, 1.442695
        %v3103 = vpow.pop %v3102
        %v3104 = vmul.f32 %v3042, 1.442695
        %v3105 = vpow.pop %v3104
        %v3106 = vmul.f32 %v3043, 1.442695
        %v3107 = vpow.pop %v3106
        %v3108 = vsel %vm2867, %v3045, 0.0
        %v3109 = vsel %vm2867, %v3047, 0.0
        %v3110 = vadd.f32 %v3108, %v3109
        %v3111 = vrot.slane %v3110, 4
        %v3112 = vadd.f32 %v3110, %v3111
        %v3113 = vrot.slane %v3112, 2
        %v3114 = vadd.f32 %v3112, %v3113
        %v3115 = vrot.slane %v3114, 1
        %v3116 = vadd.f32 %v3114, %v3115
        %v3117 = vsel %vm2867, %v3049, 0.0
        %v3118 = vsel %vm2867, %v3051, 0.0
        %v3119 = vadd.f32 %v3117, %v3118
        %v3120 = vrot.slane %v3119, 4
        %v3121 = vadd.f32 %v3119, %v3120
        %v3122 = vrot.slane %v3121, 2
        %v3123 = vadd.f32 %v3121, %v3122
        %v3124 = vrot.slane %v3123, 1
        %v3125 = vadd.f32 %v3123, %v3124
        %v3126 = vsel %vm2867, %v3053, 0.0
        %v3127 = vsel %vm2867, %v3055, 0.0
        %v3128 = vadd.f32 %v3126, %v3127
        %v3129 = vrot.slane %v3128, 4
        %v3130 = vadd.f32 %v3128, %v3129
        %v3131 = vrot.slane %v3130, 2
        %v3132 = vadd.f32 %v3130, %v3131
        %v3133 = vrot.slane %v3132, 1
        %v3134 = vadd.f32 %v3132, %v3133
        %v3135 = vsel %vm2867, %v3057, 0.0
        %v3136 = vsel %vm2867, %v3059, 0.0
        %v3137 = vadd.f32 %v3135, %v3136
        %v3138 = vrot.slane %v3137, 4
        %v3139 = vadd.f32 %v3137, %v3138
        %v3140 = vrot.slane %v3139, 2
        %v3141 = vadd.f32 %v3139, %v3140
        %v3142 = vrot.slane %v3141, 1
        %v3143 = vadd.f32 %v3141, %v3142
        %v3144 = vsel %vm2867, %v3061, 0.0
        %v3145 = vsel %vm2867, %v3063, 0.0
        %v3146 = vadd.f32 %v3144, %v3145
        %v3147 = vrot.slane %v3146, 4
        %v3148 = vadd.f32 %v3146, %v3147
        %v3149 = vrot.slane %v3148, 2
        %v3150 = vadd.f32 %v3148, %v3149
        %v3151 = vrot.slane %v3150, 1
        %v3152 = vadd.f32 %v3150, %v3151
        %v3153 = vsel %vm2867, %v3065, 0.0
        %v3154 = vsel %vm2867, %v3067, 0.0
        %v3155 = vadd.f32 %v3153, %v3154
        %v3156 = vrot.slane %v3155, 4
        %v3157 = vadd.f32 %v3155, %v3156
        %v3158 = vrot.slane %v3157, 2
        %v3159 = vadd.f32 %v3157, %v3158
        %v3160 = vrot.slane %v3159, 1
        %v3161 = vadd.f32 %v3159, %v3160
        %v3162 = vsel %vm2867, %v3069, 0.0
        %v3163 = vsel %vm2867, %v3071, 0.0
        %v3164 = vadd.f32 %v3162, %v3163
        %v3165 = vrot.slane %v3164, 4
        %v3166 = vadd.f32 %v3164, %v3165
        %v3167 = vrot.slane %v3166, 2
        %v3168 = vadd.f32 %v3166, %v3167
        %v3169 = vrot.slane %v3168, 1
        %v3170 = vadd.f32 %v3168, %v3169
        %v3171 = vsel %vm2867, %v3073, 0.0
        %v3172 = vsel %vm2867, %v3075, 0.0
        %v3173 = vadd.f32 %v3171, %v3172
        %v3174 = vrot.slane %v3173, 4
        %v3175 = vadd.f32 %v3173, %v3174
        %v3176 = vrot.slane %v3175, 2
        %v3177 = vadd.f32 %v3175, %v3176
        %v3178 = vrot.slane %v3177, 1
        %v3179 = vadd.f32 %v3177, %v3178
        %v3180 = vsel %vm2867, %v3077, 0.0
        %v3181 = vsel %vm2867, %v3079, 0.0
        %v3182 = vadd.f32 %v3180, %v3181
        %v3183 = vrot.slane %v3182, 4
        %v3184 = vadd.f32 %v3182, %v3183
        %v3185 = vrot.slane %v3184, 2
        %v3186 = vadd.f32 %v3184, %v3185
        %v3187 = vrot.slane %v3186, 1
        %v3188 = vadd.f32 %v3186, %v3187
        %v3189 = vsel %vm2867, %v3081, 0.0
        %v3190 = vsel %vm2867, %v3083, 0.0
        %v3191 = vadd.f32 %v3189, %v3190
        %v3192 = vrot.slane %v3191, 4
        %v3193 = vadd.f32 %v3191, %v3192
        %v3194 = vrot.slane %v3193, 2
        %v3195 = vadd.f32 %v3193, %v3194
        %v3196 = vrot.slane %v3195, 1
        %v3197 = vadd.f32 %v3195, %v3196
        %v3198 = vsel %vm2867, %v3085, 0.0
        %v3199 = vsel %vm2867, %v3087, 0.0
        %v3200 = vadd.f32 %v3198, %v3199
        %v3201 = vrot.slane %v3200, 4
        %v3202 = vadd.f32 %v3200, %v3201
        %v3203 = vrot.slane %v3202, 2
        %v3204 = vadd.f32 %v3202, %v3203
        %v3205 = vrot.slane %v3204, 1
        %v3206 = vadd.f32 %v3204, %v3205
        %v3207 = vsel %vm2867, %v3089, 0.0
        %v3208 = vsel %vm2867, %v3091, 0.0
        %v3209 = vadd.f32 %v3207, %v3208
        %v3210 = vrot.slane %v3209, 4
        %v3211 = vadd.f32 %v3209, %v3210
        %v3212 = vrot.slane %v3211, 2
        %v3213 = vadd.f32 %v3211, %v3212
        %v3214 = vrot.slane %v3213, 1
        %v3215 = vadd.f32 %v3213, %v3214
        %v3216 = vsel %vm2867, %v3093, 0.0
        %v3217 = vsel %vm2867, %v3095, 0.0
        %v3218 = vadd.f32 %v3216, %v3217
        %v3219 = vrot.slane %v3218, 4
        %v3220 = vadd.f32 %v3218, %v3219
        %v3221 = vrot.slane %v3220, 2
        %v3222 = vadd.f32 %v3220, %v3221
        %v3223 = vrot.slane %v3222, 1
        %v3224 = vadd.f32 %v3222, %v3223
        %v3225 = vsel %vm2867, %v3097, 0.0
        %v3226 = vsel %vm2867, %v3099, 0.0
        %v3227 = vadd.f32 %v3225, %v3226
        %v3228 = vrot.slane %v3227, 4
        %v3229 = vadd.f32 %v3227, %v3228
        %v3230 = vrot.slane %v3229, 2
        %v3231 = vadd.f32 %v3229, %v3230
        %v3232 = vrot.slane %v3231, 1
        %v3233 = vadd.f32 %v3231, %v3232
        %v3234 = vsel %vm2867, %v3101, 0.0
        %v3235 = vsel %vm2867, %v3103, 0.0
        %v3236 = vadd.f32 %v3234, %v3235
        %v3237 = vrot.slane %v3236, 4
        %v3238 = vadd.f32 %v3236, %v3237
        %v3239 = vrot.slane %v3238, 2
        %v3240 = vadd.f32 %v3238, %v3239
        %v3241 = vrot.slane %v3240, 1
        %v3242 = vadd.f32 %v3240, %v3241
        %v3243 = vsel %vm2867, %v3105, 0.0
        %v3244 = vsel %vm2867, %v3107, 0.0
        %v3245 = vadd.f32 %v3243, %v3244
        %v3246 = vrot.slane %v3245, 4
        %v3247 = vadd.f32 %v3245, %v3246
        %v3248 = vrot.slane %v3247, 2
        %v3249 = vadd.f32 %v3247, %v3248
        %v3250 = vrot.slane %v3249, 1
        %v3251 = vadd.f32 %v3249, %v3250
        %v3252 = vlaneseq
        %v3253 = vshrl.u32 %v3252, 7
        %v3254 = vsub.s32 0, %v3253
        %v3255 = vrot.slane %v867, %v3254
        %v3256 = vlaneseq
        %v3257 = vshrl.u32 %v3256, 7
        %v3258 = vsub.s32 0, %v3257
        %v3259 = vrot.slane %v893, %v3258
        %v3260 = vlaneseq
        %v3261 = vshrl.u32 %v3260, 7
        %v3262 = vsub.s32 0, %v3261
        %v3263 = vrot.slane %v919, %v3262
        %v3264 = vlaneseq
        %v3265 = vshrl.u32 %v3264, 7
        %v3266 = vsub.s32 0, %v3265
        %v3267 = vrot.slane %v945, %v3266
        %v3284 = vrot.slane %v3049, 7
        %vm3285 = vcmask 1041409
        %v3286 = vsel %vm3285, %v3284, %v3045
        %v3287 = vrot.slane %v3053, 6
        %vm3288 = vcmask 1042434
        %v3289 = vsel %vm3288, %v3287, %v3286
        %v3290 = vrot.slane %v3057, 5
        %vm3291 = vcmask 1043459
        %v3292 = vsel %vm3291, %v3290, %v3289
        %v3293 = vrot.slane %v3061, 4
        %vm3294 = vcmask 1044484
        %v3295 = vsel %vm3294, %v3293, %v3292
        %v3296 = vrot.slane %v3065, 3
        %vm3297 = vcmask 1045509
        %v3298 = vsel %vm3297, %v3296, %v3295
        %v3299 = vrot.slane %v3069, 2
        %vm3300 = vcmask 1046534
        %v3301 = vsel %vm3300, %v3299, %v3298
        %v3302 = vrot.slane %v3073, 1
        %vm3303 = vcmask 1047559
        %v3304 = vsel %vm3303, %v3302, %v3301
        %v3305 = vrot.slane %v3081, 7
        %v3306 = vsel %vm3285, %v3305, %v3077
        %v3307 = vrot.slane %v3085, 6
        %v3308 = vsel %vm3288, %v3307, %v3306
        %v3309 = vrot.slane %v3089, 5
        %v3310 = vsel %vm3291, %v3309, %v3308
        %v3311 = vrot.slane %v3093, 4
        %v3312 = vsel %vm3294, %v3311, %v3310
        %v3313 = vrot.slane %v3097, 3
        %v3314 = vsel %vm3297, %v3313, %v3312
        %v3315 = vrot.slane %v3101, 2
        %v3316 = vsel %vm3300, %v3315, %v3314
        %v3317 = vrot.slane %v3105, 1
        %v3318 = vsel %vm3303, %v3317, %v3316
        %v3321 = vmul.f32 %v3255, %v3304
        %v3322 = vmul.f32 %v3255, %v3318
        %v3323 = vmul.f32 %v3259, %v3304
        %v3324 = vmul.f32 %v3259, %v3318
        %v3325 = vmul.f32 %v3263, %v3304
        %v3326 = vmul.f32 %v3263, %v3318
        %v3327 = vmul.f32 %v3267, %v3304
        %v3328 = vmul.f32 %v3267, %v3318
        %v3329 = vlaneseq
        %v3330 = vshrl.u32 %v3329, 7
        %v3331 = vsub.s32 1, %v3330
        %v3332 = vrot.slane %v867, %v3331
        %v3333 = vlaneseq
        %v3334 = vshrl.u32 %v3333, 7
        %v3335 = vsub.s32 1, %v3334
        %v3336 = vrot.slane %v893, %v3335
        %v3337 = vlaneseq
        %v3338 = vshrl.u32 %v3337, 7
        %v3339 = vsub.s32 1, %v3338
        %v3340 = vrot.slane %v919, %v3339
        %v3341 = vlaneseq
        %v3342 = vshrl.u32 %v3341, 7
        %v3343 = vsub.s32 1, %v3342
        %v3344 = vrot.slane %v945, %v3343
        %v3345 = vrot.slane %v3045, 1
        %v3346 = vsel %vm3285, %v3049, %v3345
        %v3347 = vrot.slane %v3053, 7
        %v3348 = vsel %vm3288, %v3347, %v3346
        %v3349 = vrot.slane %v3057, 6
        %v3350 = vsel %vm3291, %v3349, %v3348
        %v3351 = vrot.slane %v3061, 5
        %v3352 = vsel %vm3294, %v3351, %v3350
        %v3353 = vrot.slane %v3065, 4
        %v3354 = vsel %vm3297, %v3353, %v3352
        %v3355 = vrot.slane %v3069, 3
        %v3356 = vsel %vm3300, %v3355, %v3354
        %v3357 = vrot.slane %v3073, 2
        %v3358 = vsel %vm3303, %v3357, %v3356
        %v3359 = vrot.slane %v3077, 1
        %v3360 = vsel %vm3285, %v3081, %v3359
        %v3361 = vrot.slane %v3085, 7
        %v3362 = vsel %vm3288, %v3361, %v3360
        %v3363 = vrot.slane %v3089, 6
        %v3364 = vsel %vm3291, %v3363, %v3362
        %v3365 = vrot.slane %v3093, 5
        %v3366 = vsel %vm3294, %v3365, %v3364
        %v3367 = vrot.slane %v3097, 4
        %v3368 = vsel %vm3297, %v3367, %v3366
        %v3369 = vrot.slane %v3101, 3
        %v3370 = vsel %vm3300, %v3369, %v3368
        %v3371 = vrot.slane %v3105, 2
        %v3372 = vsel %vm3303, %v3371, %v3370
        %v3375 = vmul.f32 %v3332, %v3358
        %v3376 = vmul.f32 %v3332, %v3372
        %v3377 = vmul.f32 %v3336, %v3358
        %v3378 = vmul.f32 %v3336, %v3372
        %v3379 = vmul.f32 %v3340, %v3358
        %v3380 = vmul.f32 %v3340, %v3372
        %v3381 = vmul.f32 %v3344, %v3358
        %v3382 = vmul.f32 %v3344, %v3372
        %v3383 = vadd.f32 %v3321, %v3375
        %v3384 = vadd.f32 %v3322, %v3376
        %v3385 = vadd.f32 %v3323, %v3377
        %v3386 = vadd.f32 %v3324, %v3378
        %v3387 = vadd.f32 %v3325, %v3379
        %v3388 = vadd.f32 %v3326, %v3380
        %v3389 = vadd.f32 %v3327, %v3381
        %v3390 = vadd.f32 %v3328, %v3382
        %v3391 = vlaneseq
        %v3392 = vshrl.u32 %v3391, 7
        %v3393 = vsub.s32 2, %v3392
        %v3394 = vrot.slane %v867, %v3393
        %v3395 = vlaneseq
        %v3396 = vshrl.u32 %v3395, 7
        %v3397 = vsub.s32 2, %v3396
        %v3398 = vrot.slane %v893, %v3397
        %v3399 = vlaneseq
        %v3400 = vshrl.u32 %v3399, 7
        %v3401 = vsub.s32 2, %v3400
        %v3402 = vrot.slane %v919, %v3401
        %v3403 = vlaneseq
        %v3404 = vshrl.u32 %v3403, 7
        %v3405 = vsub.s32 2, %v3404
        %v3406 = vrot.slane %v945, %v3405
        %v3407 = vrot.slane %v3045, 2
        %v3408 = vrot.slane %v3049, 1
        %v3409 = vsel %vm3285, %v3408, %v3407
        %v3410 = vsel %vm3288, %v3053, %v3409
        %v3411 = vrot.slane %v3057, 7
        %v3412 = vsel %vm3291, %v3411, %v3410
        %v3413 = vrot.slane %v3061, 6
        %v3414 = vsel %vm3294, %v3413, %v3412
        %v3415 = vrot.slane %v3065, 5
        %v3416 = vsel %vm3297, %v3415, %v3414
        %v3417 = vrot.slane %v3069, 4
        %v3418 = vsel %vm3300, %v3417, %v3416
        %v3419 = vrot.slane %v3073, 3
        %v3420 = vsel %vm3303, %v3419, %v3418
        %v3421 = vrot.slane %v3077, 2
        %v3422 = vrot.slane %v3081, 1
        %v3423 = vsel %vm3285, %v3422, %v3421
        %v3424 = vsel %vm3288, %v3085, %v3423
        %v3425 = vrot.slane %v3089, 7
        %v3426 = vsel %vm3291, %v3425, %v3424
        %v3427 = vrot.slane %v3093, 6
        %v3428 = vsel %vm3294, %v3427, %v3426
        %v3429 = vrot.slane %v3097, 5
        %v3430 = vsel %vm3297, %v3429, %v3428
        %v3431 = vrot.slane %v3101, 4
        %v3432 = vsel %vm3300, %v3431, %v3430
        %v3433 = vrot.slane %v3105, 3
        %v3434 = vsel %vm3303, %v3433, %v3432
        %v3437 = vmul.f32 %v3394, %v3420
        %v3438 = vmul.f32 %v3394, %v3434
        %v3439 = vmul.f32 %v3398, %v3420
        %v3440 = vmul.f32 %v3398, %v3434
        %v3441 = vmul.f32 %v3402, %v3420
        %v3442 = vmul.f32 %v3402, %v3434
        %v3443 = vmul.f32 %v3406, %v3420
        %v3444 = vmul.f32 %v3406, %v3434
        %v3445 = vadd.f32 %v3383, %v3437
        %v3446 = vadd.f32 %v3384, %v3438
        %v3447 = vadd.f32 %v3385, %v3439
        %v3448 = vadd.f32 %v3386, %v3440
        %v3449 = vadd.f32 %v3387, %v3441
        %v3450 = vadd.f32 %v3388, %v3442
        %v3451 = vadd.f32 %v3389, %v3443
        %v3452 = vadd.f32 %v3390, %v3444
        %v3453 = vlaneseq
        %v3454 = vshrl.u32 %v3453, 7
        %v3455 = vsub.s32 3, %v3454
        %v3456 = vrot.slane %v867, %v3455
        %v3457 = vlaneseq
        %v3458 = vshrl.u32 %v3457, 7
        %v3459 = vsub.s32 3, %v3458
        %v3460 = vrot.slane %v893, %v3459
        %v3461 = vlaneseq
        %v3462 = vshrl.u32 %v3461, 7
        %v3463 = vsub.s32 3, %v3462
        %v3464 = vrot.slane %v919, %v3463
        %v3465 = vlaneseq
        %v3466 = vshrl.u32 %v3465, 7
        %v3467 = vsub.s32 3, %v3466
        %v3468 = vrot.slane %v945, %v3467
        %v3469 = vrot.slane %v3045, 3
        %v3470 = vrot.slane %v3049, 2
        %v3471 = vsel %vm3285, %v3470, %v3469
        %v3472 = vrot.slane %v3053, 1
        %v3473 = vsel %vm3288, %v3472, %v3471
        %v3474 = vsel %vm3291, %v3057, %v3473
        %v3475 = vrot.slane %v3061, 7
        %v3476 = vsel %vm3294, %v3475, %v3474
        %v3477 = vrot.slane %v3065, 6
        %v3478 = vsel %vm3297, %v3477, %v3476
        %v3479 = vrot.slane %v3069, 5
        %v3480 = vsel %vm3300, %v3479, %v3478
        %v3481 = vrot.slane %v3073, 4
        %v3482 = vsel %vm3303, %v3481, %v3480
        %v3483 = vrot.slane %v3077, 3
        %v3484 = vrot.slane %v3081, 2
        %v3485 = vsel %vm3285, %v3484, %v3483
        %v3486 = vrot.slane %v3085, 1
        %v3487 = vsel %vm3288, %v3486, %v3485
        %v3488 = vsel %vm3291, %v3089, %v3487
        %v3489 = vrot.slane %v3093, 7
        %v3490 = vsel %vm3294, %v3489, %v3488
        %v3491 = vrot.slane %v3097, 6
        %v3492 = vsel %vm3297, %v3491, %v3490
        %v3493 = vrot.slane %v3101, 5
        %v3494 = vsel %vm3300, %v3493, %v3492
        %v3495 = vrot.slane %v3105, 4
        %v3496 = vsel %vm3303, %v3495, %v3494
        %v3499 = vmul.f32 %v3456, %v3482
        %v3500 = vmul.f32 %v3456, %v3496
        %v3501 = vmul.f32 %v3460, %v3482
        %v3502 = vmul.f32 %v3460, %v3496
        %v3503 = vmul.f32 %v3464, %v3482
        %v3504 = vmul.f32 %v3464, %v3496
        %v3505 = vmul.f32 %v3468, %v3482
        %v3506 = vmul.f32 %v3468, %v3496
        %v3507 = vadd.f32 %v3445, %v3499
        %v3508 = vadd.f32 %v3446, %v3500
        %v3509 = vadd.f32 %v3447, %v3501
        %v3510 = vadd.f32 %v3448, %v3502
        %v3511 = vadd.f32 %v3449, %v3503
        %v3512 = vadd.f32 %v3450, %v3504
        %v3513 = vadd.f32 %v3451, %v3505
        %v3514 = vadd.f32 %v3452, %v3506
        %v3515 = vlaneseq
        %v3516 = vshrl.u32 %v3515, 7
        %v3517 = vsub.s32 4, %v3516
        %v3518 = vrot.slane %v867, %v3517
        %v3519 = vlaneseq
        %v3520 = vshrl.u32 %v3519, 7
        %v3521 = vsub.s32 4, %v3520
        %v3522 = vrot.slane %v893, %v3521
        %v3523 = vlaneseq
        %v3524 = vshrl.u32 %v3523, 7
        %v3525 = vsub.s32 4, %v3524
        %v3526 = vrot.slane %v919, %v3525
        %v3527 = vlaneseq
        %v3528 = vshrl.u32 %v3527, 7
        %v3529 = vsub.s32 4, %v3528
        %v3530 = vrot.slane %v945, %v3529
        %v3531 = vrot.slane %v3045, 4
        %v3532 = vrot.slane %v3049, 3
        %v3533 = vsel %vm3285, %v3532, %v3531
        %v3534 = vrot.slane %v3053, 2
        %v3535 = vsel %vm3288, %v3534, %v3533
        %v3536 = vrot.slane %v3057, 1
        %v3537 = vsel %vm3291, %v3536, %v3535
        %v3538 = vsel %vm3294, %v3061, %v3537
        %v3539 = vrot.slane %v3065, 7
        %v3540 = vsel %vm3297, %v3539, %v3538
        %v3541 = vrot.slane %v3069, 6
        %v3542 = vsel %vm3300, %v3541, %v3540
        %v3543 = vrot.slane %v3073, 5
        %v3544 = vsel %vm3303, %v3543, %v3542
        %v3545 = vrot.slane %v3077, 4
        %v3546 = vrot.slane %v3081, 3
        %v3547 = vsel %vm3285, %v3546, %v3545
        %v3548 = vrot.slane %v3085, 2
        %v3549 = vsel %vm3288, %v3548, %v3547
        %v3550 = vrot.slane %v3089, 1
        %v3551 = vsel %vm3291, %v3550, %v3549
        %v3552 = vsel %vm3294, %v3093, %v3551
        %v3553 = vrot.slane %v3097, 7
        %v3554 = vsel %vm3297, %v3553, %v3552
        %v3555 = vrot.slane %v3101, 6
        %v3556 = vsel %vm3300, %v3555, %v3554
        %v3557 = vrot.slane %v3105, 5
        %v3558 = vsel %vm3303, %v3557, %v3556
        %v3561 = vmul.f32 %v3518, %v3544
        %v3562 = vmul.f32 %v3518, %v3558
        %v3563 = vmul.f32 %v3522, %v3544
        %v3564 = vmul.f32 %v3522, %v3558
        %v3565 = vmul.f32 %v3526, %v3544
        %v3566 = vmul.f32 %v3526, %v3558
        %v3567 = vmul.f32 %v3530, %v3544
        %v3568 = vmul.f32 %v3530, %v3558
        %v3569 = vadd.f32 %v3507, %v3561
        %v3570 = vadd.f32 %v3508, %v3562
        %v3571 = vadd.f32 %v3509, %v3563
        %v3572 = vadd.f32 %v3510, %v3564
        %v3573 = vadd.f32 %v3511, %v3565
        %v3574 = vadd.f32 %v3512, %v3566
        %v3575 = vadd.f32 %v3513, %v3567
        %v3576 = vadd.f32 %v3514, %v3568
        %v3577 = vlaneseq
        %v3578 = vshrl.u32 %v3577, 7
        %v3579 = vsub.s32 5, %v3578
        %v3580 = vrot.slane %v867, %v3579
        %v3581 = vlaneseq
        %v3582 = vshrl.u32 %v3581, 7
        %v3583 = vsub.s32 5, %v3582
        %v3584 = vrot.slane %v893, %v3583
        %v3585 = vlaneseq
        %v3586 = vshrl.u32 %v3585, 7
        %v3587 = vsub.s32 5, %v3586
        %v3588 = vrot.slane %v919, %v3587
        %v3589 = vlaneseq
        %v3590 = vshrl.u32 %v3589, 7
        %v3591 = vsub.s32 5, %v3590
        %v3592 = vrot.slane %v945, %v3591
        %v3593 = vrot.slane %v3045, 5
        %v3594 = vrot.slane %v3049, 4
        %v3595 = vsel %vm3285, %v3594, %v3593
        %v3596 = vrot.slane %v3053, 3
        %v3597 = vsel %vm3288, %v3596, %v3595
        %v3598 = vrot.slane %v3057, 2
        %v3599 = vsel %vm3291, %v3598, %v3597
        %v3600 = vrot.slane %v3061, 1
        %v3601 = vsel %vm3294, %v3600, %v3599
        %v3602 = vsel %vm3297, %v3065, %v3601
        %v3603 = vrot.slane %v3069, 7
        %v3604 = vsel %vm3300, %v3603, %v3602
        %v3605 = vrot.slane %v3073, 6
        %v3606 = vsel %vm3303, %v3605, %v3604
        %v3607 = vrot.slane %v3077, 5
        %v3608 = vrot.slane %v3081, 4
        %v3609 = vsel %vm3285, %v3608, %v3607
        %v3610 = vrot.slane %v3085, 3
        %v3611 = vsel %vm3288, %v3610, %v3609
        %v3612 = vrot.slane %v3089, 2
        %v3613 = vsel %vm3291, %v3612, %v3611
        %v3614 = vrot.slane %v3093, 1
        %v3615 = vsel %vm3294, %v3614, %v3613
        %v3616 = vsel %vm3297, %v3097, %v3615
        %v3617 = vrot.slane %v3101, 7
        %v3618 = vsel %vm3300, %v3617, %v3616
        %v3619 = vrot.slane %v3105, 6
        %v3620 = vsel %vm3303, %v3619, %v3618
        %v3623 = vmul.f32 %v3580, %v3606
        %v3624 = vmul.f32 %v3580, %v3620
        %v3625 = vmul.f32 %v3584, %v3606
        %v3626 = vmul.f32 %v3584, %v3620
        %v3627 = vmul.f32 %v3588, %v3606
        %v3628 = vmul.f32 %v3588, %v3620
        %v3629 = vmul.f32 %v3592, %v3606
        %v3630 = vmul.f32 %v3592, %v3620
        %v3631 = vadd.f32 %v3569, %v3623
        %v3632 = vadd.f32 %v3570, %v3624
        %v3633 = vadd.f32 %v3571, %v3625
        %v3634 = vadd.f32 %v3572, %v3626
        %v3635 = vadd.f32 %v3573, %v3627
        %v3636 = vadd.f32 %v3574, %v3628
        %v3637 = vadd.f32 %v3575, %v3629
        %v3638 = vadd.f32 %v3576, %v3630
        %v3639 = vlaneseq
        %v3640 = vshrl.u32 %v3639, 7
        %v3641 = vsub.s32 6, %v3640
        %v3642 = vrot.slane %v867, %v3641
        %v3643 = vlaneseq
        %v3644 = vshrl.u32 %v3643, 7
        %v3645 = vsub.s32 6, %v3644
        %v3646 = vrot.slane %v893, %v3645
        %v3647 = vlaneseq
        %v3648 = vshrl.u32 %v3647, 7
        %v3649 = vsub.s32 6, %v3648
        %v3650 = vrot.slane %v919, %v3649
        %v3651 = vlaneseq
        %v3652 = vshrl.u32 %v3651, 7
        %v3653 = vsub.s32 6, %v3652
        %v3654 = vrot.slane %v945, %v3653
        %v3655 = vrot.slane %v3045, 6
        %v3656 = vrot.slane %v3049, 5
        %v3657 = vsel %vm3285, %v3656, %v3655
        %v3658 = vrot.slane %v3053, 4
        %v3659 = vsel %vm3288, %v3658, %v3657
        %v3660 = vrot.slane %v3057, 3
        %v3661 = vsel %vm3291, %v3660, %v3659
        %v3662 = vrot.slane %v3061, 2
        %v3663 = vsel %vm3294, %v3662, %v3661
        %v3664 = vrot.slane %v3065, 1
        %v3665 = vsel %vm3297, %v3664, %v3663
        %v3666 = vsel %vm3300, %v3069, %v3665
        %v3667 = vrot.slane %v3073, 7
        %v3668 = vsel %vm3303, %v3667, %v3666
        %v3669 = vrot.slane %v3077, 6
        %v3670 = vrot.slane %v3081, 5
        %v3671 = vsel %vm3285, %v3670, %v3669
        %v3672 = vrot.slane %v3085, 4
        %v3673 = vsel %vm3288, %v3672, %v3671
        %v3674 = vrot.slane %v3089, 3
        %v3675 = vsel %vm3291, %v3674, %v3673
        %v3676 = vrot.slane %v3093, 2
        %v3677 = vsel %vm3294, %v3676, %v3675
        %v3678 = vrot.slane %v3097, 1
        %v3679 = vsel %vm3297, %v3678, %v3677
        %v3680 = vsel %vm3300, %v3101, %v3679
        %v3681 = vrot.slane %v3105, 7
        %v3682 = vsel %vm3303, %v3681, %v3680
        %v3685 = vmul.f32 %v3642, %v3668
        %v3686 = vmul.f32 %v3642, %v3682
        %v3687 = vmul.f32 %v3646, %v3668
        %v3688 = vmul.f32 %v3646, %v3682
        %v3689 = vmul.f32 %v3650, %v3668
        %v3690 = vmul.f32 %v3650, %v3682
        %v3691 = vmul.f32 %v3654, %v3668
        %v3692 = vmul.f32 %v3654, %v3682
        %v3693 = vadd.f32 %v3631, %v3685
        %v3694 = vadd.f32 %v3632, %v3686
        %v3695 = vadd.f32 %v3633, %v3687
        %v3696 = vadd.f32 %v3634, %v3688
        %v3697 = vadd.f32 %v3635, %v3689
        %v3698 = vadd.f32 %v3636, %v3690
        %v3699 = vadd.f32 %v3637, %v3691
        %v3700 = vadd.f32 %v3638, %v3692
        %v3701 = vlaneseq
        %v3702 = vshrl.u32 %v3701, 7
        %v3703 = vsub.s32 7, %v3702
        %v3704 = vrot.slane %v867, %v3703
        %v3705 = vlaneseq
        %v3706 = vshrl.u32 %v3705, 7
        %v3707 = vsub.s32 7, %v3706
        %v3708 = vrot.slane %v893, %v3707
        %v3709 = vlaneseq
        %v3710 = vshrl.u32 %v3709, 7
        %v3711 = vsub.s32 7, %v3710
        %v3712 = vrot.slane %v919, %v3711
        %v3713 = vlaneseq
        %v3714 = vshrl.u32 %v3713, 7
        %v3715 = vsub.s32 7, %v3714
        %v3716 = vrot.slane %v945, %v3715
        %v3717 = vrot.slane %v3045, 7
        %v3718 = vrot.slane %v3049, 6
        %v3719 = vsel %vm3285, %v3718, %v3717
        %v3720 = vrot.slane %v3053, 5
        %v3721 = vsel %vm3288, %v3720, %v3719
        %v3722 = vrot.slane %v3057, 4
        %v3723 = vsel %vm3291, %v3722, %v3721
        %v3724 = vrot.slane %v3061, 3
        %v3725 = vsel %vm3294, %v3724, %v3723
        %v3726 = vrot.slane %v3065, 2
        %v3727 = vsel %vm3297, %v3726, %v3725
        %v3728 = vrot.slane %v3069, 1
        %v3729 = vsel %vm3300, %v3728, %v3727
        %v3730 = vsel %vm3303, %v3073, %v3729
        %v3731 = vrot.slane %v3077, 7
        %v3732 = vrot.slane %v3081, 6
        %v3733 = vsel %vm3285, %v3732, %v3731
        %v3734 = vrot.slane %v3085, 5
        %v3735 = vsel %vm3288, %v3734, %v3733
        %v3736 = vrot.slane %v3089, 4
        %v3737 = vsel %vm3291, %v3736, %v3735
        %v3738 = vrot.slane %v3093, 3
        %v3739 = vsel %vm3294, %v3738, %v3737
        %v3740 = vrot.slane %v3097, 2
        %v3741 = vsel %vm3297, %v3740, %v3739
        %v3742 = vrot.slane %v3101, 1
        %v3743 = vsel %vm3300, %v3742, %v3741
        %v3744 = vsel %vm3303, %v3105, %v3743
        %v3747 = vmul.f32 %v3704, %v3730
        %v3748 = vmul.f32 %v3704, %v3744
        %v3749 = vmul.f32 %v3708, %v3730
        %v3750 = vmul.f32 %v3708, %v3744
        %v3751 = vmul.f32 %v3712, %v3730
        %v3752 = vmul.f32 %v3712, %v3744
        %v3753 = vmul.f32 %v3716, %v3730
        %v3754 = vmul.f32 %v3716, %v3744
        %v3755 = vadd.f32 %v3693, %v3747
        %v3756 = vadd.f32 %v3694, %v3748
        %v3757 = vadd.f32 %v3695, %v3749
        %v3758 = vadd.f32 %v3696, %v3750
        %v3759 = vadd.f32 %v3697, %v3751
        %v3760 = vadd.f32 %v3698, %v3752
        %v3761 = vadd.f32 %v3699, %v3753
        %v3762 = vadd.f32 %v3700, %v3754
        %v3763 = vlaneseq
        %v3764 = vshrl.u32 %v3763, 7
        %v3765 = vsub.s32 0, %v3764
        %v3766 = vrot.slane %v868, %v3765
        %v3767 = vlaneseq
        %v3768 = vshrl.u32 %v3767, 7
        %v3769 = vsub.s32 0, %v3768
        %v3770 = vrot.slane %v894, %v3769
        %v3771 = vlaneseq
        %v3772 = vshrl.u32 %v3771, 7
        %v3773 = vsub.s32 0, %v3772
        %v3774 = vrot.slane %v920, %v3773
        %v3775 = vlaneseq
        %v3776 = vshrl.u32 %v3775, 7
        %v3777 = vsub.s32 0, %v3776
        %v3778 = vrot.slane %v946, %v3777
        %v3795 = vrot.slane %v3051, 7
        %v3796 = vsel %vm3285, %v3795, %v3047
        %v3797 = vrot.slane %v3055, 6
        %v3798 = vsel %vm3288, %v3797, %v3796
        %v3799 = vrot.slane %v3059, 5
        %v3800 = vsel %vm3291, %v3799, %v3798
        %v3801 = vrot.slane %v3063, 4
        %v3802 = vsel %vm3294, %v3801, %v3800
        %v3803 = vrot.slane %v3067, 3
        %v3804 = vsel %vm3297, %v3803, %v3802
        %v3805 = vrot.slane %v3071, 2
        %v3806 = vsel %vm3300, %v3805, %v3804
        %v3807 = vrot.slane %v3075, 1
        %v3808 = vsel %vm3303, %v3807, %v3806
        %v3809 = vrot.slane %v3083, 7
        %v3810 = vsel %vm3285, %v3809, %v3079
        %v3811 = vrot.slane %v3087, 6
        %v3812 = vsel %vm3288, %v3811, %v3810
        %v3813 = vrot.slane %v3091, 5
        %v3814 = vsel %vm3291, %v3813, %v3812
        %v3815 = vrot.slane %v3095, 4
        %v3816 = vsel %vm3294, %v3815, %v3814
        %v3817 = vrot.slane %v3099, 3
        %v3818 = vsel %vm3297, %v3817, %v3816
        %v3819 = vrot.slane %v3103, 2
        %v3820 = vsel %vm3300, %v3819, %v3818
        %v3821 = vrot.slane %v3107, 1
        %v3822 = vsel %vm3303, %v3821, %v3820
        %v3825 = vmul.f32 %v3766, %v3808
        %v3826 = vmul.f32 %v3766, %v3822
        %v3827 = vmul.f32 %v3770, %v3808
        %v3828 = vmul.f32 %v3770, %v3822
        %v3829 = vmul.f32 %v3774, %v3808
        %v3830 = vmul.f32 %v3774, %v3822
        %v3831 = vmul.f32 %v3778, %v3808
        %v3832 = vmul.f32 %v3778, %v3822
        %v3833 = vadd.f32 %v3755, %v3825
        %v3834 = vadd.f32 %v3756, %v3826
        %v3835 = vadd.f32 %v3757, %v3827
        %v3836 = vadd.f32 %v3758, %v3828
        %v3837 = vadd.f32 %v3759, %v3829
        %v3838 = vadd.f32 %v3760, %v3830
        %v3839 = vadd.f32 %v3761, %v3831
        %v3840 = vadd.f32 %v3762, %v3832
        %v3841 = vlaneseq
        %v3842 = vshrl.u32 %v3841, 7
        %v3843 = vsub.s32 1, %v3842
        %v3844 = vrot.slane %v868, %v3843
        %v3845 = vlaneseq
        %v3846 = vshrl.u32 %v3845, 7
        %v3847 = vsub.s32 1, %v3846
        %v3848 = vrot.slane %v894, %v3847
        %v3849 = vlaneseq
        %v3850 = vshrl.u32 %v3849, 7
        %v3851 = vsub.s32 1, %v3850
        %v3852 = vrot.slane %v920, %v3851
        %v3853 = vlaneseq
        %v3854 = vshrl.u32 %v3853, 7
        %v3855 = vsub.s32 1, %v3854
        %v3856 = vrot.slane %v946, %v3855
        %v3857 = vrot.slane %v3047, 1
        %v3858 = vsel %vm3285, %v3051, %v3857
        %v3859 = vrot.slane %v3055, 7
        %v3860 = vsel %vm3288, %v3859, %v3858
        %v3861 = vrot.slane %v3059, 6
        %v3862 = vsel %vm3291, %v3861, %v3860
        %v3863 = vrot.slane %v3063, 5
        %v3864 = vsel %vm3294, %v3863, %v3862
        %v3865 = vrot.slane %v3067, 4
        %v3866 = vsel %vm3297, %v3865, %v3864
        %v3867 = vrot.slane %v3071, 3
        %v3868 = vsel %vm3300, %v3867, %v3866
        %v3869 = vrot.slane %v3075, 2
        %v3870 = vsel %vm3303, %v3869, %v3868
        %v3871 = vrot.slane %v3079, 1
        %v3872 = vsel %vm3285, %v3083, %v3871
        %v3873 = vrot.slane %v3087, 7
        %v3874 = vsel %vm3288, %v3873, %v3872
        %v3875 = vrot.slane %v3091, 6
        %v3876 = vsel %vm3291, %v3875, %v3874
        %v3877 = vrot.slane %v3095, 5
        %v3878 = vsel %vm3294, %v3877, %v3876
        %v3879 = vrot.slane %v3099, 4
        %v3880 = vsel %vm3297, %v3879, %v3878
        %v3881 = vrot.slane %v3103, 3
        %v3882 = vsel %vm3300, %v3881, %v3880
        %v3883 = vrot.slane %v3107, 2
        %v3884 = vsel %vm3303, %v3883, %v3882
        %v3887 = vmul.f32 %v3844, %v3870
        %v3888 = vmul.f32 %v3844, %v3884
        %v3889 = vmul.f32 %v3848, %v3870
        %v3890 = vmul.f32 %v3848, %v3884
        %v3891 = vmul.f32 %v3852, %v3870
        %v3892 = vmul.f32 %v3852, %v3884
        %v3893 = vmul.f32 %v3856, %v3870
        %v3894 = vmul.f32 %v3856, %v3884
        %v3895 = vadd.f32 %v3833, %v3887
        %v3896 = vadd.f32 %v3834, %v3888
        %v3897 = vadd.f32 %v3835, %v3889
        %v3898 = vadd.f32 %v3836, %v3890
        %v3899 = vadd.f32 %v3837, %v3891
        %v3900 = vadd.f32 %v3838, %v3892
        %v3901 = vadd.f32 %v3839, %v3893
        %v3902 = vadd.f32 %v3840, %v3894
        %v3903 = vlaneseq
        %v3904 = vshrl.u32 %v3903, 7
        %v3905 = vsub.s32 2, %v3904
        %v3906 = vrot.slane %v868, %v3905
        %v3907 = vlaneseq
        %v3908 = vshrl.u32 %v3907, 7
        %v3909 = vsub.s32 2, %v3908
        %v3910 = vrot.slane %v894, %v3909
        %v3911 = vlaneseq
        %v3912 = vshrl.u32 %v3911, 7
        %v3913 = vsub.s32 2, %v3912
        %v3914 = vrot.slane %v920, %v3913
        %v3915 = vlaneseq
        %v3916 = vshrl.u32 %v3915, 7
        %v3917 = vsub.s32 2, %v3916
        %v3918 = vrot.slane %v946, %v3917
        %v3919 = vrot.slane %v3047, 2
        %v3920 = vrot.slane %v3051, 1
        %v3921 = vsel %vm3285, %v3920, %v3919
        %v3922 = vsel %vm3288, %v3055, %v3921
        %v3923 = vrot.slane %v3059, 7
        %v3924 = vsel %vm3291, %v3923, %v3922
        %v3925 = vrot.slane %v3063, 6
        %v3926 = vsel %vm3294, %v3925, %v3924
        %v3927 = vrot.slane %v3067, 5
        %v3928 = vsel %vm3297, %v3927, %v3926
        %v3929 = vrot.slane %v3071, 4
        %v3930 = vsel %vm3300, %v3929, %v3928
        %v3931 = vrot.slane %v3075, 3
        %v3932 = vsel %vm3303, %v3931, %v3930
        %v3933 = vrot.slane %v3079, 2
        %v3934 = vrot.slane %v3083, 1
        %v3935 = vsel %vm3285, %v3934, %v3933
        %v3936 = vsel %vm3288, %v3087, %v3935
        %v3937 = vrot.slane %v3091, 7
        %v3938 = vsel %vm3291, %v3937, %v3936
        %v3939 = vrot.slane %v3095, 6
        %v3940 = vsel %vm3294, %v3939, %v3938
        %v3941 = vrot.slane %v3099, 5
        %v3942 = vsel %vm3297, %v3941, %v3940
        %v3943 = vrot.slane %v3103, 4
        %v3944 = vsel %vm3300, %v3943, %v3942
        %v3945 = vrot.slane %v3107, 3
        %v3946 = vsel %vm3303, %v3945, %v3944
        %v3949 = vmul.f32 %v3906, %v3932
        %v3950 = vmul.f32 %v3906, %v3946
        %v3951 = vmul.f32 %v3910, %v3932
        %v3952 = vmul.f32 %v3910, %v3946
        %v3953 = vmul.f32 %v3914, %v3932
        %v3954 = vmul.f32 %v3914, %v3946
        %v3955 = vmul.f32 %v3918, %v3932
        %v3956 = vmul.f32 %v3918, %v3946
        %v3957 = vadd.f32 %v3895, %v3949
        %v3958 = vadd.f32 %v3896, %v3950
        %v3959 = vadd.f32 %v3897, %v3951
        %v3960 = vadd.f32 %v3898, %v3952
        %v3961 = vadd.f32 %v3899, %v3953
        %v3962 = vadd.f32 %v3900, %v3954
        %v3963 = vadd.f32 %v3901, %v3955
        %v3964 = vadd.f32 %v3902, %v3956
        %v3965 = vlaneseq
        %v3966 = vshrl.u32 %v3965, 7
        %v3967 = vsub.s32 3, %v3966
        %v3968 = vrot.slane %v868, %v3967
        %v3969 = vlaneseq
        %v3970 = vshrl.u32 %v3969, 7
        %v3971 = vsub.s32 3, %v3970
        %v3972 = vrot.slane %v894, %v3971
        %v3973 = vlaneseq
        %v3974 = vshrl.u32 %v3973, 7
        %v3975 = vsub.s32 3, %v3974
        %v3976 = vrot.slane %v920, %v3975
        %v3977 = vlaneseq
        %v3978 = vshrl.u32 %v3977, 7
        %v3979 = vsub.s32 3, %v3978
        %v3980 = vrot.slane %v946, %v3979
        %v3981 = vrot.slane %v3047, 3
        %v3982 = vrot.slane %v3051, 2
        %v3983 = vsel %vm3285, %v3982, %v3981
        %v3984 = vrot.slane %v3055, 1
        %v3985 = vsel %vm3288, %v3984, %v3983
        %v3986 = vsel %vm3291, %v3059, %v3985
        %v3987 = vrot.slane %v3063, 7
        %v3988 = vsel %vm3294, %v3987, %v3986
        %v3989 = vrot.slane %v3067, 6
        %v3990 = vsel %vm3297, %v3989, %v3988
        %v3991 = vrot.slane %v3071, 5
        %v3992 = vsel %vm3300, %v3991, %v3990
        %v3993 = vrot.slane %v3075, 4
        %v3994 = vsel %vm3303, %v3993, %v3992
        %v3995 = vrot.slane %v3079, 3
        %v3996 = vrot.slane %v3083, 2
        %v3997 = vsel %vm3285, %v3996, %v3995
        %v3998 = vrot.slane %v3087, 1
        %v3999 = vsel %vm3288, %v3998, %v3997
        %v4000 = vsel %vm3291, %v3091, %v3999
        %v4001 = vrot.slane %v3095, 7
        %v4002 = vsel %vm3294, %v4001, %v4000
        %v4003 = vrot.slane %v3099, 6
        %v4004 = vsel %vm3297, %v4003, %v4002
        %v4005 = vrot.slane %v3103, 5
        %v4006 = vsel %vm3300, %v4005, %v4004
        %v4007 = vrot.slane %v3107, 4
        %v4008 = vsel %vm3303, %v4007, %v4006
        %v4011 = vmul.f32 %v3968, %v3994
        %v4012 = vmul.f32 %v3968, %v4008
        %v4013 = vmul.f32 %v3972, %v3994
        %v4014 = vmul.f32 %v3972, %v4008
        %v4015 = vmul.f32 %v3976, %v3994
        %v4016 = vmul.f32 %v3976, %v4008
        %v4017 = vmul.f32 %v3980, %v3994
        %v4018 = vmul.f32 %v3980, %v4008
        %v4019 = vadd.f32 %v3957, %v4011
        %v4020 = vadd.f32 %v3958, %v4012
        %v4021 = vadd.f32 %v3959, %v4013
        %v4022 = vadd.f32 %v3960, %v4014
        %v4023 = vadd.f32 %v3961, %v4015
        %v4024 = vadd.f32 %v3962, %v4016
        %v4025 = vadd.f32 %v3963, %v4017
        %v4026 = vadd.f32 %v3964, %v4018
        %v4027 = vlaneseq
        %v4028 = vshrl.u32 %v4027, 7
        %v4029 = vsub.s32 4, %v4028
        %v4030 = vrot.slane %v868, %v4029
        %v4031 = vlaneseq
        %v4032 = vshrl.u32 %v4031, 7
        %v4033 = vsub.s32 4, %v4032
        %v4034 = vrot.slane %v894, %v4033
        %v4035 = vlaneseq
        %v4036 = vshrl.u32 %v4035, 7
        %v4037 = vsub.s32 4, %v4036
        %v4038 = vrot.slane %v920, %v4037
        %v4039 = vlaneseq
        %v4040 = vshrl.u32 %v4039, 7
        %v4041 = vsub.s32 4, %v4040
        %v4042 = vrot.slane %v946, %v4041
        %v4043 = vrot.slane %v3047, 4
        %v4044 = vrot.slane %v3051, 3
        %v4045 = vsel %vm3285, %v4044, %v4043
        %v4046 = vrot.slane %v3055, 2
        %v4047 = vsel %vm3288, %v4046, %v4045
        %v4048 = vrot.slane %v3059, 1
        %v4049 = vsel %vm3291, %v4048, %v4047
        %v4050 = vsel %vm3294, %v3063, %v4049
        %v4051 = vrot.slane %v3067, 7
        %v4052 = vsel %vm3297, %v4051, %v4050
        %v4053 = vrot.slane %v3071, 6
        %v4054 = vsel %vm3300, %v4053, %v4052
        %v4055 = vrot.slane %v3075, 5
        %v4056 = vsel %vm3303, %v4055, %v4054
        %v4057 = vrot.slane %v3079, 4
        %v4058 = vrot.slane %v3083, 3
        %v4059 = vsel %vm3285, %v4058, %v4057
        %v4060 = vrot.slane %v3087, 2
        %v4061 = vsel %vm3288, %v4060, %v4059
        %v4062 = vrot.slane %v3091, 1
        %v4063 = vsel %vm3291, %v4062, %v4061
        %v4064 = vsel %vm3294, %v3095, %v4063
        %v4065 = vrot.slane %v3099, 7
        %v4066 = vsel %vm3297, %v4065, %v4064
        %v4067 = vrot.slane %v3103, 6
        %v4068 = vsel %vm3300, %v4067, %v4066
        %v4069 = vrot.slane %v3107, 5
        %v4070 = vsel %vm3303, %v4069, %v4068
        %v4073 = vmul.f32 %v4030, %v4056
        %v4074 = vmul.f32 %v4030, %v4070
        %v4075 = vmul.f32 %v4034, %v4056
        %v4076 = vmul.f32 %v4034, %v4070
        %v4077 = vmul.f32 %v4038, %v4056
        %v4078 = vmul.f32 %v4038, %v4070
        %v4079 = vmul.f32 %v4042, %v4056
        %v4080 = vmul.f32 %v4042, %v4070
        %v4081 = vadd.f32 %v4019, %v4073
        %v4082 = vadd.f32 %v4020, %v4074
        %v4083 = vadd.f32 %v4021, %v4075
        %v4084 = vadd.f32 %v4022, %v4076
        %v4085 = vadd.f32 %v4023, %v4077
        %v4086 = vadd.f32 %v4024, %v4078
        %v4087 = vadd.f32 %v4025, %v4079
        %v4088 = vadd.f32 %v4026, %v4080
        %v4089 = vlaneseq
        %v4090 = vshrl.u32 %v4089, 7
        %v4091 = vsub.s32 5, %v4090
        %v4092 = vrot.slane %v868, %v4091
        %v4093 = vlaneseq
        %v4094 = vshrl.u32 %v4093, 7
        %v4095 = vsub.s32 5, %v4094
        %v4096 = vrot.slane %v894, %v4095
        %v4097 = vlaneseq
        %v4098 = vshrl.u32 %v4097, 7
        %v4099 = vsub.s32 5, %v4098
        %v4100 = vrot.slane %v920, %v4099
        %v4101 = vlaneseq
        %v4102 = vshrl.u32 %v4101, 7
        %v4103 = vsub.s32 5, %v4102
        %v4104 = vrot.slane %v946, %v4103
        %v4105 = vrot.slane %v3047, 5
        %v4106 = vrot.slane %v3051, 4
        %v4107 = vsel %vm3285, %v4106, %v4105
        %v4108 = vrot.slane %v3055, 3
        %v4109 = vsel %vm3288, %v4108, %v4107
        %v4110 = vrot.slane %v3059, 2
        %v4111 = vsel %vm3291, %v4110, %v4109
        %v4112 = vrot.slane %v3063, 1
        %v4113 = vsel %vm3294, %v4112, %v4111
        %v4114 = vsel %vm3297, %v3067, %v4113
        %v4115 = vrot.slane %v3071, 7
        %v4116 = vsel %vm3300, %v4115, %v4114
        %v4117 = vrot.slane %v3075, 6
        %v4118 = vsel %vm3303, %v4117, %v4116
        %v4119 = vrot.slane %v3079, 5
        %v4120 = vrot.slane %v3083, 4
        %v4121 = vsel %vm3285, %v4120, %v4119
        %v4122 = vrot.slane %v3087, 3
        %v4123 = vsel %vm3288, %v4122, %v4121
        %v4124 = vrot.slane %v3091, 2
        %v4125 = vsel %vm3291, %v4124, %v4123
        %v4126 = vrot.slane %v3095, 1
        %v4127 = vsel %vm3294, %v4126, %v4125
        %v4128 = vsel %vm3297, %v3099, %v4127
        %v4129 = vrot.slane %v3103, 7
        %v4130 = vsel %vm3300, %v4129, %v4128
        %v4131 = vrot.slane %v3107, 6
        %v4132 = vsel %vm3303, %v4131, %v4130
        %v4135 = vmul.f32 %v4092, %v4118
        %v4136 = vmul.f32 %v4092, %v4132
        %v4137 = vmul.f32 %v4096, %v4118
        %v4138 = vmul.f32 %v4096, %v4132
        %v4139 = vmul.f32 %v4100, %v4118
        %v4140 = vmul.f32 %v4100, %v4132
        %v4141 = vmul.f32 %v4104, %v4118
        %v4142 = vmul.f32 %v4104, %v4132
        %v4143 = vadd.f32 %v4081, %v4135
        %v4144 = vadd.f32 %v4082, %v4136
        %v4145 = vadd.f32 %v4083, %v4137
        %v4146 = vadd.f32 %v4084, %v4138
        %v4147 = vadd.f32 %v4085, %v4139
        %v4148 = vadd.f32 %v4086, %v4140
        %v4149 = vadd.f32 %v4087, %v4141
        %v4150 = vadd.f32 %v4088, %v4142
        %v4151 = vlaneseq
        %v4152 = vshrl.u32 %v4151, 7
        %v4153 = vsub.s32 6, %v4152
        %v4154 = vrot.slane %v868, %v4153
        %v4155 = vlaneseq
        %v4156 = vshrl.u32 %v4155, 7
        %v4157 = vsub.s32 6, %v4156
        %v4158 = vrot.slane %v894, %v4157
        %v4159 = vlaneseq
        %v4160 = vshrl.u32 %v4159, 7
        %v4161 = vsub.s32 6, %v4160
        %v4162 = vrot.slane %v920, %v4161
        %v4163 = vlaneseq
        %v4164 = vshrl.u32 %v4163, 7
        %v4165 = vsub.s32 6, %v4164
        %v4166 = vrot.slane %v946, %v4165
        %v4167 = vrot.slane %v3047, 6
        %v4168 = vrot.slane %v3051, 5
        %v4169 = vsel %vm3285, %v4168, %v4167
        %v4170 = vrot.slane %v3055, 4
        %v4171 = vsel %vm3288, %v4170, %v4169
        %v4172 = vrot.slane %v3059, 3
        %v4173 = vsel %vm3291, %v4172, %v4171
        %v4174 = vrot.slane %v3063, 2
        %v4175 = vsel %vm3294, %v4174, %v4173
        %v4176 = vrot.slane %v3067, 1
        %v4177 = vsel %vm3297, %v4176, %v4175
        %v4178 = vsel %vm3300, %v3071, %v4177
        %v4179 = vrot.slane %v3075, 7
        %v4180 = vsel %vm3303, %v4179, %v4178
        %v4181 = vrot.slane %v3079, 6
        %v4182 = vrot.slane %v3083, 5
        %v4183 = vsel %vm3285, %v4182, %v4181
        %v4184 = vrot.slane %v3087, 4
        %v4185 = vsel %vm3288, %v4184, %v4183
        %v4186 = vrot.slane %v3091, 3
        %v4187 = vsel %vm3291, %v4186, %v4185
        %v4188 = vrot.slane %v3095, 2
        %v4189 = vsel %vm3294, %v4188, %v4187
        %v4190 = vrot.slane %v3099, 1
        %v4191 = vsel %vm3297, %v4190, %v4189
        %v4192 = vsel %vm3300, %v3103, %v4191
        %v4193 = vrot.slane %v3107, 7
        %v4194 = vsel %vm3303, %v4193, %v4192
        %v4197 = vmul.f32 %v4154, %v4180
        %v4198 = vmul.f32 %v4154, %v4194
        %v4199 = vmul.f32 %v4158, %v4180
        %v4200 = vmul.f32 %v4158, %v4194
        %v4201 = vmul.f32 %v4162, %v4180
        %v4202 = vmul.f32 %v4162, %v4194
        %v4203 = vmul.f32 %v4166, %v4180
        %v4204 = vmul.f32 %v4166, %v4194
        %v4205 = vadd.f32 %v4143, %v4197
        %v4206 = vadd.f32 %v4144, %v4198
        %v4207 = vadd.f32 %v4145, %v4199
        %v4208 = vadd.f32 %v4146, %v4200
        %v4209 = vadd.f32 %v4147, %v4201
        %v4210 = vadd.f32 %v4148, %v4202
        %v4211 = vadd.f32 %v4149, %v4203
        %v4212 = vadd.f32 %v4150, %v4204
        %v4213 = vlaneseq
        %v4214 = vshrl.u32 %v4213, 7
        %v4215 = vsub.s32 7, %v4214
        %v4216 = vrot.slane %v868, %v4215
        %v4217 = vlaneseq
        %v4218 = vshrl.u32 %v4217, 7
        %v4219 = vsub.s32 7, %v4218
        %v4220 = vrot.slane %v894, %v4219
        %v4221 = vlaneseq
        %v4222 = vshrl.u32 %v4221, 7
        %v4223 = vsub.s32 7, %v4222
        %v4224 = vrot.slane %v920, %v4223
        %v4225 = vlaneseq
        %v4226 = vshrl.u32 %v4225, 7
        %v4227 = vsub.s32 7, %v4226
        %v4228 = vrot.slane %v946, %v4227
        %v4229 = vrot.slane %v3047, 7
        %v4230 = vrot.slane %v3051, 6
        %v4231 = vsel %vm3285, %v4230, %v4229
        %v4232 = vrot.slane %v3055, 5
        %v4233 = vsel %vm3288, %v4232, %v4231
        %v4234 = vrot.slane %v3059, 4
        %v4235 = vsel %vm3291, %v4234, %v4233
        %v4236 = vrot.slane %v3063, 3
        %v4237 = vsel %vm3294, %v4236, %v4235
        %v4238 = vrot.slane %v3067, 2
        %v4239 = vsel %vm3297, %v4238, %v4237
        %v4240 = vrot.slane %v3071, 1
        %v4241 = vsel %vm3300, %v4240, %v4239
        %v4242 = vsel %vm3303, %v3075, %v4241
        %v4243 = vrot.slane %v3079, 7
        %v4244 = vrot.slane %v3083, 6
        %v4245 = vsel %vm3285, %v4244, %v4243
        %v4246 = vrot.slane %v3087, 5
        %v4247 = vsel %vm3288, %v4246, %v4245
        %v4248 = vrot.slane %v3091, 4
        %v4249 = vsel %vm3291, %v4248, %v4247
        %v4250 = vrot.slane %v3095, 3
        %v4251 = vsel %vm3294, %v4250, %v4249
        %v4252 = vrot.slane %v3099, 2
        %v4253 = vsel %vm3297, %v4252, %v4251
        %v4254 = vrot.slane %v3103, 1
        %v4255 = vsel %vm3300, %v4254, %v4253
        %v4256 = vsel %vm3303, %v3107, %v4255
        %v4259 = vmul.f32 %v4216, %v4242
        %v4260 = vmul.f32 %v4216, %v4256
        %v4261 = vmul.f32 %v4220, %v4242
        %v4262 = vmul.f32 %v4220, %v4256
        %v4263 = vmul.f32 %v4224, %v4242
        %v4264 = vmul.f32 %v4224, %v4256
        %v4265 = vmul.f32 %v4228, %v4242
        %v4266 = vmul.f32 %v4228, %v4256
        %v4267 = vadd.f32 %v4205, %v4259
        %v4268 = vadd.f32 %v4206, %v4260
        %v4269 = vadd.f32 %v4207, %v4261
        %v4270 = vadd.f32 %v4208, %v4262
        %v4271 = vadd.f32 %v4209, %v4263
        %v4272 = vadd.f32 %v4210, %v4264
        %v4273 = vadd.f32 %v4211, %v4265
        %v4274 = vadd.f32 %v4212, %v4266
        %v4275 = vrcp.pop %v3116
        %v4276 = vmul.f32 1.0, %v4275
        %v4277 = vrcp.pop %v3125
        %v4278 = vmul.f32 1.0, %v4277
        %v4279 = vrcp.pop %v3134
        %v4280 = vmul.f32 1.0, %v4279
        %v4281 = vrcp.pop %v3143
        %v4282 = vmul.f32 1.0, %v4281
        %v4283 = vrcp.pop %v3152
        %v4284 = vmul.f32 1.0, %v4283
        %v4285 = vrcp.pop %v3161
        %v4286 = vmul.f32 1.0, %v4285
        %v4287 = vrcp.pop %v3170
        %v4288 = vmul.f32 1.0, %v4287
        %v4289 = vrcp.pop %v3179
        %v4290 = vmul.f32 1.0, %v4289
        %v4291 = vrcp.pop %v3188
        %v4292 = vmul.f32 1.0, %v4291
        %v4293 = vrcp.pop %v3197
        %v4294 = vmul.f32 1.0, %v4293
        %v4295 = vrcp.pop %v3206
        %v4296 = vmul.f32 1.0, %v4295
        %v4297 = vrcp.pop %v3215
        %v4298 = vmul.f32 1.0, %v4297
        %v4299 = vrcp.pop %v3224
        %v4300 = vmul.f32 1.0, %v4299
        %v4301 = vrcp.pop %v3233
        %v4302 = vmul.f32 1.0, %v4301
        %v4303 = vrcp.pop %v3242
        %v4304 = vmul.f32 1.0, %v4303
        %v4305 = vrcp.pop %v3251
        %v4306 = vmul.f32 1.0, %v4305
        %v4323 = vsel %vm3285, %v4278, %v4276
        %v4324 = vsel %vm3288, %v4280, %v4323
        %v4325 = vsel %vm3291, %v4282, %v4324
        %v4326 = vsel %vm3294, %v4284, %v4325
        %v4327 = vsel %vm3297, %v4286, %v4326
        %v4328 = vsel %vm3300, %v4288, %v4327
        %v4329 = vsel %vm3303, %v4290, %v4328
        %v4330 = vsel %vm3285, %v4294, %v4292
        %v4331 = vsel %vm3288, %v4296, %v4330
        %v4332 = vsel %vm3291, %v4298, %v4331
        %v4333 = vsel %vm3294, %v4300, %v4332
        %v4334 = vsel %vm3297, %v4302, %v4333
        %v4335 = vsel %vm3300, %v4304, %v4334
        %v4336 = vsel %vm3303, %v4306, %v4335
        %v4339 = vmul.f32 %v4267, %v4329
        %v4340 = vmul.f32 %v4268, %v4336
        %v4341 = vmul.f32 %v4269, %v4329
        %v4342 = vmul.f32 %v4270, %v4336
        %v4343 = vmul.f32 %v4271, %v4329
        %v4344 = vmul.f32 %v4272, %v4336
        %v4345 = vmul.f32 %v4273, %v4329
        %v4346 = vmul.f32 %v4274, %v4336
        %s4347 = sld [smem:[#allocation2]]
        %v4348 = vstv %s4347
        %v4349 = vmul.f32 %v4348, %v4339
        %v4350 = vmul.f32 %v4348, %v4340
        %v4351 = vmul.f32 %v4348, %v4341
        %v4352 = vmul.f32 %v4348, %v4342
        %v4353 = vmul.f32 %v4348, %v4343
        %v4354 = vmul.f32 %v4348, %v4344
        %v4355 = vmul.f32 %v4348, %v4345
        %v4356 = vmul.f32 %v4348, %v4346
        %v4357 = vadd.f32 %v4349, %v419
        %v4358 = vadd.f32 %v4350, %v420
        %v4359 = vadd.f32 %v4351, %v421
        %v4360 = vadd.f32 %v4352, %v422
        %v4361 = vadd.f32 %v4353, %v423
        %v4362 = vadd.f32 %v4354, %v424
        %v4363 = vadd.f32 %v4355, %v425
        %v4364 = vadd.f32 %v4356, %v426
        %4365 = vst.msk [vmem:[%s418] sm:$0xff] %vm2867, %v4357
        %4366 = vst.msk [vmem:[%s418 + $0x8] sm:$0xff] %vm2867, %v4358
        %4367 = vst.msk [vmem:[%s418 + $0x10] sm:$0xff] %vm2867, %v4359
        %4368 = vst.msk [vmem:[%s418 + $0x18] sm:$0xff] %vm2867, %v4360
        %4369 = vst.msk [vmem:[%s418 + $0x20] sm:$0xff] %vm2867, %v4361
        %4370 = vst.msk [vmem:[%s418 + $0x28] sm:$0xff] %vm2867, %v4362
        %4371 = vst.msk [vmem:[%s418 + $0x30] sm:$0xff] %vm2867, %v4363
        %4372 = vst.msk [vmem:[%s418 + $0x38] sm:$0xff] %vm2867, %v4364
        %s4373 = sand.u32 %s227, 1
        %s4374 = scalar_lea.sflag [#allocation5], %s4373
        %s4375 = sand.u32 %s227, 1
        %s4376 = smul.addr %s4375, 64
        %s4377 = scalar_lea.vmem [#allocation16], %s4376
        // Predicated region
        $region81: #{tpu_custom_call.1} parent=51 // pred_check
          %p4378 = pneg %p237
        $region82: #{tpu_custom_call.1} parent=51 // pred_check_branch
          %4380 = sbr.rel (%p4378) target = $region84
        $region83: #{tpu_custom_call.1} parent=51 // pred_region
          %s4382 = ssub.s32 1024, 1024
          %4383 = vsyncadd %s4374, %s4382
          %s4384 = smul.addr %s34, 8
          %s4385 = sadd.s32 %s35, %s4384
          %s4386 = smul.addr %s4385, 128
          %s4387 = scalar_lea.hbm %s8, %s4386
          %s4388 = sshll.u32 %s4377, 4
          %s4389 = int_to_ptr.vmem [resolvable:$true] %s4388
          %4394 = dma.vmem_to_hbm [thread:$0]  %s4389, 1024, %s4387, %s4374, 128, 128, 8
        $region84: #{tpu_custom_call.1} parent=51 // pred_fallthru
          _
      $region52: #{tpu_custom_call.1} parent=5 // pred_fallthru
        _
      %p4395 = scmp.le.s32.totalorder 2, %s25
      // Predicated region
      $region85: #{tpu_custom_call.1} parent=5 // pred_check
        %p4396 = pneg %p4395
      $region86: #{tpu_custom_call.1} parent=5 // pred_check_branch
        %4398 = sbr.rel (%p4396) target = $region88
      $region87: #{tpu_custom_call.1} parent=5 // pred_region
        %s4399 = ssub.s32 %s25, 2
        // Predicated region
        $region89: #{tpu_custom_call.1} parent=87 // pred_check
          %p4400 = pneg %p243
        $region90: #{tpu_custom_call.1} parent=87 // pred_check_branch
          %4402 = sbr.rel (%p4400) target = $region92
        $region91: #{tpu_custom_call.1} parent=87 // pred_region
          %s4403 = sand.u32 %s228, 1
          %s4404 = scalar_lea.sflag [#allocation5], %s4403
          %s4405 = sand.u32 %s228, 1
          %s4406 = smul.addr %s4405, 64
          %s4407 = scalar_lea.vmem [#allocation16], %s4406
          %4408 = dma.done %s4404, 1024
        $region92: #{tpu_custom_call.1} parent=87 // pred_fallthru
          _
      $region88: #{tpu_custom_call.1} parent=5 // pred_fallthru
        _
    $region6: #{tpu_custom_call.1} parent=1 // loop_footer
      %s29 = sadd.s32 1, %s25
    $region7: #{tpu_custom_call.1} parent=1 // loop_footer_branch
      %24 = sbr.rel target = $region3
    $region8: #{tpu_custom_call.1} parent=1 // loop_exit
      _
    %4409 = vsyncpa [#allocation4], 1
    %s4410 = scalar_lea.sflag [#allocation4], 1
    %4411 = vsyncpa %s4410, 1
    %4412 = vsyncpa [#allocation5], 1
    %s4413 = scalar_lea.sflag [#allocation5], 1
    %4414 = vsyncpa %s4413, 1
    %4415 = vsyncpa [#allocation6], 1
    %s4416 = scalar_lea.sflag [#allocation6], 1
    %4417 = vsyncpa %s4416, 1
    %4418 = vsyncpa [#allocation9], 1
    %4419 = vsyncpa [#allocation12], 1
    %4420 = vsyncpa [#allocation15], 1

</llo_original>
